<compile_context>
chip_gen: v6e
topology: v6e:2x2x1
jax: 0.10.0
libtpu: 0.0.40
codegen_flags: <defaults>
</compile_context>

<pallas_src>
from functools import partial

import jax
import jax.numpy as jnp
import numpy as np
from jax import lax
from jax.experimental import pallas as pl
from jax.experimental.pallas import tpu as pltpu


# ---------------------------------------------------------------------------
# in-kernel helpers
# ---------------------------------------------------------------------------

def _bottleneck_dconv(xm, xhalo, w1, alpha1, a1, c1, wd, j, *,
                      t_tile, padding, dilation, ksize, t_true, t_pad):
    """Conv1x1 -> PReLU1 -> GroupNorm1(affine) -> depthwise dilated conv on one
    time tile.  `xm` is the aligned main tile, `xhalo` a narrow precomputed halo
    slab (left `padding` cols, then right `padding` cols)."""
    if padding > 0:
        xwin = jnp.concatenate(
            [xhalo[:, :padding], xm, xhalo[:, padding:2 * padding]], axis=1)
    else:
        xwin = xm
    win = t_tile + 2 * padding
    u = jnp.dot(w1, xwin, preferred_element_type=jnp.float32)           # (H, W)
    u = jnp.where(u > 0, u, alpha1 * u)                                 # PReLU 1
    y = u * a1 + c1                                                     # GroupNorm 1 (affine)
    if padding > 0 or t_pad > t_true:
        # zero-padding semantics of the depthwise conv: columns outside the
        # true [0, T) range must contribute zero.
        col = lax.broadcasted_iota(jnp.int32, (1, win), 1) + (j * t_tile - padding)
        y = y * ((col >= 0) & (col < t_true)).astype(jnp.float32)
    # dilated depthwise conv: every tap is an in-tile slice of the halo'd window
    acc = wd[:, 0:1] * y[:, 0:t_tile]
    for k in range(1, ksize):
        off = k * dilation
        acc = acc + wd[:, k:k + 1] * y[:, off:off + t_tile]
    return acc                                                          # (H, t_tile)


# ---------------------------------------------------------------------------
# kernels
# ---------------------------------------------------------------------------

def _gn1_stats_kernel(alpha_ref, x_ref, w1_ref, stats_ref):
    """Pass A: accumulate per-channel [sum, sumsq] of PReLU1(Conv1x1(x))."""
    j = pl.program_id(1)

    @pl.when(j == 0)
    def _():
        stats_ref[...] = jnp.zeros_like(stats_ref)

    x = x_ref[0].astype(jnp.float32)                                    # (Bc, Tt)
    u = jnp.dot(w1_ref[...].astype(jnp.float32), x,
                preferred_element_type=jnp.float32)                     # (H, Tt)
    u = jnp.where(u > 0, u, alpha_ref[0] * u)                           # PReLU 1
    s1 = jnp.sum(u, axis=1, keepdims=True)                              # (H, 1)
    s2 = jnp.sum(u * u, axis=1, keepdims=True)                          # (H, 1)
    stats_ref[0] = stats_ref[0] + jnp.concatenate([s1, s2], axis=1)


def _gn2_stats_kernel(alpha_ref, x_ref, halo_ref, w1_ref, wd_ref, aff1_ref,
                      stats_ref, *, t_tile, padding, dilation, ksize,
                      t_true, t_pad):
    """Pass B: accumulate per-channel [sum, sumsq] of PReLU2(DConv(GN1(...)))."""
    j = pl.program_id(1)

    @pl.when(j == 0)
    def _():
        stats_ref[...] = jnp.zeros_like(stats_ref)

    a1 = aff1_ref[0, :, 0:1]                                            # (H, 1)
    c1 = aff1_ref[0, :, 1:2]
    xhalo = halo_ref[0].astype(jnp.float32) if padding > 0 else None
    v = _bottleneck_dconv(x_ref[0].astype(jnp.float32), xhalo,
                          w1_ref[...].astype(jnp.float32),
                          alpha_ref[0], a1, c1,
                          wd_ref[...].astype(jnp.float32), j,
                          t_tile=t_tile, padding=padding, dilation=dilation,
                          ksize=ksize, t_true=t_true, t_pad=t_pad)
    v = jnp.where(v > 0, v, alpha_ref[1] * v)                           # PReLU 2
    if t_pad > t_true:
        # ignore the tail columns that only exist because T was tiled up.
        col = lax.broadcasted_iota(jnp.int32, (1, t_tile), 1) + j * t_tile
        v = v * (col < t_true).astype(jnp.float32)
    s1 = jnp.sum(v, axis=1, keepdims=True)
    s2 = jnp.sum(v * v, axis=1, keepdims=True)
    stats_ref[0] = stats_ref[0] + jnp.concatenate([s1, s2], axis=1)


def _output_kernel(alpha_ref, x_ref, halo_ref, w1_ref, wd_ref, aff1_ref,
                   aff2_ref, wo_ref, bo_ref, res_ref, skip_ref, *,
                   t_tile, padding, dilation, ksize, t_true, t_pad, n_res):
    """Pass C: normalize with both precomputed affines + fused res/skip proj."""
    j = pl.program_id(1)
    a1 = aff1_ref[0, :, 0:1]
    c1 = aff1_ref[0, :, 1:2]
    a2 = aff2_ref[0, :, 0:1]
    c2 = aff2_ref[0, :, 1:2]
    xhalo = halo_ref[0].astype(jnp.float32) if padding > 0 else None
    v = _bottleneck_dconv(x_ref[0].astype(jnp.float32), xhalo,
                          w1_ref[...].astype(jnp.float32),
                          alpha_ref[0], a1, c1,
                          wd_ref[...].astype(jnp.float32), j,
                          t_tile=t_tile, padding=padding, dilation=dilation,
                          ksize=ksize, t_true=t_true, t_pad=t_pad)
    v = jnp.where(v > 0, v, alpha_ref[1] * v)                           # PReLU 2
    z = v * a2 + c2                                                     # GroupNorm 2
    # fused residual + skip projection: single lane-dense (Bc+Sc, H)@(H, Tt).
    out = jnp.dot(wo_ref[...].astype(jnp.float32), z,
                  preferred_element_type=jnp.float32) + bo_ref[...]
    res_ref[0] = out[:n_res].astype(res_ref.dtype)
    skip_ref[0] = out[n_res:].astype(skip_ref.dtype)


# ---------------------------------------------------------------------------
# wrapper helpers (tiny XLA ops between the pallas_calls)
# ---------------------------------------------------------------------------

def _gn_affine(stats_c, gamma, beta, *, num_groups, inv_count, eps):
    """Per-channel (a, c) such that GroupNorm(x) == x * a + c, from streaming
    per-channel [sum, sumsq] (one-pass stats: var = E[x^2] - E[x]^2)."""
    NB, H, _ = stats_c.shape
    cpg = H // num_groups
    sg = stats_c.reshape(NB, num_groups, cpg, 2).sum(axis=2)            # (NB, G, 2)
    mean = sg[..., 0] * inv_count                                       # (NB, G)
    var = jnp.maximum(sg[..., 1] * inv_count - mean * mean, 0.0)
    rstd = lax.rsqrt(var + eps)
    mean_c = jnp.repeat(mean, cpg, axis=1)                              # (NB, H)
    rstd_c = jnp.repeat(rstd, cpg, axis=1)
    a = rstd_c * gamma.reshape(1, H)
    c = beta.reshape(1, H) - mean_c * a
    return jnp.stack([a, c], axis=-1)                                   # (NB, H, 2)


# ---------------------------------------------------------------------------
# wrapper
# ---------------------------------------------------------------------------

def tcn_layer(instrument, x, params, *, num_groups, kernel, dilation, padding,
              eps=1e-8, t_tile_max=1024):
    """x: (N, 4, B, T) -> (residual (N, 4, B, T), skip (N, 4, Sc, T))."""
    del instrument  # generated=False path: the instrument embedding is unused.
    N, I, Bc, T = x.shape
    NB = N * I
    H = params["w1"].shape[0]
    Sc = params["wskip"].shape[0]
    G = num_groups
    assert H % G == 0
    assert dilation * (kernel - 1) == 2 * padding, \
        "length-preserving symmetric padding expected (as used by the TCN)"
    f32 = jnp.float32

    # ---- time tiling: lane-dense (multiple of 128) tiles ----
    def rup(a, b):
        return -(-a // b) * b

    t_tile_max = max(128, (t_tile_max // 128) * 128)
    Tt = min(t_tile_max, rup(T, 128))
    Tt = max(Tt, rup(max(2 * padding, 1), 128))      # need 2*padding <= Tt
    Tp = rup(T, Tt)                                  # T rounded up to tile multiple
    nT = Tp // Tt
    Hh = rup(max(2 * padding, 1), 128)               # halo-slab lane width

    xf = x.reshape(NB, Bc, T).astype(f32)
    xmain = jnp.pad(xf, ((0, 0), (0, 0), (0, Tp - T)))                  # (NB, Bc, Tp)

    # Per-tile halo slab (layout plumbing, built once in the wrapper): tile j's
    # slab holds the `padding` columns just left of the tile followed by the
    # `padding` columns just right of it (zero outside [0, T)), padded to a
    # lane-dense width Hh.  Passes B/C then read [main tile | 128-wide halo]
    # instead of two full adjacent tiles.
    if padding > 0:
        Wx = (nT + 1) * Tt
        xpad = jnp.pad(xf, ((0, 0), (0, 0), (padding, Wx - T - padding)))
        lefts = xpad[:, :, :nT * Tt].reshape(NB, Bc, nT, Tt)[:, :, :, :padding]
        rights = xpad[:, :, Tt:].reshape(NB, Bc, nT, Tt)[:, :, :, padding:2 * padding]
        halo = jnp.concatenate([lefts, rights], axis=-1)                # (NB,Bc,nT,2p)
        halo = jnp.pad(halo, ((0, 0), (0, 0), (0, 0), (0, Hh - 2 * padding)))
        halo = halo.reshape(NB, Bc, nT * Hh)
    else:
        halo = jnp.zeros((NB, Bc, nT * Hh), f32)

    # weights (tiny, cast once)
    w1 = params["w1"].astype(f32)
    wd = params["wd"].astype(f32)
    # fused residual/skip projection weights (single matmul in the kernel)
    wo = jnp.concatenate([params["wres"], params["wskip"]], axis=0).astype(f32)
    bo = jnp.concatenate([params["bres"], params["bskip"]], axis=0).astype(f32)
    alphas = jnp.stack([params["alpha1"], params["alpha2"]]).astype(f32)

    inv_count = 1.0 / float((H // G) * T)

    cp = pltpu.CompilerParams(
        dimension_semantics=("parallel", "arbitrary"),
        vmem_limit_bytes=48 * 1024 * 1024,   # sized for v7x's 64 MiB VMEM
    )

    smem_spec = pl.BlockSpec(memory_space=pltpu.MemorySpace.SMEM)

    def const_spec(shape):
        zeros = (0,) * len(shape)
        return pl.BlockSpec(shape, lambda nb, j, z=zeros: z)

    x_spec = pl.BlockSpec((1, Bc, Tt), lambda nb, j: (nb, 0, j))
    halo_spec = pl.BlockSpec((1, Bc, Hh), lambda nb, j: (nb, 0, j))
    per_nb_spec = pl.BlockSpec((1, H, 2), lambda nb, j: (nb, 0, 0))
    stats_shape = jax.ShapeDtypeStruct((NB, H, 2), f32)

    static = dict(t_tile=Tt, padding=padding, dilation=dilation,
                  ksize=kernel, t_true=T, t_pad=Tp)

    # ---- pass A: streaming GroupNorm-1 statistics ----
    stats1 = pl.pallas_call(
        _gn1_stats_kernel,
        out_shape=stats_shape,
        grid_spec=pltpu.PrefetchScalarGridSpec(
            num_scalar_prefetch=0,
            grid=(NB, nT),
            in_specs=[smem_spec, x_spec, const_spec((H, Bc))],
            out_specs=per_nb_spec,
        ),
        compiler_params=cp,
    )(alphas, xmain, w1)

    aff1 = _gn_affine(stats1, params["g1"].astype(f32), params["b1"].astype(f32),
                      num_groups=G, inv_count=inv_count, eps=eps)

    # ---- pass B: streaming GroupNorm-2 statistics ----
    stats2 = pl.pallas_call(
        partial(_gn2_stats_kernel, **static),
        out_shape=stats_shape,
        grid_spec=pltpu.PrefetchScalarGridSpec(
            num_scalar_prefetch=0,
            grid=(NB, nT),
            in_specs=[smem_spec, x_spec, halo_spec,
                      const_spec((H, Bc)), const_spec((H, kernel)),
                      per_nb_spec],
            out_specs=per_nb_spec,
        ),
        compiler_params=cp,
    )(alphas, xmain, halo, w1, wd, aff1)

    aff2 = _gn_affine(stats2, params["g2"].astype(f32), params["b2"].astype(f32),
                      num_groups=G, inv_count=inv_count, eps=eps)

    # ---- pass C: normalize + fused residual/skip projection ----
    res, skip = pl.pallas_call(
        partial(_output_kernel, n_res=Bc, **static),
        out_shape=(jax.ShapeDtypeStruct((NB, Bc, Tp), x.dtype),
                   jax.ShapeDtypeStruct((NB, Sc, Tp), x.dtype)),
        grid_spec=pltpu.PrefetchScalarGridSpec(
            num_scalar_prefetch=0,
            grid=(NB, nT),
            in_specs=[smem_spec, x_spec, halo_spec,
                      const_spec((H, Bc)), const_spec((H, kernel)),
                      per_nb_spec, per_nb_spec,
                      const_spec((Bc + Sc, H)), const_spec((Bc + Sc, 1))],
            out_specs=[pl.BlockSpec((1, Bc, Tt), lambda nb, j: (nb, 0, j)),
                       pl.BlockSpec((1, Sc, Tt), lambda nb, j: (nb, 0, j))],
        ),
        compiler_params=cp,
    )(alphas, xmain, halo, w1, wd, aff1, aff2, wo, bo)

    res = res[:, :, :T].reshape(N, I, Bc, T)
    skip = skip[:, :, :T].reshape(N, I, Sc, T)
    return res, skip


# ---------------------------------------------------------------------------
# plain-JAX reference (PyTorch TCNLayer forward, generated=False)
# ---------------------------------------------------------------------------

def tcn_layer_reference(x, params, *, num_groups, kernel, dilation, padding, eps=1e-8):
    N, I, Bc, T = x.shape
    NB = N * I
    Sc = params["wskip"].shape[0]
    xf = x.reshape(NB, Bc, T).astype(jnp.float32)
    G = num_groups

    def group_norm(v, gamma, beta):
        nb, h, t = v.shape
        vg = v.reshape(nb, G, h // G, t)
        m = vg.mean(axis=(2, 3), keepdims=True)
        var = ((vg - m) ** 2).mean(axis=(2, 3), keepdims=True)
        vn = ((vg - m) / jnp.sqrt(var + eps)).reshape(nb, h, t)
        return vn * gamma[None] + beta[None]

    def prelu(v, a):
        return jnp.where(v > 0, v, a * v)

    u = jnp.einsum("hc,nct->nht", params["w1"].astype(jnp.float32), xf)
    y = group_norm(prelu(u, params["alpha1"]), params["g1"], params["b1"])
    yp = jnp.pad(y, ((0, 0), (0, 0), (padding, padding)))
    w = jnp.zeros_like(y)
    for k in range(kernel):
        off = k * dilation
        w = w + params["wd"][None, :, k:k + 1].astype(jnp.float32) * yp[:, :, off:off + T]
    z = group_norm(prelu(w, params["alpha2"]), params["g2"], params["b2"])
    res = jnp.einsum("bh,nht->nbt", params["wres"].astype(jnp.float32), z) + params["bres"][None]
    skip = jnp.einsum("sh,nht->nst", params["wskip"].astype(jnp.float32), z) + params["bskip"][None]
    return (res.reshape(N, I, Bc, T).astype(x.dtype),
            skip.reshape(N, I, Sc, T).astype(x.dtype))


if __name__ == "__main__":
    # Small shapes consistent with the module's forward:
    #   instrument: (4, E_1), x: (N, 4, B, T)
    N, I = 2, 4
    E_1 = 8
    Bc, H, Sc = 16, 32, 16      # bottleneck, hidden, skip dims
    K, dil = 3, 2
    pad = dil * (K - 1) // 2    # length-preserving padding
    T = 512
    num_groups = 8
    residual_bias = True

    key = jax.random.PRNGKey(0)
    ks = jax.random.split(key, 8)
    params = dict(
        w1=jax.random.normal(ks[0], (H, Bc), jnp.float32) * 0.1,
        alpha1=jnp.float32(0.25),                      # nn.PReLU default init
        g1=jnp.ones((H, 1), jnp.float32),              # GroupNorm affine defaults
        b1=jnp.zeros((H, 1), jnp.float32),
        wd=jax.random.normal(ks[1], (H, K), jnp.float32) * 0.1,
        alpha2=jnp.float32(0.25),
        g2=jnp.ones((H, 1), jnp.float32),
        b2=jnp.zeros((H, 1), jnp.float32),
        wres=jax.random.normal(ks[2], (Bc, H), jnp.float32) * 0.1,
        bres=(jax.random.normal(ks[3], (Bc, 1), jnp.float32) * 0.01
              if residual_bias else jnp.zeros((Bc, 1), jnp.float32)),
        wskip=jax.random.normal(ks[4], (Sc, H), jnp.float32) * 0.1,
        bskip=(jax.random.normal(ks[5], (Sc, 1), jnp.float32) * 0.01
               if residual_bias else jnp.zeros((Sc, 1), jnp.float32)),
    )
    instrument = jax.random.normal(ks[6], (I, E_1), jnp.float32)
    x = jax.random.normal(ks[7], (N, I, Bc, T), jnp.float32)

    # t_tile_max=128 so the streaming multi-tile path (4 time tiles + halos)
    # is exercised.  The whole wrapper is jitted so the tiny glue ops fuse.
    fwd = jax.jit(partial(tcn_layer, num_groups=num_groups, kernel=K,
                          dilation=dil, padding=pad, eps=1e-8, t_tile_max=128))
    res, skip = fwd(instrument, x, params)
    jax.block_until_ready((res, skip))
    assert res.shape == (N, I, Bc, T) and skip.shape == (N, I, Sc, T)
    assert res.dtype == x.dtype and skip.dtype == x.dtype

    # correctness vs a plain-JAX reference of the PyTorch module
    res_ref, skip_ref = tcn_layer_reference(x, params, num_groups=num_groups,
                                            kernel=K, dilation=dil, padding=pad,
                                            eps=1e-8)
    np.testing.assert_allclose(np.asarray(res), np.asarray(res_ref),
                               rtol=5e-2, atol=5e-2)
    np.testing.assert_allclose(np.asarray(skip), np.asarray(skip_ref),
                               rtol=5e-2, atol=5e-2)
    print("KERNEL_OK")
</pallas_src>

<mosaic_0001>
module attributes {stable_mosaic.version = 11 : i64} {
  func.func @_gn1_stats_kernel(%arg0: i32, %arg1: i32, %arg2: memref<2xf32, #tpu.memory_space<smem>>, %arg3: memref<1x16x128xf32, #tpu.memory_space<vmem>>, %arg4: memref<32x16xf32, #tpu.memory_space<vmem>>, %arg5: memref<1x32x2xf32, #tpu.memory_space<vmem>>) attributes {dimension_semantics = [#tpu.dimension_semantics<parallel>, #tpu.dimension_semantics<arbitrary>], iteration_bounds = array<i64: 8, 4>, scalar_prefetch = 0 : i64, scratch_operands = 0 : i64, tpu.core_type = #tpu.core_type<tc>, window_params = [{transform_indices = @transform_0, window_bounds = array<i64: 2>}, {transform_indices = @transform_1, window_bounds = array<i64: 1, 16, 128>}, {pipeline_mode = #tpu.pipeline_mode<synchronous>, transform_indices = @transform_2, window_bounds = array<i64: 32, 16>}, {transform_indices = @transform_3, window_bounds = array<i64: 1, 32, 2>}]} {
    %c0_i32 = arith.constant 0 : i32
    %0 = arith.cmpi eq, %arg1, %c0_i32 : i32
    %1 = arith.extui %0 : i1 to i32
    %c0_i32_0 = arith.constant 0 : i32
    %2 = arith.cmpi ne, %1, %c0_i32_0 : i32
    scf.if %2 {
      %cst_15 = arith.constant 0.000000e+00 : f32
      %25 = vector.broadcast %cst_15 : f32 to vector<1x32x2xf32>
      %c0_16 = arith.constant 0 : index
      %c0_17 = arith.constant 0 : index
      %c0_18 = arith.constant 0 : index
      %26 = vector.load %arg5[%c0_16, %c0_17, %c0_18] : memref<1x32x2xf32, #tpu.memory_space<vmem>>, vector<1x32x2xf32>
      tpu.vector_store %arg5[%c0_16, %c0_17, %c0_18], %25 {strides = array<i32>} : memref<1x32x2xf32, #tpu.memory_space<vmem>>, vector<1x32x2xf32>,
    } else {
    }
    %c0 = arith.constant 0 : index
    %c0_1 = arith.constant 0 : index
    %c0_2 = arith.constant 0 : index
    %3 = vector.load %arg3[%c0, %c0_1, %c0_2] : memref<1x16x128xf32, #tpu.memory_space<vmem>>, vector<1x16x128xf32>
    %4 = vector.shape_cast %3 : vector<1x16x128xf32> to vector<16x128xf32>
    %c0_3 = arith.constant 0 : index
    %c0_4 = arith.constant 0 : index
    %5 = vector.load %arg4[%c0_3, %c0_4] : memref<32x16xf32, #tpu.memory_space<vmem>>, vector<32x16xf32>
    %cst = arith.constant dense<0.000000e+00> : vector<32x128xf32>
    %6 = tpu.matmul %5, %4, %cst {dimension_numbers = #tpu.dot_dimension_numbers<[1], [0], [0], [1], [0, 0, 1, 1], [], []>} : vector<32x16xf32>, vector<16x128xf32>, vector<32x128xf32> -> vector<32x128xf32>
    %cst_5 = arith.constant 0.000000e+00 : f32
    %7 = vector.broadcast %cst_5 : f32 to vector<32x128xf32>
    %8 = arith.cmpf ogt, %6, %7 : vector<32x128xf32>
    %c0_6 = arith.constant 0 : index
    %9 = memref.load %arg2[%c0_6] : memref<2xf32, #tpu.memory_space<smem>>
    %10 = vector.broadcast %9 : f32 to vector<32x128xf32>
    %11 = arith.mulf %10, %6 : vector<32x128xf32>
    %12 = arith.select %8, %6, %11 : vector<32x128xi1>, vector<32x128xf32>
    %cst_7 = arith.constant dense<0.000000e+00> : vector<32xf32>
    %13 = vector.multi_reduction <add>, %12, %cst_7 [1] : vector<32x128xf32> to vector<32xf32>
    %14 = vector.shape_cast %13 : vector<32xf32> to vector<32x1xf32>
    %15 = arith.mulf %12, %12 : vector<32x128xf32>
    %cst_8 = arith.constant dense<0.000000e+00> : vector<32xf32>
    %16 = vector.multi_reduction <add>, %15, %cst_8 [1] : vector<32x128xf32> to vector<32xf32>
    %17 = vector.shape_cast %16 : vector<32xf32> to vector<32x1xf32>
    %c0_9 = arith.constant 0 : index
    %c0_10 = arith.constant 0 : index
    %c0_11 = arith.constant 0 : index
    %18 = vector.load %arg5[%c0_9, %c0_10, %c0_11] : memref<1x32x2xf32, #tpu.memory_space<vmem>>, vector<1x32x2xf32>
    %19 = vector.shape_cast %18 : vector<1x32x2xf32> to vector<32x2xf32>
    %20 = tpu.concatenate %14, %17 in 1 : vector<32x1xf32>, vector<32x1xf32> -> vector<32x2xf32>
    %21 = arith.addf %19, %20 : vector<32x2xf32>
    %c0_12 = arith.constant 0 : index
    %c0_13 = arith.constant 0 : index
    %c0_14 = arith.constant 0 : index
    %22 = vector.load %arg5[%c0_12, %c0_13, %c0_14] : memref<1x32x2xf32, #tpu.memory_space<vmem>>, vector<1x32x2xf32>
    %23 = vector.shape_cast %22 : vector<1x32x2xf32> to vector<32x2xf32>
    %24 = vector.shape_cast %21 : vector<32x2xf32> to vector<1x32x2xf32>
    tpu.vector_store %arg5[%c0_12, %c0_13, %c0_14], %24 {strides = array<i32>} : memref<1x32x2xf32, #tpu.memory_space<vmem>>, vector<1x32x2xf32>,
    return
  }
  func.func @transform_0(%arg0: i32, %arg1: i32) -> i32 {
    %c0_i32 = arith.constant 0 : i32
    %c0_i32_0 = arith.constant 0 : i32
    return %c0_i32 : i32
  }
  func.func @transform_1(%arg0: i32, %arg1: i32) -> (i32, i32, i32) {
    %c0_i32 = arith.constant 0 : i32
    %c0_i32_0 = arith.constant 0 : i32
    return %arg0, %c0_i32, %arg1 : i32, i32, i32
  }
  func.func @transform_2(%arg0: i32, %arg1: i32) -> (i32, i32) {
    %c0_i32 = arith.constant 0 : i32
    %c0_i32_0 = arith.constant 0 : i32
    %c0_i32_1 = arith.constant 0 : i32
    return %c0_i32, %c0_i32_0 : i32, i32
  }
  func.func @transform_3(%arg0: i32, %arg1: i32) -> (i32, i32, i32) {
    %c0_i32 = arith.constant 0 : i32
    %c0_i32_0 = arith.constant 0 : i32
    %c0_i32_1 = arith.constant 0 : i32
    return %arg0, %c0_i32, %c0_i32_0 : i32, i32, i32
  }
}

module attributes {stable_mosaic.version = 11 : i64} {
  func.func @_gn2_stats_kernel(%arg0: i32, %arg1: i32, %arg2: memref<2xf32, #tpu.memory_space<smem>>, %arg3: memref<1x16x128xf32, #tpu.memory_space<vmem>>, %arg4: memref<1x16x128xf32, #tpu.memory_space<vmem>>, %arg5: memref<32x16xf32, #tpu.memory_space<vmem>>, %arg6: memref<32x3xf32, #tpu.memory_space<vmem>>, %arg7: memref<1x32x2xf32, #tpu.memory_space<vmem>>, %arg8: memref<1x32x2xf32, #tpu.memory_space<vmem>>) attributes {dimension_semantics = [#tpu.dimension_semantics<parallel>, #tpu.dimension_semantics<arbitrary>], iteration_bounds = array<i64: 8, 4>, scalar_prefetch = 0 : i64, scratch_operands = 0 : i64, tpu.core_type = #tpu.core_type<tc>, window_params = [{transform_indices = @transform_0, window_bounds = array<i64: 2>}, {transform_indices = @transform_1, window_bounds = array<i64: 1, 16, 128>}, {transform_indices = @transform_2, window_bounds = array<i64: 1, 16, 128>}, {pipeline_mode = #tpu.pipeline_mode<synchronous>, transform_indices = @transform_3, window_bounds = array<i64: 32, 16>}, {pipeline_mode = #tpu.pipeline_mode<synchronous>, transform_indices = @transform_4, window_bounds = array<i64: 32, 3>}, {transform_indices = @transform_5, window_bounds = array<i64: 1, 32, 2>}, {transform_indices = @transform_6, window_bounds = array<i64: 1, 32, 2>}]} {
    %c0_i32 = arith.constant 0 : i32
    %0 = arith.cmpi eq, %arg1, %c0_i32 : i32
    %1 = arith.extui %0 : i1 to i32
    %c0_i32_0 = arith.constant 0 : i32
    %2 = arith.cmpi ne, %1, %c0_i32_0 : i32
    scf.if %2 {
      %cst_28 = arith.constant 0.000000e+00 : f32
      %73 = vector.broadcast %cst_28 : f32 to vector<1x32x2xf32>
      %c0_29 = arith.constant 0 : index
      %c0_30 = arith.constant 0 : index
      %c0_31 = arith.constant 0 : index
      %74 = vector.load %arg8[%c0_29, %c0_30, %c0_31] : memref<1x32x2xf32, #tpu.memory_space<vmem>>, vector<1x32x2xf32>
      tpu.vector_store %arg8[%c0_29, %c0_30, %c0_31], %73 {strides = array<i32>} : memref<1x32x2xf32, #tpu.memory_space<vmem>>, vector<1x32x2xf32>,
    } else {
    }
    %c0 = arith.constant 0 : index
    %c0_1 = arith.constant 0 : index
    %c0_2 = arith.constant 0 : index
    %3 = vector.load %arg7[%c0, %c0_1, %c0_2] : memref<1x32x2xf32, #tpu.memory_space<vmem>>, vector<1x32x1xf32>
    %4 = vector.shape_cast %3 : vector<1x32x1xf32> to vector<32x1xf32>
    %c0_3 = arith.constant 0 : index
    %c0_4 = arith.constant 0 : index
    %c1 = arith.constant 1 : index
    %5 = vector.load %arg7[%c0_3, %c0_4, %c1] : memref<1x32x2xf32, #tpu.memory_space<vmem>>, vector<1x32x1xf32>
    %6 = vector.shape_cast %5 : vector<1x32x1xf32> to vector<32x1xf32>
    %c0_5 = arith.constant 0 : index
    %c0_6 = arith.constant 0 : index
    %c0_7 = arith.constant 0 : index
    %7 = vector.load %arg4[%c0_5, %c0_6, %c0_7] : memref<1x16x128xf32, #tpu.memory_space<vmem>>, vector<1x16x128xf32>
    %8 = vector.shape_cast %7 : vector<1x16x128xf32> to vector<16x128xf32>
    %c0_8 = arith.constant 0 : index
    %c0_9 = arith.constant 0 : index
    %c0_10 = arith.constant 0 : index
    %9 = vector.load %arg3[%c0_8, %c0_9, %c0_10] : memref<1x16x128xf32, #tpu.memory_space<vmem>>, vector<1x16x128xf32>
    %10 = vector.shape_cast %9 : vector<1x16x128xf32> to vector<16x128xf32>
    %c0_11 = arith.constant 0 : index
    %c0_12 = arith.constant 0 : index
    %11 = vector.load %arg5[%c0_11, %c0_12] : memref<32x16xf32, #tpu.memory_space<vmem>>, vector<32x16xf32>
    %c0_13 = arith.constant 0 : index
    %12 = memref.load %arg2[%c0_13] : memref<2xf32, #tpu.memory_space<smem>>
    %c0_14 = arith.constant 0 : index
    %c0_15 = arith.constant 0 : index
    %13 = vector.load %arg6[%c0_14, %c0_15] : memref<32x3xf32, #tpu.memory_space<vmem>>, vector<32x3xf32>
    %14 = vector.extract_strided_slice %8 {offsets = [0, 0], sizes = [16, 2], strides = [1, 1]} : vector<16x128xf32> to vector<16x2xf32>
    %15 = vector.extract_strided_slice %8 {offsets = [0, 2], sizes = [16, 2], strides = [1, 1]} : vector<16x128xf32> to vector<16x2xf32>
    %16 = tpu.concatenate %14, %10, %15 in 1 : vector<16x2xf32>, vector<16x128xf32>, vector<16x2xf32> -> vector<16x132xf32>
    %cst = arith.constant dense<0.000000e+00> : vector<32x132xf32>
    %17 = tpu.matmul %11, %16, %cst {dimension_numbers = #tpu.dot_dimension_numbers<[1], [0], [0], [1], [0, 0, 1, 1], [], []>} : vector<32x16xf32>, vector<16x132xf32>, vector<32x132xf32> -> vector<32x132xf32>
    %cst_16 = arith.constant 0.000000e+00 : f32
    %18 = vector.broadcast %cst_16 : f32 to vector<32x132xf32>
    %19 = arith.cmpf ogt, %17, %18 : vector<32x132xf32>
    %20 = vector.broadcast %12 : f32 to vector<32x132xf32>
    %21 = arith.mulf %20, %17 : vector<32x132xf32>
    %22 = arith.select %19, %17, %21 : vector<32x132xi1>, vector<32x132xf32>
    %23 = vector.broadcast %4 : vector<32x1xf32> to vector<32x132xf32>
    %24 = arith.mulf %22, %23 : vector<32x132xf32>
    %25 = vector.broadcast %6 : vector<32x1xf32> to vector<32x132xf32>
    %26 = arith.addf %24, %25 : vector<32x132xf32>
    %27 = tpu.iota {dimensions = array<i32: 1>} : vector<1x132xi32>
    %c128_i32 = arith.constant 128 : i32
    %28 = arith.muli %arg1, %c128_i32 : i32
    %c2_i32 = arith.constant 2 : i32
    %29 = arith.subi %28, %c2_i32 : i32
    %30 = vector.broadcast %29 : i32 to vector<1x132xi32>
    %31 = arith.addi %27, %30 : vector<1x132xi32>
    %c0_i32_17 = arith.constant 0 : i32
    %32 = vector.broadcast %c0_i32_17 : i32 to vector<1x132xi32>
    %33 = arith.cmpi sge, %31, %32 : vector<1x132xi32>
    %c512_i32 = arith.constant 512 : i32
    %34 = vector.broadcast %c512_i32 : i32 to vector<1x132xi32>
    %35 = arith.cmpi slt, %31, %34 : vector<1x132xi32>
    %36 = arith.andi %33, %35 : vector<1x132xi1>
    %37 = arith.extui %36 : vector<1x132xi1> to vector<1x132xi32>
    %38 = arith.sitofp %37 : vector<1x132xi32> to vector<1x132xf32>
    %39 = vector.broadcast %38 : vector<1x132xf32> to vector<32x132xf32>
    %40 = arith.mulf %26, %39 : vector<32x132xf32>
    %41 = vector.extract_strided_slice %13 {offsets = [0, 0], sizes = [32, 1], strides = [1, 1]} : vector<32x3xf32> to vector<32x1xf32>
    %42 = vector.extract_strided_slice %40 {offsets = [0, 0], sizes = [32, 128], strides = [1, 1]} : vector<32x132xf32> to vector<32x128xf32>
    %43 = vector.broadcast %41 : vector<32x1xf32> to vector<32x128xf32>
    %44 = arith.mulf %43, %42 : vector<32x128xf32>
    %45 = vector.extract_strided_slice %13 {offsets = [0, 1], sizes = [32, 1], strides = [1, 1]} : vector<32x3xf32> to vector<32x1xf32>
    %46 = vector.extract_strided_slice %40 {offsets = [0, 2], sizes = [32, 128], strides = [1, 1]} : vector<32x132xf32> to vector<32x128xf32>
    %47 = vector.broadcast %45 : vector<32x1xf32> to vector<32x128xf32>
    %48 = arith.mulf %47, %46 : vector<32x128xf32>
    %49 = arith.addf %44, %48 : vector<32x128xf32>
    %50 = vector.extract_strided_slice %13 {offsets = [0, 2], sizes = [32, 1], strides = [1, 1]} : vector<32x3xf32> to vector<32x1xf32>
    %51 = vector.extract_strided_slice %40 {offsets = [0, 4], sizes = [32, 128], strides = [1, 1]} : vector<32x132xf32> to vector<32x128xf32>
    %52 = vector.broadcast %50 : vector<32x1xf32> to vector<32x128xf32>
    %53 = arith.mulf %52, %51 : vector<32x128xf32>
    %54 = arith.addf %49, %53 : vector<32x128xf32>
    %cst_18 = arith.constant 0.000000e+00 : f32
    %55 = vector.broadcast %cst_18 : f32 to vector<32x128xf32>
    %56 = arith.cmpf ogt, %54, %55 : vector<32x128xf32>
    %c1_19 = arith.constant 1 : index
    %57 = memref.load %arg2[%c1_19] : memref<2xf32, #tpu.memory_space<smem>>
    %58 = vector.broadcast %57 : f32 to vector<32x128xf32>
    %59 = arith.mulf %58, %54 : vector<32x128xf32>
    %60 = arith.select %56, %54, %59 : vector<32x128xi1>, vector<32x128xf32>
    %cst_20 = arith.constant dense<0.000000e+00> : vector<32xf32>
    %61 = vector.multi_reduction <add>, %60, %cst_20 [1] : vector<32x128xf32> to vector<32xf32>
    %62 = vector.shape_cast %61 : vector<32xf32> to vector<32x1xf32>
    %63 = arith.mulf %60, %60 : vector<32x128xf32>
    %cst_21 = arith.constant dense<0.000000e+00> : vector<32xf32>
    %64 = vector.multi_reduction <add>, %63, %cst_21 [1] : vector<32x128xf32> to vector<32xf32>
    %65 = vector.shape_cast %64 : vector<32xf32> to vector<32x1xf32>
    %c0_22 = arith.constant 0 : index
    %c0_23 = arith.constant 0 : index
    %c0_24 = arith.constant 0 : index
    %66 = vector.load %arg8[%c0_22, %c0_23, %c0_24] : memref<1x32x2xf32, #tpu.memory_space<vmem>>, vector<1x32x2xf32>
    %67 = vector.shape_cast %66 : vector<1x32x2xf32> to vector<32x2xf32>
    %68 = tpu.concatenate %62, %65 in 1 : vector<32x1xf32>, vector<32x1xf32> -> vector<32x2xf32>
    %69 = arith.addf %67, %68 : vector<32x2xf32>
    %c0_25 = arith.constant 0 : index
    %c0_26 = arith.constant 0 : index
    %c0_27 = arith.constant 0 : index
    %70 = vector.load %arg8[%c0_25, %c0_26, %c0_27] : memref<1x32x2xf32, #tpu.memory_space<vmem>>, vector<1x32x2xf32>
    %71 = vector.shape_cast %70 : vector<1x32x2xf32> to vector<32x2xf32>
    %72 = vector.shape_cast %69 : vector<32x2xf32> to vector<1x32x2xf32>
    tpu.vector_store %arg8[%c0_25, %c0_26, %c0_27], %72 {strides = array<i32>} : memref<1x32x2xf32, #tpu.memory_space<vmem>>, vector<1x32x2xf32>,
    return
  }
  func.func @transform_0(%arg0: i32, %arg1: i32) -> i32 {
    %c0_i32 = arith.constant 0 : i32
    %c0_i32_0 = arith.constant 0 : i32
    return %c0_i32 : i32
  }
  func.func @transform_1(%arg0: i32, %arg1: i32) -> (i32, i32, i32) {
    %c0_i32 = arith.constant 0 : i32
    %c0_i32_0 = arith.constant 0 : i32
    return %arg0, %c0_i32, %arg1 : i32, i32, i32
  }
  func.func @transform_2(%arg0: i32, %arg1: i32) -> (i32, i32, i32) {
    %c0_i32 = arith.constant 0 : i32
    %c0_i32_0 = arith.constant 0 : i32
    return %arg0, %c0_i32, %arg1 : i32, i32, i32
  }
  func.func @transform_3(%arg0: i32, %arg1: i32) -> (i32, i32) {
    %c0_i32 = arith.constant 0 : i32
    %c0_i32_0 = arith.constant 0 : i32
    %c0_i32_1 = arith.constant 0 : i32
    return %c0_i32, %c0_i32_0 : i32, i32
  }
  func.func @transform_4(%arg0: i32, %arg1: i32) -> (i32, i32) {
    %c0_i32 = arith.constant 0 : i32
    %c0_i32_0 = arith.constant 0 : i32
    %c0_i32_1 = arith.constant 0 : i32
    return %c0_i32, %c0_i32_0 : i32, i32
  }
  func.func @transform_5(%arg0: i32, %arg1: i32) -> (i32, i32, i32) {
    %c0_i32 = arith.constant 0 : i32
    %c0_i32_0 = arith.constant 0 : i32
    %c0_i32_1 = arith.constant 0 : i32
    return %arg0, %c0_i32, %c0_i32_0 : i32, i32, i32
  }
  func.func @transform_6(%arg0: i32, %arg1: i32) -> (i32, i32, i32) {
    %c0_i32 = arith.constant 0 : i32
    %c0_i32_0 = arith.constant 0 : i32
    %c0_i32_1 = arith.constant 0 : i32
    return %arg0, %c0_i32, %c0_i32_0 : i32, i32, i32
  }
}

module attributes {stable_mosaic.version = 11 : i64} {
  func.func @_output_kernel(%arg0: i32, %arg1: i32, %arg2: memref<2xf32, #tpu.memory_space<smem>>, %arg3: memref<1x16x128xf32, #tpu.memory_space<vmem>>, %arg4: memref<1x16x128xf32, #tpu.memory_space<vmem>>, %arg5: memref<32x16xf32, #tpu.memory_space<vmem>>, %arg6: memref<32x3xf32, #tpu.memory_space<vmem>>, %arg7: memref<1x32x2xf32, #tpu.memory_space<vmem>>, %arg8: memref<1x32x2xf32, #tpu.memory_space<vmem>>, %arg9: memref<32x32xf32, #tpu.memory_space<vmem>>, %arg10: memref<32x1xf32, #tpu.memory_space<vmem>>, %arg11: memref<1x16x128xf32, #tpu.memory_space<vmem>>, %arg12: memref<1x16x128xf32, #tpu.memory_space<vmem>>) attributes {dimension_semantics = [#tpu.dimension_semantics<parallel>, #tpu.dimension_semantics<arbitrary>], iteration_bounds = array<i64: 8, 4>, scalar_prefetch = 0 : i64, scratch_operands = 0 : i64, tpu.core_type = #tpu.core_type<tc>, window_params = [{transform_indices = @transform_0, window_bounds = array<i64: 2>}, {transform_indices = @transform_1, window_bounds = array<i64: 1, 16, 128>}, {transform_indices = @transform_2, window_bounds = array<i64: 1, 16, 128>}, {pipeline_mode = #tpu.pipeline_mode<synchronous>, transform_indices = @transform_3, window_bounds = array<i64: 32, 16>}, {pipeline_mode = #tpu.pipeline_mode<synchronous>, transform_indices = @transform_4, window_bounds = array<i64: 32, 3>}, {transform_indices = @transform_5, window_bounds = array<i64: 1, 32, 2>}, {transform_indices = @transform_6, window_bounds = array<i64: 1, 32, 2>}, {pipeline_mode = #tpu.pipeline_mode<synchronous>, transform_indices = @transform_7, window_bounds = array<i64: 32, 32>}, {pipeline_mode = #tpu.pipeline_mode<synchronous>, transform_indices = @transform_8, window_bounds = array<i64: 32, 1>}, {transform_indices = @transform_9, window_bounds = array<i64: 1, 16, 128>}, {transform_indices = @transform_10, window_bounds = array<i64: 1, 16, 128>}]} {
    %c0 = arith.constant 0 : index
    %c0_0 = arith.constant 0 : index
    %c0_1 = arith.constant 0 : index
    %0 = vector.load %arg7[%c0, %c0_0, %c0_1] : memref<1x32x2xf32, #tpu.memory_space<vmem>>, vector<1x32x1xf32>
    %1 = vector.shape_cast %0 : vector<1x32x1xf32> to vector<32x1xf32>
    %c0_2 = arith.constant 0 : index
    %c0_3 = arith.constant 0 : index
    %c1 = arith.constant 1 : index
    %2 = vector.load %arg7[%c0_2, %c0_3, %c1] : memref<1x32x2xf32, #tpu.memory_space<vmem>>, vector<1x32x1xf32>
    %3 = vector.shape_cast %2 : vector<1x32x1xf32> to vector<32x1xf32>
    %c0_4 = arith.constant 0 : index
    %c0_5 = arith.constant 0 : index
    %c0_6 = arith.constant 0 : index
    %4 = vector.load %arg8[%c0_4, %c0_5, %c0_6] : memref<1x32x2xf32, #tpu.memory_space<vmem>>, vector<1x32x1xf32>
    %5 = vector.shape_cast %4 : vector<1x32x1xf32> to vector<32x1xf32>
    %c0_7 = arith.constant 0 : index
    %c0_8 = arith.constant 0 : index
    %c1_9 = arith.constant 1 : index
    %6 = vector.load %arg8[%c0_7, %c0_8, %c1_9] : memref<1x32x2xf32, #tpu.memory_space<vmem>>, vector<1x32x1xf32>
    %7 = vector.shape_cast %6 : vector<1x32x1xf32> to vector<32x1xf32>
    %c0_10 = arith.constant 0 : index
    %c0_11 = arith.constant 0 : index
    %c0_12 = arith.constant 0 : index
    %8 = vector.load %arg4[%c0_10, %c0_11, %c0_12] : memref<1x16x128xf32, #tpu.memory_space<vmem>>, vector<1x16x128xf32>
    %9 = vector.shape_cast %8 : vector<1x16x128xf32> to vector<16x128xf32>
    %c0_13 = arith.constant 0 : index
    %c0_14 = arith.constant 0 : index
    %c0_15 = arith.constant 0 : index
    %10 = vector.load %arg3[%c0_13, %c0_14, %c0_15] : memref<1x16x128xf32, #tpu.memory_space<vmem>>, vector<1x16x128xf32>
    %11 = vector.shape_cast %10 : vector<1x16x128xf32> to vector<16x128xf32>
    %c0_16 = arith.constant 0 : index
    %c0_17 = arith.constant 0 : index
    %12 = vector.load %arg5[%c0_16, %c0_17] : memref<32x16xf32, #tpu.memory_space<vmem>>, vector<32x16xf32>
    %c0_18 = arith.constant 0 : index
    %13 = memref.load %arg2[%c0_18] : memref<2xf32, #tpu.memory_space<smem>>
    %c0_19 = arith.constant 0 : index
    %c0_20 = arith.constant 0 : index
    %14 = vector.load %arg6[%c0_19, %c0_20] : memref<32x3xf32, #tpu.memory_space<vmem>>, vector<32x3xf32>
    %15 = vector.extract_strided_slice %9 {offsets = [0, 0], sizes = [16, 2], strides = [1, 1]} : vector<16x128xf32> to vector<16x2xf32>
    %16 = vector.extract_strided_slice %9 {offsets = [0, 2], sizes = [16, 2], strides = [1, 1]} : vector<16x128xf32> to vector<16x2xf32>
    %17 = tpu.concatenate %15, %11, %16 in 1 : vector<16x2xf32>, vector<16x128xf32>, vector<16x2xf32> -> vector<16x132xf32>
    %cst = arith.constant dense<0.000000e+00> : vector<32x132xf32>
    %18 = tpu.matmul %12, %17, %cst {dimension_numbers = #tpu.dot_dimension_numbers<[1], [0], [0], [1], [0, 0, 1, 1], [], []>} : vector<32x16xf32>, vector<16x132xf32>, vector<32x132xf32> -> vector<32x132xf32>
    %cst_21 = arith.constant 0.000000e+00 : f32
    %19 = vector.broadcast %cst_21 : f32 to vector<32x132xf32>
    %20 = arith.cmpf ogt, %18, %19 : vector<32x132xf32>
    %21 = vector.broadcast %13 : f32 to vector<32x132xf32>
    %22 = arith.mulf %21, %18 : vector<32x132xf32>
    %23 = arith.select %20, %18, %22 : vector<32x132xi1>, vector<32x132xf32>
    %24 = vector.broadcast %1 : vector<32x1xf32> to vector<32x132xf32>
    %25 = arith.mulf %23, %24 : vector<32x132xf32>
    %26 = vector.broadcast %3 : vector<32x1xf32> to vector<32x132xf32>
    %27 = arith.addf %25, %26 : vector<32x132xf32>
    %28 = tpu.iota {dimensions = array<i32: 1>} : vector<1x132xi32>
    %c128_i32 = arith.constant 128 : i32
    %29 = arith.muli %arg1, %c128_i32 : i32
    %c2_i32 = arith.constant 2 : i32
    %30 = arith.subi %29, %c2_i32 : i32
    %31 = vector.broadcast %30 : i32 to vector<1x132xi32>
    %32 = arith.addi %28, %31 : vector<1x132xi32>
    %c0_i32 = arith.constant 0 : i32
    %33 = vector.broadcast %c0_i32 : i32 to vector<1x132xi32>
    %34 = arith.cmpi sge, %32, %33 : vector<1x132xi32>
    %c512_i32 = arith.constant 512 : i32
    %35 = vector.broadcast %c512_i32 : i32 to vector<1x132xi32>
    %36 = arith.cmpi slt, %32, %35 : vector<1x132xi32>
    %37 = arith.andi %34, %36 : vector<1x132xi1>
    %38 = arith.extui %37 : vector<1x132xi1> to vector<1x132xi32>
    %39 = arith.sitofp %38 : vector<1x132xi32> to vector<1x132xf32>
    %40 = vector.broadcast %39 : vector<1x132xf32> to vector<32x132xf32>
    %41 = arith.mulf %27, %40 : vector<32x132xf32>
    %42 = vector.extract_strided_slice %14 {offsets = [0, 0], sizes = [32, 1], strides = [1, 1]} : vector<32x3xf32> to vector<32x1xf32>
    %43 = vector.extract_strided_slice %41 {offsets = [0, 0], sizes = [32, 128], strides = [1, 1]} : vector<32x132xf32> to vector<32x128xf32>
    %44 = vector.broadcast %42 : vector<32x1xf32> to vector<32x128xf32>
    %45 = arith.mulf %44, %43 : vector<32x128xf32>
    %46 = vector.extract_strided_slice %14 {offsets = [0, 1], sizes = [32, 1], strides = [1, 1]} : vector<32x3xf32> to vector<32x1xf32>
    %47 = vector.extract_strided_slice %41 {offsets = [0, 2], sizes = [32, 128], strides = [1, 1]} : vector<32x132xf32> to vector<32x128xf32>
    %48 = vector.broadcast %46 : vector<32x1xf32> to vector<32x128xf32>
    %49 = arith.mulf %48, %47 : vector<32x128xf32>
    %50 = arith.addf %45, %49 : vector<32x128xf32>
    %51 = vector.extract_strided_slice %14 {offsets = [0, 2], sizes = [32, 1], strides = [1, 1]} : vector<32x3xf32> to vector<32x1xf32>
    %52 = vector.extract_strided_slice %41 {offsets = [0, 4], sizes = [32, 128], strides = [1, 1]} : vector<32x132xf32> to vector<32x128xf32>
    %53 = vector.broadcast %51 : vector<32x1xf32> to vector<32x128xf32>
    %54 = arith.mulf %53, %52 : vector<32x128xf32>
    %55 = arith.addf %50, %54 : vector<32x128xf32>
    %cst_22 = arith.constant 0.000000e+00 : f32
    %56 = vector.broadcast %cst_22 : f32 to vector<32x128xf32>
    %57 = arith.cmpf ogt, %55, %56 : vector<32x128xf32>
    %c1_23 = arith.constant 1 : index
    %58 = memref.load %arg2[%c1_23] : memref<2xf32, #tpu.memory_space<smem>>
    %59 = vector.broadcast %58 : f32 to vector<32x128xf32>
    %60 = arith.mulf %59, %55 : vector<32x128xf32>
    %61 = arith.select %57, %55, %60 : vector<32x128xi1>, vector<32x128xf32>
    %62 = vector.broadcast %5 : vector<32x1xf32> to vector<32x128xf32>
    %63 = arith.mulf %61, %62 : vector<32x128xf32>
    %64 = vector.broadcast %7 : vector<32x1xf32> to vector<32x128xf32>
    %65 = arith.addf %63, %64 : vector<32x128xf32>
    %c0_24 = arith.constant 0 : index
    %c0_25 = arith.constant 0 : index
    %66 = vector.load %arg9[%c0_24, %c0_25] : memref<32x32xf32, #tpu.memory_space<vmem>>, vector<32x32xf32>
    %cst_26 = arith.constant dense<0.000000e+00> : vector<32x128xf32>
    %67 = tpu.matmul %66, %65, %cst_26 {dimension_numbers = #tpu.dot_dimension_numbers<[1], [0], [0], [1], [0, 0, 1, 1], [], []>} : vector<32x32xf32>, vector<32x128xf32>, vector<32x128xf32> -> vector<32x128xf32>
    %c0_27 = arith.constant 0 : index
    %c0_28 = arith.constant 0 : index
    %68 = vector.load %arg10[%c0_27, %c0_28] : memref<32x1xf32, #tpu.memory_space<vmem>>, vector<32x1xf32>
    %69 = vector.broadcast %68 : vector<32x1xf32> to vector<32x128xf32>
    %70 = arith.addf %67, %69 : vector<32x128xf32>
    %71 = vector.extract_strided_slice %70 {offsets = [0, 0], sizes = [16, 128], strides = [1, 1]} : vector<32x128xf32> to vector<16x128xf32>
    %c0_29 = arith.constant 0 : index
    %c0_30 = arith.constant 0 : index
    %c0_31 = arith.constant 0 : index
    %72 = vector.load %arg11[%c0_29, %c0_30, %c0_31] : memref<1x16x128xf32, #tpu.memory_space<vmem>>, vector<1x16x128xf32>
    %73 = vector.shape_cast %72 : vector<1x16x128xf32> to vector<16x128xf32>
    %74 = vector.shape_cast %71 : vector<16x128xf32> to vector<1x16x128xf32>
    tpu.vector_store %arg11[%c0_29, %c0_30, %c0_31], %74 {strides = array<i32>} : memref<1x16x128xf32, #tpu.memory_space<vmem>>, vector<1x16x128xf32>,
    %75 = vector.extract_strided_slice %70 {offsets = [16, 0], sizes = [16, 128], strides = [1, 1]} : vector<32x128xf32> to vector<16x128xf32>
    %c0_32 = arith.constant 0 : index
    %c0_33 = arith.constant 0 : index
    %c0_34 = arith.constant 0 : index
    %76 = vector.load %arg12[%c0_32, %c0_33, %c0_34] : memref<1x16x128xf32, #tpu.memory_space<vmem>>, vector<1x16x128xf32>
    %77 = vector.shape_cast %76 : vector<1x16x128xf32> to vector<16x128xf32>
    %78 = vector.shape_cast %75 : vector<16x128xf32> to vector<1x16x128xf32>
    tpu.vector_store %arg12[%c0_32, %c0_33, %c0_34], %78 {strides = array<i32>} : memref<1x16x128xf32, #tpu.memory_space<vmem>>, vector<1x16x128xf32>,
    return
  }
  func.func @transform_0(%arg0: i32, %arg1: i32) -> i32 {
    %c0_i32 = arith.constant 0 : i32
    %c0_i32_0 = arith.constant 0 : i32
    return %c0_i32 : i32
  }
  func.func @transform_1(%arg0: i32, %arg1: i32) -> (i32, i32, i32) {
    %c0_i32 = arith.constant 0 : i32
    %c0_i32_0 = arith.constant 0 : i32
    return %arg0, %c0_i32, %arg1 : i32, i32, i32
  }
  func.func @transform_2(%arg0: i32, %arg1: i32) -> (i32, i32, i32) {
    %c0_i32 = arith.constant 0 : i32
    %c0_i32_0 = arith.constant 0 : i32
    return %arg0, %c0_i32, %arg1 : i32, i32, i32
  }
  func.func @transform_3(%arg0: i32, %arg1: i32) -> (i32, i32) {
    %c0_i32 = arith.constant 0 : i32
    %c0_i32_0 = arith.constant 0 : i32
    %c0_i32_1 = arith.constant 0 : i32
    return %c0_i32, %c0_i32_0 : i32, i32
  }
  func.func @transform_4(%arg0: i32, %arg1: i32) -> (i32, i32) {
    %c0_i32 = arith.constant 0 : i32
    %c0_i32_0 = arith.constant 0 : i32
    %c0_i32_1 = arith.constant 0 : i32
    return %c0_i32, %c0_i32_0 : i32, i32
  }
  func.func @transform_5(%arg0: i32, %arg1: i32) -> (i32, i32, i32) {
    %c0_i32 = arith.constant 0 : i32
    %c0_i32_0 = arith.constant 0 : i32
    %c0_i32_1 = arith.constant 0 : i32
    return %arg0, %c0_i32, %c0_i32_0 : i32, i32, i32
  }
  func.func @transform_6(%arg0: i32, %arg1: i32) -> (i32, i32, i32) {
    %c0_i32 = arith.constant 0 : i32
    %c0_i32_0 = arith.constant 0 : i32
    %c0_i32_1 = arith.constant 0 : i32
    return %arg0, %c0_i32, %c0_i32_0 : i32, i32, i32
  }
  func.func @transform_7(%arg0: i32, %arg1: i32) -> (i32, i32) {
    %c0_i32 = arith.constant 0 : i32
    %c0_i32_0 = arith.constant 0 : i32
    %c0_i32_1 = arith.constant 0 : i32
    return %c0_i32, %c0_i32_0 : i32, i32
  }
  func.func @transform_8(%arg0: i32, %arg1: i32) -> (i32, i32) {
    %c0_i32 = arith.constant 0 : i32
    %c0_i32_0 = arith.constant 0 : i32
    %c0_i32_1 = arith.constant 0 : i32
    return %c0_i32, %c0_i32_0 : i32, i32
  }
  func.func @transform_9(%arg0: i32, %arg1: i32) -> (i32, i32, i32) {
    %c0_i32 = arith.constant 0 : i32
    %c0_i32_0 = arith.constant 0 : i32
    return %arg0, %c0_i32, %arg1 : i32, i32, i32
  }
  func.func @transform_10(%arg0: i32, %arg1: i32) -> (i32, i32, i32) {
    %c0_i32 = arith.constant 0 : i32
    %c0_i32_0 = arith.constant 0 : i32
    return %arg0, %c0_i32, %arg1 : i32, i32, i32
  }
}

</mosaic_0001>

<llo_original>
// kernel: tcn_layer.3
$region0: #{tcn_layer.3}
  #allocation0 [shape = 'u32[]', space=smem, size = 0x4, offset = 0x4, fixed_abs, tag = 'smem constant byte address 0x4 - core index']
  #allocation1 [shape = 'u32[144,128]{1,0:T(1,128)}', space=vmem, size = 0x12000, scoped, tag = 'internal scratch']
  %s0 = inlined_call_operand.vmem [shape: f32[2], index: 0, kind: input, shape index: {}]
  %s1 = inlined_call_operand.vmem [shape: f32[8,16,512], index: 1, kind: input, shape index: {}]
  %s2 = inlined_call_operand.vmem [shape: f32[32,16], index: 2, kind: input, shape index: {}]
  %s3 = inlined_call_operand.vmem [shape: f32[8,32,2], index: 3, kind: output, shape index: {}]
  %s4 = sld [smem:[#allocation0]]
  $region91: #{tcn_layer.3} parent=0
    _
  %s6 = ssub.s32 1, %s4
  %s7 = scalar_select 0, %s6, %s4
  $region1: #{tcn_layer.3} parent=0
    #allocation2 [shape = 'u8[512]{0}', space=smem, size = 0x200, scoped, tag = 'input window, operand 0, single buffered']
    #allocation3 [shape = 's32[2]{0}', space=sflag, size = 0x8, scoped, tag = 'scoped memory for tcn_layer.3']
    #allocation4 [shape = 'u8[16384]{0}', space=vmem, size = 0x4000, scoped, tag = 'input window, operand 1']
    %8 = vsyncpa [#allocation3], 0
    loop: start=0, step=1, limit=34
    $region2: #{tcn_layer.3} parent=1 // loop_pre_header
      _
    $region3: #{tcn_layer.3} parent=1 // loop_header
      %s10 = sphi 0, %s14
      %p11 = scmp.ge.s32.totalorder %s10, 34
      %s17 = sphi 0, %s29
      %s18 = sphi 0, %s25
      %s19 = sphi 0, %s17
      %s20 = sphi 0, %s18
      %s21 = sphi 0, %s19
      %s22 = sphi 0, %s20
      %s30 = sphi 0, %s30
      %s32 = sphi 0, %s30
      %s33 = sphi 0, %s32
      %s47 = sphi 0, %s33
      %s55 = sphi 0, %s57
      %s58 = sphi 0, %s55
      %s59 = sphi 0, %s58
      %s75 = sphi 0, %s59
      %s79 = sphi 0, %s79
      %s81 = sphi 0, %s79
      %s82 = sphi 0, %s81
      %s96 = sphi 0, %s82
      %s102 = sphi 0, %s104
      %s105 = sphi 0, %s102
      %s106 = sphi 0, %s105
      %s122 = sphi 0, %s106
    $region4: #{tcn_layer.3} parent=1 // loop_header_branch
      %13 = sbr.rel (%p11) target = $region8
    $region5: #{tcn_layer.3} parent=1 // loop_body
      %s15 = ssub.s32 %s10, 1
      %s16 = ssub.s32 %s10, 2
      %s23 = sadd.s32 1, %s18
      %p24 = scmp.ge.s32.totalorder %s23, 4
      %s25 = scalar_select %p24, 0, %s23
      %s26 = sadd.s32 1, %s17
      %s27 = scalar_select %p24, %s26, %s17
      %p28 = scmp.ge.s32.totalorder %s27, 8
      %s29 = scalar_select %p28, 0, %s27
      %s31 = sadd.s32 %s30, 1
      %p34 = scmp.eq.s32.totalorder %s10, 31
      %p35 = scmp.ne.s32.totalorder %s30, %s32
      %p36 = scmp.eq.s32.totalorder %s10, 0
      %p37 = por %p35, %p36
      %p38 = scmp.ne.s32.totalorder %s30, %s32
      %p39 = scmp.eq.s32.totalorder %s15, 31
      %p40 = por %p38, %p39
      %p41 = scmp.ne.s32.totalorder %s32, %s33
      %p42 = scmp.eq.s32.totalorder %s15, 0
      %p43 = por %p41, %p42
      %p44 = scmp.ne.s32.totalorder %s32, %s33
      %p45 = scmp.eq.s32.totalorder %s16, 31
      %p46 = por %p44, %p45
      %p48 = scmp.ne.s32.totalorder %s33, %s47
      %p49 = scmp.eq.s32.totalorder %s16, 0
      %p50 = por %p48, %p49
      %s51 = ssub.s32 %s17, %s29
      %s52 = ssub.s32 %s18, %s25
      %s53 = sor.u32 %s51, %s52
      %p54 = scmp.eq.s32.totalorder %s53, 0
      %s56 = sadd.s32 %s55, 1
      %s57 = scalar_select %p54, %s55, %s56
      %p60 = pneg %p54
      %p61 = scmp.eq.s32.totalorder %s10, 31
      %p62 = por %p60, %p61
      %p63 = scmp.ne.s32.totalorder %s55, %s58
      %p64 = scmp.eq.s32.totalorder %s10, 0
      %p65 = por %p63, %p64
      %p66 = scmp.ne.s32.totalorder %s55, %s58
      %p67 = scmp.eq.s32.totalorder %s15, 31
      %p68 = por %p66, %p67
      %p69 = scmp.ne.s32.totalorder %s58, %s59
      %p70 = scmp.eq.s32.totalorder %s15, 0
      %p71 = por %p69, %p70
      %p72 = scmp.ne.s32.totalorder %s58, %s59
      %p73 = scmp.eq.s32.totalorder %s16, 31
      %p74 = por %p72, %p73
      %p76 = scmp.ne.s32.totalorder %s59, %s75
      %p77 = scmp.eq.s32.totalorder %s16, 0
      %p78 = por %p76, %p77
      %s80 = sadd.s32 %s79, 1
      %p83 = scmp.eq.s32.totalorder %s10, 31
      %p84 = scmp.ne.s32.totalorder %s79, %s81
      %p85 = scmp.eq.s32.totalorder %s10, 0
      %p86 = por %p84, %p85
      %p87 = scmp.ne.s32.totalorder %s79, %s81
      %p88 = scmp.eq.s32.totalorder %s15, 31
      %p89 = por %p87, %p88
      %p90 = scmp.ne.s32.totalorder %s81, %s82
      %p91 = scmp.eq.s32.totalorder %s15, 0
      %p92 = por %p90, %p91
      %p93 = scmp.ne.s32.totalorder %s81, %s82
      %p94 = scmp.eq.s32.totalorder %s16, 31
      %p95 = por %p93, %p94
      %p97 = scmp.ne.s32.totalorder %s82, %s96
      %p98 = scmp.eq.s32.totalorder %s16, 0
      %p99 = por %p97, %p98
      %s100 = ssub.s32 %s17, %s29
      %p101 = scmp.eq.s32.totalorder %s100, 0
      %s103 = sadd.s32 %s102, 1
      %s104 = scalar_select %p101, %s102, %s103
      %p107 = pneg %p101
      %p108 = scmp.eq.s32.totalorder %s10, 31
      %p109 = por %p107, %p108
      %p110 = scmp.ne.s32.totalorder %s102, %s105
      %p111 = scmp.eq.s32.totalorder %s10, 0
      %p112 = por %p110, %p111
      %p113 = scmp.ne.s32.totalorder %s102, %s105
      %p114 = scmp.eq.s32.totalorder %s15, 31
      %p115 = por %p113, %p114
      %p116 = scmp.ne.s32.totalorder %s105, %s106
      %p117 = scmp.eq.s32.totalorder %s15, 0
      %p118 = por %p116, %p117
      %p119 = scmp.ne.s32.totalorder %s105, %s106
      %p120 = scmp.eq.s32.totalorder %s16, 31
      %p121 = por %p119, %p120
      %p123 = scmp.ne.s32.totalorder %s106, %s122
      %p124 = scmp.eq.s32.totalorder %s16, 0
      %p125 = por %p123, %p124
      %p126 = scmp.le.s32.totalorder 1, %s10
      %p127 = scmp.lt.s32.totalorder %s10, 33
      %p128 = pnand %p126, %p127
      %p129 = pneg %p128
      // Predicated region
      $region9: #{tcn_layer.3} parent=5 // pred_check
        _
      $region10: #{tcn_layer.3} parent=5 // pred_check_branch
        %131 = sbr.rel (%p128) target = $region12
      $region11: #{tcn_layer.3} parent=5 // pred_region
        %s132 = ssub.s32 %s10, 1
        // Predicated region
        $region13: #{tcn_layer.3} parent=11 // pred_check
          %p133 = pneg %p43
        $region14: #{tcn_layer.3} parent=11 // pred_check_branch
          %135 = sbr.rel (%p133) target = $region16
        $region15: #{tcn_layer.3} parent=11 // pred_region
          %s137 = ssub.s32 16, 16
          %138 = vsyncadd [#allocation3], %s137
          %s140 = sshll.u32 %s0, 4
          %s141 = int_to_ptr.vmem [resolvable:$true] %s140
          %143 = dma.vmem_to_smem %s141, 16, [#allocation2], [#allocation3]
        $region16: #{tcn_layer.3} parent=11 // pred_fallthru
          _
        // Predicated region
        $region17: #{tcn_layer.3} parent=11 // pred_check
          %p144 = pneg %p92
        $region18: #{tcn_layer.3} parent=11 // pred_check_branch
          %146 = sbr.rel (%p144) target = $region20
        $region19: #{tcn_layer.3} parent=11 // pred_region
          _
        $region20: #{tcn_layer.3} parent=11 // pred_fallthru
          _
      $region12: #{tcn_layer.3} parent=5 // pred_fallthru
        _
      %p147 = scmp.lt.s32.totalorder %s10, 32
      // Predicated region
      $region21: #{tcn_layer.3} parent=5 // pred_check
        %p148 = pneg %p147
      $region22: #{tcn_layer.3} parent=5 // pred_check_branch
        %150 = sbr.rel (%p148) target = $region24
      $region23: #{tcn_layer.3} parent=5 // pred_region
        // Predicated region
        $region25: #{tcn_layer.3} parent=23 // pred_check
          %p151 = pneg %p65
        $region26: #{tcn_layer.3} parent=23 // pred_check_branch
          %153 = sbr.rel (%p151) target = $region28
        $region27: #{tcn_layer.3} parent=23 // pred_region
          %s154 = sand.u32 %s55, 1
          %s155 = sand.u32 %s55, 1
          %s156 = smul.addr %s155, 16
          %s157 = scalar_lea.vmem [#allocation4], %s156
          %s158 = smul.addr %s17, 8
          %s159 = sadd.s32 %s18, %s158
          %s160 = smul.addr %s159, 8
          %s161 = scalar_lea.vmem %s1, %s160
          // Predicated region
          $region29: #{tcn_layer.3} parent=27 // pred_check
            _
          $region30: #{tcn_layer.3} parent=27 // pred_check_branch
            %163 = sbr.rel (0) target = $region32
          $region31: #{tcn_layer.3} parent=27 // pred_region
            // Predicated region
            $region33: #{tcn_layer.3} parent=31 // pred_check
              _
            $region34: #{tcn_layer.3} parent=31 // pred_check_branch
              %165 = sbr.rel (0) target = $region36
            $region35: #{tcn_layer.3} parent=31 // pred_region
              // Predicated region
              $region48: #{tcn_layer.3} parent=35 // pred_check
                _
              $region49: #{tcn_layer.3} parent=35 // pred_check_branch
                %183 = sbr.rel (0) target = $region51
              $region50: #{tcn_layer.3} parent=35 // pred_region
                loop: start=0, step=1, limit=1
                $region52: #{tcn_layer.3} parent=50 // loop_pre_header
                  _
                $region53: #{tcn_layer.3} parent=50 // loop_header
                  %s185 = sphi 0, %s189
                  %p186 = scmp.ge.s32.totalorder %s185, 1
                  %s190 = sphi %s161, %s161
                  %s191 = sphi %s157, %s157
                $region54: #{tcn_layer.3} parent=50 // loop_header_branch
                  %188 = sbr.rel (%p186) target = $region58
                $region55: #{tcn_layer.3} parent=50 // loop_body
                  %v192 = vld [vmem:[%s190] sm:$0xff]
                  %193 = vst [vmem:[%s191] sm:$0xff] %v192
                  %v194 = vld [vmem:[%s190 + $0x20] sm:$0xff]
                  %195 = vst [vmem:[%s191 + $0x8] sm:$0xff] %v194
                $region56: #{tcn_layer.3} parent=50 // loop_footer
                  %s189 = sadd.s32 1, %s185
                $region57: #{tcn_layer.3} parent=50 // loop_footer_branch
                  %184 = sbr.rel target = $region53
                $region58: #{tcn_layer.3} parent=50 // loop_exit
                  _
              $region51: #{tcn_layer.3} parent=35 // pred_fallthru
                _
              // Predicated region
              $region59: #{tcn_layer.3} parent=35 // pred_check
                _
              $region60: #{tcn_layer.3} parent=35 // pred_check_branch
                %197 = sbr.rel target = $region62
              $region61: #{tcn_layer.3} parent=35 // pred_region
                _
              $region62: #{tcn_layer.3} parent=35 // pred_fallthru
                _
            $region36: #{tcn_layer.3} parent=31 // pred_fallthru
              _
            // Predicated region
            $region37: #{tcn_layer.3} parent=31 // pred_check
              _
            $region38: #{tcn_layer.3} parent=31 // pred_check_branch
              %167 = sbr.rel target = $region40
            $region39: #{tcn_layer.3} parent=31 // pred_region
              %s169 = ssub.s32 256, 1
              loop: start=0, step=1, limit=1
              $region41: #{tcn_layer.3} parent=39 // loop_pre_header
                _
              $region42: #{tcn_layer.3} parent=39 // loop_header
                %s171 = sphi 0, %s175
                %p172 = scmp.ge.s32.totalorder %s171, 1
                %s176 = sphi %s161, %s161
                %s177 = sphi %s157, %s157
              $region43: #{tcn_layer.3} parent=39 // loop_header_branch
                %174 = sbr.rel (%p172) target = $region47
              $region44: #{tcn_layer.3} parent=39 // loop_body
                %v178 = vld [vmem:[%s176] sm:%s169]
                %179 = vst [vmem:[%s177] sm:%s169] %v178
                %v180 = vld [vmem:[%s176 + $0x20] sm:%s169]
                %181 = vst [vmem:[%s177 + $0x8] sm:%s169] %v180
              $region45: #{tcn_layer.3} parent=39 // loop_footer
                %s175 = sadd.s32 1, %s171
              $region46: #{tcn_layer.3} parent=39 // loop_footer_branch
                %170 = sbr.rel target = $region42
              $region47: #{tcn_layer.3} parent=39 // loop_exit
                _
            $region40: #{tcn_layer.3} parent=31 // pred_fallthru
              _
          $region32: #{tcn_layer.3} parent=27 // pred_fallthru
            _
          %198 = vnop
        $region28: #{tcn_layer.3} parent=23 // pred_fallthru
          _
      $region24: #{tcn_layer.3} parent=5 // pred_fallthru
        _
      %p199 = scmp.le.s32.totalorder 1, %s10
      %p200 = scmp.lt.s32.totalorder %s10, 33
      %p201 = pnand %p199, %p200
      %p202 = pneg %p201
      // Predicated region
      $region63: #{tcn_layer.3} parent=5 // pred_check
        _
      $region64: #{tcn_layer.3} parent=5 // pred_check_branch
        %204 = sbr.rel (%p201) target = $region66
      $region65: #{tcn_layer.3} parent=5 // pred_region
        %s205 = ssub.s32 %s10, 1
        // Predicated region
        $region67: #{tcn_layer.3} parent=65 // pred_check
          %p206 = pneg %p43
        $region68: #{tcn_layer.3} parent=65 // pred_check_branch
          %208 = sbr.rel (%p206) target = $region70
        $region69: #{tcn_layer.3} parent=65 // pred_region
          %209 = dma.done [#allocation3], 16
        $region70: #{tcn_layer.3} parent=65 // pred_fallthru
          _
        %s210 = sand.u32 %s58, 1
        %s211 = sand.u32 %s58, 1
        %s212 = smul.addr %s211, 16
        %s213 = scalar_lea.vmem [#allocation4], %s212
        // Predicated region
        $region71: #{tcn_layer.3} parent=65 // pred_check
          %p214 = pneg %p71
        $region72: #{tcn_layer.3} parent=65 // pred_check_branch
          %216 = sbr.rel (%p214) target = $region74
        $region73: #{tcn_layer.3} parent=65 // pred_region
          _
        $region74: #{tcn_layer.3} parent=65 // pred_fallthru
          _
        %217 = sfence
        %p218 = pneg %p43
        %p219 = pneg %p40
        %s220 = sand.u32 %s58, 1
        %s221 = sand.u32 %s58, 1
        %s222 = smul.addr %s221, 16
        %s223 = scalar_lea.vmem [#allocation4], %s222
        %p224 = pneg %p71
        %p225 = pneg %p68
        %p226 = pneg %p92
        %p227 = pneg %p89
        %p228 = pneg %p118
        %p229 = pneg %p115
        %p230 = scmp.lt.s32.totalorder %s19, 7
        %s231 = scalar_select %p230, %s19, 7
        %s232 = smul.addr %s231, 4
        %s233 = smul.addr %s232, 8
        %s234 = scalar_lea.vmem %s3, %s233
        %p235 = scmp.lt.s32.totalorder %s19, 7
        %s236 = scalar_select %p235, %s19, 7
        %s237 = smul.addr %s236, 4
        %s238 = smul.addr %s237, 8
        %s239 = scalar_lea.vmem %s3, %s238
        %p240 = scmp.eq.s32.totalorder %s20, 0
        // Predicated region
        $region75: #{tcn_layer.3} parent=65 // pred_check
          %p241 = pneg %p240
        $region76: #{tcn_layer.3} parent=65 // pred_check_branch
          %243 = sbr.rel (%p241) target = $region78
        $region77: #{tcn_layer.3} parent=65 // pred_region
          %vm244 = vcmask 15360
          %245 = vst.msk [vmem:[%s239] sm:$0xff] %vm244, 0.0
          %246 = vst.msk [vmem:[%s239 + $0x8] sm:$0xff] %vm244, 0.0
          %247 = vst.msk [vmem:[%s239 + $0x10] sm:$0xff] %vm244, 0.0
          %248 = vst.msk [vmem:[%s239 + $0x18] sm:$0xff] %vm244, 0.0
        $region78: #{tcn_layer.3} parent=65 // pred_fallthru
          _
        %v249 = vld [vmem:[%s213] sm:$0xff]
        %v250 = vld [vmem:[%s213 + $0x8] sm:$0xff]
        %v251 = vld [vmem:[%s2] sm:$0xff]
        %v252 = vld [vmem:[%s2 + $0x8] sm:$0xff]
        %v253 = vld [vmem:[%s2 + $0x10] sm:$0xff]
        %v254 = vld [vmem:[%s2 + $0x18] sm:$0xff]
        %vm255 = vcmask 130048
        %v257 = vsel %vm255, %v251, 0
        %v260 = vsel %vm255, %v252, 0
        %v263 = vsel %vm255, %v253, 0
        %v266 = vsel %vm255, %v254, 0
        %268 = vmatprep.subr.mxu0 0.0
        %269 = vmatpush1.msra.mxu0 0.0
        %270 = vmatprep.subr.mxu0 0.0
        %271 = vmatpush1.msra.mxu0 0.0
        %272 = vmatprep.subr.mxu0 0.0
        %273 = vmatpush1.msra.mxu0 0.0
        %274 = vmatprep.subr.mxu0 0.0
        %275 = vmatpush1.msra.mxu0 0.0
        %276 = vmatprep.subr.mxu0 0.0
        %277 = vmatpush1.msra.mxu0 0.0
        %278 = vmatprep.subr.mxu0 0.0
        %279 = vmatpush1.msra.mxu0 0.0
        %280 = vmatprep.subr.mxu0 0.0
        %281 = vmatpush1.msra.mxu0 0.0
        %282 = vmatprep.subr.mxu0 0.0
        %283 = vmatpush1.msra.mxu0 0.0
        %284 = vmatprep.subr.mxu0 0.0
        %285 = vmatpush1.msra.mxu0 0.0
        %286 = vmatprep.subr.mxu0 0.0
        %287 = vmatpush1.msra.mxu0 0.0
        %288 = vmatprep.subr.mxu0 0.0
        %289 = vmatpush1.msra.mxu0 0.0
        %290 = vmatprep.subr.mxu0 0.0
        %291 = vmatpush1.msra.mxu0 0.0
        %292 = vmatprep.subr.mxu0 0.0
        %293 = vmatpush1.msra.mxu0 0.0
        %294 = vmatprep.subr.mxu0 0.0
        %295 = vmatpush1.msra.mxu0 0.0
        %296 = vmatprep.subr.mxu0 0.0
        %297 = vmatpush1.msra.mxu0 %v250
        %298 = vmatprep.subr.mxu0 0.0
        %299 = vmatpush1.msra.mxu0 %v249
        %300 = vmatprep.subr.mxu0 0.0
        %301 = vmatpush2.msra.mxu0 0.0
        %302 = vmatprep.subr.mxu0 0.0
        %303 = vmatpush2.msra.mxu0 0.0
        %304 = vmatprep.subr.mxu0 0.0
        %305 = vmatpush2.msra.mxu0 0.0
        %306 = vmatprep.subr.mxu0 0.0
        %307 = vmatpush2.msra.mxu0 0.0
        %308 = vmatprep.subr.mxu0 0.0
        %309 = vmatpush2.msra.mxu0 0.0
        %310 = vmatprep.subr.mxu0 0.0
        %311 = vmatpush2.msra.mxu0 0.0
        %312 = vmatprep.subr.mxu0 0.0
        %313 = vmatpush2.msra.mxu0 0.0
        %314 = vmatprep.subr.mxu0 0.0
        %315 = vmatpush2.msra.mxu0 0.0
        %316 = vmatprep.subr.mxu0 0.0
        %317 = vmatpush2.msra.mxu0 0.0
        %318 = vmatprep.subr.mxu0 0.0
        %319 = vmatpush2.msra.mxu0 0.0
        %320 = vmatprep.subr.mxu0 0.0
        %321 = vmatpush2.msra.mxu0 0.0
        %322 = vmatprep.subr.mxu0 0.0
        %323 = vmatpush2.msra.mxu0 0.0
        %324 = vmatprep.subr.mxu0 0.0
        %325 = vmatpush2.msra.mxu0 0.0
        %326 = vmatprep.subr.mxu0 0.0
        %327 = vmatpush2.msra.mxu0 0.0
        %328 = vmatprep.subr.mxu0 0.0
        %329 = vmatpush2.msra.mxu0 0.0
        %330 = vmatprep.subr.mxu0 0.0
        %331 = vmatpush2.msra.mxu0 0.0
        %332 = vmatprep.mubr.f32.mxu0 0.0
        %333 = vmatmul.mubr.f32.gmra.mxu0 %v257
        %v334 = vpop.f32.mrf.mxu0
        %v335 = vadd.f32 0.0, %v334
        %v336 = vpop.f32.mrf.mxu0
        %337 = vmatprep.mubr.f32.mxu0 0.0
        %338 = vmatmul.mubr.f32.gmra.mxu0 %v260
        %v339 = vpop.f32.mrf.mxu0
        %v340 = vadd.f32 0.0, %v339
        %v341 = vpop.f32.mrf.mxu0
        %342 = vmatprep.mubr.f32.mxu0 0.0
        %343 = vmatmul.mubr.f32.gmra.mxu0 %v263
        %v344 = vpop.f32.mrf.mxu0
        %v345 = vadd.f32 0.0, %v344
        %v346 = vpop.f32.mrf.mxu0
        %347 = vmatprep.mubr.f32.mxu0 0.0
        %348 = vmatmul.mubr.f32.gmra.mxu0 %v266
        %v349 = vpop.f32.mrf.mxu0
        %v350 = vadd.f32 0.0, %v349
        %v351 = vpop.f32.mrf.mxu0
        %352 = vdwg.mxu0
        %vm353 = vcmp.gt.f32.partialorder %v335, 0.0
        %vm354 = vcmp.gt.f32.partialorder %v340, 0.0
        %vm355 = vcmp.gt.f32.partialorder %v345, 0.0
        %vm356 = vcmp.gt.f32.partialorder %v350, 0.0
        %s357 = sld [smem:[#allocation2]]
        %v358 = vstv %s357
        %v359 = vmul.f32 %v358, %v335
        %v360 = vmul.f32 %v358, %v340
        %v361 = vmul.f32 %v358, %v345
        %v362 = vmul.f32 %v358, %v350
        %v363 = vsel %vm353, %v335, %v359
        %v364 = vsel %vm354, %v340, %v360
        %v365 = vsel %vm355, %v345, %v361
        %v366 = vsel %vm356, %v350, %v362
        %367 = vadd.xlane.f32.xlu0 %v363
        %v368 = vpop.xlane.xlu0 %367
        %369 = vadd.xlane.f32.xlu0 %v364
        %v370 = vpop.xlane.xlu0 %369
        %371 = vadd.xlane.f32.xlu0 %v365
        %v372 = vpop.xlane.xlu0 %371
        %373 = vadd.xlane.f32.xlu0 %v366
        %v374 = vpop.xlane.xlu0 %373
        %v375 = vmul.f32 %v363, %v363
        %v376 = vmul.f32 %v364, %v364
        %v377 = vmul.f32 %v365, %v365
        %v378 = vmul.f32 %v366, %v366
        %379 = vadd.xlane.f32.xlu0 %v375
        %v380 = vpop.xlane.xlu0 %379
        %381 = vadd.xlane.f32.xlu0 %v376
        %v382 = vpop.xlane.xlu0 %381
        %383 = vadd.xlane.f32.xlu0 %v377
        %v384 = vpop.xlane.xlu0 %383
        %385 = vadd.xlane.f32.xlu0 %v378
        %v386 = vpop.xlane.xlu0 %385
        %v387 = vld [vmem:[%s239] sm:$0xff]
        %v388 = vld [vmem:[%s239 + $0x8] sm:$0xff]
        %v389 = vld [vmem:[%s239 + $0x10] sm:$0xff]
        %v390 = vld [vmem:[%s239 + $0x18] sm:$0xff]
        %vm391 = vcmask 7168
        %v392 = vsel %vm391, %v368, %v380
        %v393 = vsel %vm391, %v370, %v382
        %v394 = vsel %vm391, %v372, %v384
        %v395 = vsel %vm391, %v374, %v386
        %v396 = vadd.f32 %v387, %v392
        %v397 = vadd.f32 %v388, %v393
        %v398 = vadd.f32 %v389, %v394
        %v399 = vadd.f32 %v390, %v395
        %vm400 = vcmask 15360
        %401 = vst.msk [vmem:[%s239] sm:$0xff] %vm400, %v396
        %402 = vst.msk [vmem:[%s239 + $0x8] sm:$0xff] %vm400, %v397
        %403 = vst.msk [vmem:[%s239 + $0x10] sm:$0xff] %vm400, %v398
        %404 = vst.msk [vmem:[%s239 + $0x18] sm:$0xff] %vm400, %v399
        %p405 = scmp.lt.s32.totalorder %s19, 7
        %s406 = scalar_select %p405, %s19, 7
        %s407 = smul.addr %s406, 4
        %s408 = smul.addr %s407, 8
        %s409 = scalar_lea.vmem %s3, %s408
        // Predicated region
        $region79: #{tcn_layer.3} parent=65 // pred_check
          %p410 = pneg %p115
        $region80: #{tcn_layer.3} parent=65 // pred_check_branch
          %412 = sbr.rel (%p410) target = $region82
        $region81: #{tcn_layer.3} parent=65 // pred_region
          _
        $region82: #{tcn_layer.3} parent=65 // pred_fallthru
          _
      $region66: #{tcn_layer.3} parent=5 // pred_fallthru
        _
      %p413 = scmp.le.s32.totalorder 2, %s10
      // Predicated region
      $region83: #{tcn_layer.3} parent=5 // pred_check
        %p414 = pneg %p413
      $region84: #{tcn_layer.3} parent=5 // pred_check_branch
        %416 = sbr.rel (%p414) target = $region86
      $region85: #{tcn_layer.3} parent=5 // pred_region
        %s417 = ssub.s32 %s10, 2
        // Predicated region
        $region87: #{tcn_layer.3} parent=85 // pred_check
          %p418 = pneg %p121
        $region88: #{tcn_layer.3} parent=85 // pred_check_branch
          %420 = sbr.rel (%p418) target = $region90
        $region89: #{tcn_layer.3} parent=85 // pred_region
          %p421 = scmp.lt.s32.totalorder %s21, 7
          %s422 = scalar_select %p421, %s21, 7
          %s423 = smul.addr %s422, 4
          %s424 = smul.addr %s423, 8
          %s425 = scalar_lea.vmem %s3, %s424
        $region90: #{tcn_layer.3} parent=85 // pred_fallthru
          _
      $region86: #{tcn_layer.3} parent=5 // pred_fallthru
        _
    $region6: #{tcn_layer.3} parent=1 // loop_footer
      %s14 = sadd.s32 1, %s10
    $region7: #{tcn_layer.3} parent=1 // loop_footer_branch
      %9 = sbr.rel target = $region3
    $region8: #{tcn_layer.3} parent=1 // loop_exit
      _
    %426 = vsyncpa [#allocation3], 1
    %s427 = scalar_lea.sflag [#allocation3], 1
    %428 = vsyncpa %s427, 1

// kernel: tcn_layer.4
$region0: #{tcn_layer.4}
  #allocation0 [shape = 'u32[]', space=smem, size = 0x4, offset = 0x4, fixed_abs, tag = 'smem constant byte address 0x4 - core index']
  #allocation1 [shape = 'u32[144,128]{1,0:T(1,128)}', space=vmem, size = 0x12000, scoped, tag = 'internal scratch']
  %s0 = inlined_call_operand.vmem [shape: f32[2], index: 0, kind: input, shape index: {}]
  %s1 = inlined_call_operand.vmem [shape: f32[8,16,512], index: 1, kind: input, shape index: {}]
  %s2 = inlined_call_operand.vmem [shape: f32[8,16,512], index: 2, kind: input, shape index: {}]
  %s3 = inlined_call_operand.vmem [shape: f32[32,16], index: 3, kind: input, shape index: {}]
  %s4 = inlined_call_operand.vmem [shape: f32[32,3], index: 4, kind: input, shape index: {}]
  %s5 = inlined_call_operand.vmem [shape: f32[8,32,2], index: 5, kind: input, shape index: {}]
  %s6 = inlined_call_operand.vmem [shape: f32[8,32,2], index: 6, kind: output, shape index: {}]
  %s7 = sld [smem:[#allocation0]]
  $region141: #{tcn_layer.4} parent=0
    _
  %s9 = ssub.s32 1, %s7
  %s10 = scalar_select 0, %s9, %s7
  $region1: #{tcn_layer.4} parent=0
    #allocation2 [shape = 'u8[512]{0}', space=smem, size = 0x200, scoped, tag = 'input window, operand 0, single buffered']
    #allocation3 [shape = 's32[2]{0}', space=sflag, size = 0x8, scoped, tag = 'scoped memory for tcn_layer.4']
    #allocation4 [shape = 'u8[16384]{0}', space=vmem, size = 0x4000, scoped, tag = 'input window, operand 1']
    #allocation5 [shape = 'u8[16384]{0}', space=vmem, size = 0x4000, scoped, tag = 'input window, operand 2']
    %11 = vsyncpa [#allocation3], 0
    loop: start=0, step=1, limit=34
    $region2: #{tcn_layer.4} parent=1 // loop_pre_header
      _
    $region3: #{tcn_layer.4} parent=1 // loop_header
      %s13 = sphi 0, %s17
      %p14 = scmp.ge.s32.totalorder %s13, 34
      %s20 = sphi 0, %s32
      %s21 = sphi 0, %s28
      %s22 = sphi 0, %s20
      %s23 = sphi 0, %s21
      %s24 = sphi 0, %s22
      %s25 = sphi 0, %s23
      %s33 = sphi 0, %s33
      %s35 = sphi 0, %s33
      %s36 = sphi 0, %s35
      %s50 = sphi 0, %s36
      %s58 = sphi 0, %s60
      %s61 = sphi 0, %s58
      %s62 = sphi 0, %s61
      %s78 = sphi 0, %s62
      %s86 = sphi 0, %s88
      %s89 = sphi 0, %s86
      %s90 = sphi 0, %s89
      %s106 = sphi 0, %s90
      %s110 = sphi 0, %s110
      %s112 = sphi 0, %s110
      %s113 = sphi 0, %s112
      %s127 = sphi 0, %s113
      %s131 = sphi 0, %s131
      %s133 = sphi 0, %s131
      %s134 = sphi 0, %s133
      %s148 = sphi 0, %s134
      %s154 = sphi 0, %s156
      %s157 = sphi 0, %s154
      %s158 = sphi 0, %s157
      %s174 = sphi 0, %s158
      %s180 = sphi 0, %s182
      %s183 = sphi 0, %s180
      %s184 = sphi 0, %s183
      %s200 = sphi 0, %s184
    $region4: #{tcn_layer.4} parent=1 // loop_header_branch
      %16 = sbr.rel (%p14) target = $region8
    $region5: #{tcn_layer.4} parent=1 // loop_body
      %s18 = ssub.s32 %s13, 1
      %s19 = ssub.s32 %s13, 2
      %s26 = sadd.s32 1, %s21
      %p27 = scmp.ge.s32.totalorder %s26, 4
      %s28 = scalar_select %p27, 0, %s26
      %s29 = sadd.s32 1, %s20
      %s30 = scalar_select %p27, %s29, %s20
      %p31 = scmp.ge.s32.totalorder %s30, 8
      %s32 = scalar_select %p31, 0, %s30
      %s34 = sadd.s32 %s33, 1
      %p37 = scmp.eq.s32.totalorder %s13, 31
      %p38 = scmp.ne.s32.totalorder %s33, %s35
      %p39 = scmp.eq.s32.totalorder %s13, 0
      %p40 = por %p38, %p39
      %p41 = scmp.ne.s32.totalorder %s33, %s35
      %p42 = scmp.eq.s32.totalorder %s18, 31
      %p43 = por %p41, %p42
      %p44 = scmp.ne.s32.totalorder %s35, %s36
      %p45 = scmp.eq.s32.totalorder %s18, 0
      %p46 = por %p44, %p45
      %p47 = scmp.ne.s32.totalorder %s35, %s36
      %p48 = scmp.eq.s32.totalorder %s19, 31
      %p49 = por %p47, %p48
      %p51 = scmp.ne.s32.totalorder %s36, %s50
      %p52 = scmp.eq.s32.totalorder %s19, 0
      %p53 = por %p51, %p52
      %s54 = ssub.s32 %s20, %s32
      %s55 = ssub.s32 %s21, %s28
      %s56 = sor.u32 %s54, %s55
      %p57 = scmp.eq.s32.totalorder %s56, 0
      %s59 = sadd.s32 %s58, 1
      %s60 = scalar_select %p57, %s58, %s59
      %p63 = pneg %p57
      %p64 = scmp.eq.s32.totalorder %s13, 31
      %p65 = por %p63, %p64
      %p66 = scmp.ne.s32.totalorder %s58, %s61
      %p67 = scmp.eq.s32.totalorder %s13, 0
      %p68 = por %p66, %p67
      %p69 = scmp.ne.s32.totalorder %s58, %s61
      %p70 = scmp.eq.s32.totalorder %s18, 31
      %p71 = por %p69, %p70
      %p72 = scmp.ne.s32.totalorder %s61, %s62
      %p73 = scmp.eq.s32.totalorder %s18, 0
      %p74 = por %p72, %p73
      %p75 = scmp.ne.s32.totalorder %s61, %s62
      %p76 = scmp.eq.s32.totalorder %s19, 31
      %p77 = por %p75, %p76
      %p79 = scmp.ne.s32.totalorder %s62, %s78
      %p80 = scmp.eq.s32.totalorder %s19, 0
      %p81 = por %p79, %p80
      %s82 = ssub.s32 %s20, %s32
      %s83 = ssub.s32 %s21, %s28
      %s84 = sor.u32 %s82, %s83
      %p85 = scmp.eq.s32.totalorder %s84, 0
      %s87 = sadd.s32 %s86, 1
      %s88 = scalar_select %p85, %s86, %s87
      %p91 = pneg %p85
      %p92 = scmp.eq.s32.totalorder %s13, 31
      %p93 = por %p91, %p92
      %p94 = scmp.ne.s32.totalorder %s86, %s89
      %p95 = scmp.eq.s32.totalorder %s13, 0
      %p96 = por %p94, %p95
      %p97 = scmp.ne.s32.totalorder %s86, %s89
      %p98 = scmp.eq.s32.totalorder %s18, 31
      %p99 = por %p97, %p98
      %p100 = scmp.ne.s32.totalorder %s89, %s90
      %p101 = scmp.eq.s32.totalorder %s18, 0
      %p102 = por %p100, %p101
      %p103 = scmp.ne.s32.totalorder %s89, %s90
      %p104 = scmp.eq.s32.totalorder %s19, 31
      %p105 = por %p103, %p104
      %p107 = scmp.ne.s32.totalorder %s90, %s106
      %p108 = scmp.eq.s32.totalorder %s19, 0
      %p109 = por %p107, %p108
      %s111 = sadd.s32 %s110, 1
      %p114 = scmp.eq.s32.totalorder %s13, 31
      %p115 = scmp.ne.s32.totalorder %s110, %s112
      %p116 = scmp.eq.s32.totalorder %s13, 0
      %p117 = por %p115, %p116
      %p118 = scmp.ne.s32.totalorder %s110, %s112
      %p119 = scmp.eq.s32.totalorder %s18, 31
      %p120 = por %p118, %p119
      %p121 = scmp.ne.s32.totalorder %s112, %s113
      %p122 = scmp.eq.s32.totalorder %s18, 0
      %p123 = por %p121, %p122
      %p124 = scmp.ne.s32.totalorder %s112, %s113
      %p125 = scmp.eq.s32.totalorder %s19, 31
      %p126 = por %p124, %p125
      %p128 = scmp.ne.s32.totalorder %s113, %s127
      %p129 = scmp.eq.s32.totalorder %s19, 0
      %p130 = por %p128, %p129
      %s132 = sadd.s32 %s131, 1
      %p135 = scmp.eq.s32.totalorder %s13, 31
      %p136 = scmp.ne.s32.totalorder %s131, %s133
      %p137 = scmp.eq.s32.totalorder %s13, 0
      %p138 = por %p136, %p137
      %p139 = scmp.ne.s32.totalorder %s131, %s133
      %p140 = scmp.eq.s32.totalorder %s18, 31
      %p141 = por %p139, %p140
      %p142 = scmp.ne.s32.totalorder %s133, %s134
      %p143 = scmp.eq.s32.totalorder %s18, 0
      %p144 = por %p142, %p143
      %p145 = scmp.ne.s32.totalorder %s133, %s134
      %p146 = scmp.eq.s32.totalorder %s19, 31
      %p147 = por %p145, %p146
      %p149 = scmp.ne.s32.totalorder %s134, %s148
      %p150 = scmp.eq.s32.totalorder %s19, 0
      %p151 = por %p149, %p150
      %s152 = ssub.s32 %s20, %s32
      %p153 = scmp.eq.s32.totalorder %s152, 0
      %s155 = sadd.s32 %s154, 1
      %s156 = scalar_select %p153, %s154, %s155
      %p159 = pneg %p153
      %p160 = scmp.eq.s32.totalorder %s13, 31
      %p161 = por %p159, %p160
      %p162 = scmp.ne.s32.totalorder %s154, %s157
      %p163 = scmp.eq.s32.totalorder %s13, 0
      %p164 = por %p162, %p163
      %p165 = scmp.ne.s32.totalorder %s154, %s157
      %p166 = scmp.eq.s32.totalorder %s18, 31
      %p167 = por %p165, %p166
      %p168 = scmp.ne.s32.totalorder %s157, %s158
      %p169 = scmp.eq.s32.totalorder %s18, 0
      %p170 = por %p168, %p169
      %p171 = scmp.ne.s32.totalorder %s157, %s158
      %p172 = scmp.eq.s32.totalorder %s19, 31
      %p173 = por %p171, %p172
      %p175 = scmp.ne.s32.totalorder %s158, %s174
      %p176 = scmp.eq.s32.totalorder %s19, 0
      %p177 = por %p175, %p176
      %s178 = ssub.s32 %s20, %s32
      %p179 = scmp.eq.s32.totalorder %s178, 0
      %s181 = sadd.s32 %s180, 1
      %s182 = scalar_select %p179, %s180, %s181
      %p185 = pneg %p179
      %p186 = scmp.eq.s32.totalorder %s13, 31
      %p187 = por %p185, %p186
      %p188 = scmp.ne.s32.totalorder %s180, %s183
      %p189 = scmp.eq.s32.totalorder %s13, 0
      %p190 = por %p188, %p189
      %p191 = scmp.ne.s32.totalorder %s180, %s183
      %p192 = scmp.eq.s32.totalorder %s18, 31
      %p193 = por %p191, %p192
      %p194 = scmp.ne.s32.totalorder %s183, %s184
      %p195 = scmp.eq.s32.totalorder %s18, 0
      %p196 = por %p194, %p195
      %p197 = scmp.ne.s32.totalorder %s183, %s184
      %p198 = scmp.eq.s32.totalorder %s19, 31
      %p199 = por %p197, %p198
      %p201 = scmp.ne.s32.totalorder %s184, %s200
      %p202 = scmp.eq.s32.totalorder %s19, 0
      %p203 = por %p201, %p202
      %p204 = scmp.le.s32.totalorder 1, %s13
      %p205 = scmp.lt.s32.totalorder %s13, 33
      %p206 = pnand %p204, %p205
      %p207 = pneg %p206
      // Predicated region
      $region9: #{tcn_layer.4} parent=5 // pred_check
        _
      $region10: #{tcn_layer.4} parent=5 // pred_check_branch
        %209 = sbr.rel (%p206) target = $region12
      $region11: #{tcn_layer.4} parent=5 // pred_region
        %s210 = ssub.s32 %s13, 1
        // Predicated region
        $region13: #{tcn_layer.4} parent=11 // pred_check
          %p211 = pneg %p46
        $region14: #{tcn_layer.4} parent=11 // pred_check_branch
          %213 = sbr.rel (%p211) target = $region16
        $region15: #{tcn_layer.4} parent=11 // pred_region
          %s215 = ssub.s32 16, 16
          %216 = vsyncadd [#allocation3], %s215
          %s218 = sshll.u32 %s0, 4
          %s219 = int_to_ptr.vmem [resolvable:$true] %s218
          %221 = dma.vmem_to_smem %s219, 16, [#allocation2], [#allocation3]
        $region16: #{tcn_layer.4} parent=11 // pred_fallthru
          _
        // Predicated region
        $region17: #{tcn_layer.4} parent=11 // pred_check
          %p222 = pneg %p123
        $region18: #{tcn_layer.4} parent=11 // pred_check_branch
          %224 = sbr.rel (%p222) target = $region20
        $region19: #{tcn_layer.4} parent=11 // pred_region
          _
        $region20: #{tcn_layer.4} parent=11 // pred_fallthru
          _
        // Predicated region
        $region21: #{tcn_layer.4} parent=11 // pred_check
          %p225 = pneg %p144
        $region22: #{tcn_layer.4} parent=11 // pred_check_branch
          %227 = sbr.rel (%p225) target = $region24
        $region23: #{tcn_layer.4} parent=11 // pred_region
          _
        $region24: #{tcn_layer.4} parent=11 // pred_fallthru
          _
      $region12: #{tcn_layer.4} parent=5 // pred_fallthru
        _
      %p228 = scmp.lt.s32.totalorder %s13, 32
      // Predicated region
      $region25: #{tcn_layer.4} parent=5 // pred_check
        %p229 = pneg %p228
      $region26: #{tcn_layer.4} parent=5 // pred_check_branch
        %231 = sbr.rel (%p229) target = $region28
      $region27: #{tcn_layer.4} parent=5 // pred_region
        // Predicated region
        $region29: #{tcn_layer.4} parent=27 // pred_check
          %p232 = pneg %p68
        $region30: #{tcn_layer.4} parent=27 // pred_check_branch
          %234 = sbr.rel (%p232) target = $region32
        $region31: #{tcn_layer.4} parent=27 // pred_region
          %s235 = sand.u32 %s58, 1
          %s236 = sand.u32 %s58, 1
          %s237 = smul.addr %s236, 16
          %s238 = scalar_lea.vmem [#allocation4], %s237
          %s239 = smul.addr %s20, 8
          %s240 = sadd.s32 %s21, %s239
          %s241 = smul.addr %s240, 8
          %s242 = scalar_lea.vmem %s1, %s241
          // Predicated region
          $region33: #{tcn_layer.4} parent=31 // pred_check
            _
          $region34: #{tcn_layer.4} parent=31 // pred_check_branch
            %244 = sbr.rel (0) target = $region36
          $region35: #{tcn_layer.4} parent=31 // pred_region
            // Predicated region
            $region37: #{tcn_layer.4} parent=35 // pred_check
              _
            $region38: #{tcn_layer.4} parent=35 // pred_check_branch
              %246 = sbr.rel (0) target = $region40
            $region39: #{tcn_layer.4} parent=35 // pred_region
              // Predicated region
              $region52: #{tcn_layer.4} parent=39 // pred_check
                _
              $region53: #{tcn_layer.4} parent=39 // pred_check_branch
                %264 = sbr.rel (0) target = $region55
              $region54: #{tcn_layer.4} parent=39 // pred_region
                loop: start=0, step=1, limit=1
                $region56: #{tcn_layer.4} parent=54 // loop_pre_header
                  _
                $region57: #{tcn_layer.4} parent=54 // loop_header
                  %s266 = sphi 0, %s270
                  %p267 = scmp.ge.s32.totalorder %s266, 1
                  %s271 = sphi %s242, %s242
                  %s272 = sphi %s238, %s238
                $region58: #{tcn_layer.4} parent=54 // loop_header_branch
                  %269 = sbr.rel (%p267) target = $region62
                $region59: #{tcn_layer.4} parent=54 // loop_body
                  %v273 = vld [vmem:[%s271] sm:$0xff]
                  %274 = vst [vmem:[%s272] sm:$0xff] %v273
                  %v275 = vld [vmem:[%s271 + $0x20] sm:$0xff]
                  %276 = vst [vmem:[%s272 + $0x8] sm:$0xff] %v275
                $region60: #{tcn_layer.4} parent=54 // loop_footer
                  %s270 = sadd.s32 1, %s266
                $region61: #{tcn_layer.4} parent=54 // loop_footer_branch
                  %265 = sbr.rel target = $region57
                $region62: #{tcn_layer.4} parent=54 // loop_exit
                  _
              $region55: #{tcn_layer.4} parent=39 // pred_fallthru
                _
              // Predicated region
              $region63: #{tcn_layer.4} parent=39 // pred_check
                _
              $region64: #{tcn_layer.4} parent=39 // pred_check_branch
                %278 = sbr.rel target = $region66
              $region65: #{tcn_layer.4} parent=39 // pred_region
                _
              $region66: #{tcn_layer.4} parent=39 // pred_fallthru
                _
            $region40: #{tcn_layer.4} parent=35 // pred_fallthru
              _
            // Predicated region
            $region41: #{tcn_layer.4} parent=35 // pred_check
              _
            $region42: #{tcn_layer.4} parent=35 // pred_check_branch
              %248 = sbr.rel target = $region44
            $region43: #{tcn_layer.4} parent=35 // pred_region
              %s250 = ssub.s32 256, 1
              loop: start=0, step=1, limit=1
              $region45: #{tcn_layer.4} parent=43 // loop_pre_header
                _
              $region46: #{tcn_layer.4} parent=43 // loop_header
                %s252 = sphi 0, %s256
                %p253 = scmp.ge.s32.totalorder %s252, 1
                %s257 = sphi %s242, %s242
                %s258 = sphi %s238, %s238
              $region47: #{tcn_layer.4} parent=43 // loop_header_branch
                %255 = sbr.rel (%p253) target = $region51
              $region48: #{tcn_layer.4} parent=43 // loop_body
                %v259 = vld [vmem:[%s257] sm:%s250]
                %260 = vst [vmem:[%s258] sm:%s250] %v259
                %v261 = vld [vmem:[%s257 + $0x20] sm:%s250]
                %262 = vst [vmem:[%s258 + $0x8] sm:%s250] %v261
              $region49: #{tcn_layer.4} parent=43 // loop_footer
                %s256 = sadd.s32 1, %s252
              $region50: #{tcn_layer.4} parent=43 // loop_footer_branch
                %251 = sbr.rel target = $region46
              $region51: #{tcn_layer.4} parent=43 // loop_exit
                _
            $region44: #{tcn_layer.4} parent=35 // pred_fallthru
              _
          $region36: #{tcn_layer.4} parent=31 // pred_fallthru
            _
          %279 = vnop
        $region32: #{tcn_layer.4} parent=27 // pred_fallthru
          _
        // Predicated region
        $region67: #{tcn_layer.4} parent=27 // pred_check
          %p280 = pneg %p96
        $region68: #{tcn_layer.4} parent=27 // pred_check_branch
          %282 = sbr.rel (%p280) target = $region70
        $region69: #{tcn_layer.4} parent=27 // pred_region
          %s283 = sand.u32 %s86, 1
          %s284 = sand.u32 %s86, 1
          %s285 = smul.addr %s284, 16
          %s286 = scalar_lea.vmem [#allocation5], %s285
          %s287 = smul.addr %s20, 8
          %s288 = sadd.s32 %s21, %s287
          %s289 = smul.addr %s288, 8
          %s290 = scalar_lea.vmem %s2, %s289
          // Predicated region
          $region71: #{tcn_layer.4} parent=69 // pred_check
            _
          $region72: #{tcn_layer.4} parent=69 // pred_check_branch
            %292 = sbr.rel (0) target = $region74
          $region73: #{tcn_layer.4} parent=69 // pred_region
            // Predicated region
            $region75: #{tcn_layer.4} parent=73 // pred_check
              _
            $region76: #{tcn_layer.4} parent=73 // pred_check_branch
              %294 = sbr.rel (0) target = $region78
            $region77: #{tcn_layer.4} parent=73 // pred_region
              // Predicated region
              $region90: #{tcn_layer.4} parent=77 // pred_check
                _
              $region91: #{tcn_layer.4} parent=77 // pred_check_branch
                %312 = sbr.rel (0) target = $region93
              $region92: #{tcn_layer.4} parent=77 // pred_region
                loop: start=0, step=1, limit=1
                $region94: #{tcn_layer.4} parent=92 // loop_pre_header
                  _
                $region95: #{tcn_layer.4} parent=92 // loop_header
                  %s314 = sphi 0, %s318
                  %p315 = scmp.ge.s32.totalorder %s314, 1
                  %s319 = sphi %s290, %s290
                  %s320 = sphi %s286, %s286
                $region96: #{tcn_layer.4} parent=92 // loop_header_branch
                  %317 = sbr.rel (%p315) target = $region100
                $region97: #{tcn_layer.4} parent=92 // loop_body
                  %v321 = vld [vmem:[%s319] sm:$0xff]
                  %322 = vst [vmem:[%s320] sm:$0xff] %v321
                  %v323 = vld [vmem:[%s319 + $0x20] sm:$0xff]
                  %324 = vst [vmem:[%s320 + $0x8] sm:$0xff] %v323
                $region98: #{tcn_layer.4} parent=92 // loop_footer
                  %s318 = sadd.s32 1, %s314
                $region99: #{tcn_layer.4} parent=92 // loop_footer_branch
                  %313 = sbr.rel target = $region95
                $region100: #{tcn_layer.4} parent=92 // loop_exit
                  _
              $region93: #{tcn_layer.4} parent=77 // pred_fallthru
                _
              // Predicated region
              $region101: #{tcn_layer.4} parent=77 // pred_check
                _
              $region102: #{tcn_layer.4} parent=77 // pred_check_branch
                %326 = sbr.rel target = $region104
              $region103: #{tcn_layer.4} parent=77 // pred_region
                _
              $region104: #{tcn_layer.4} parent=77 // pred_fallthru
                _
            $region78: #{tcn_layer.4} parent=73 // pred_fallthru
              _
            // Predicated region
            $region79: #{tcn_layer.4} parent=73 // pred_check
              _
            $region80: #{tcn_layer.4} parent=73 // pred_check_branch
              %296 = sbr.rel target = $region82
            $region81: #{tcn_layer.4} parent=73 // pred_region
              %s298 = ssub.s32 256, 1
              loop: start=0, step=1, limit=1
              $region83: #{tcn_layer.4} parent=81 // loop_pre_header
                _
              $region84: #{tcn_layer.4} parent=81 // loop_header
                %s300 = sphi 0, %s304
                %p301 = scmp.ge.s32.totalorder %s300, 1
                %s305 = sphi %s290, %s290
                %s306 = sphi %s286, %s286
              $region85: #{tcn_layer.4} parent=81 // loop_header_branch
                %303 = sbr.rel (%p301) target = $region89
              $region86: #{tcn_layer.4} parent=81 // loop_body
                %v307 = vld [vmem:[%s305] sm:%s298]
                %308 = vst [vmem:[%s306] sm:%s298] %v307
                %v309 = vld [vmem:[%s305 + $0x20] sm:%s298]
                %310 = vst [vmem:[%s306 + $0x8] sm:%s298] %v309
              $region87: #{tcn_layer.4} parent=81 // loop_footer
                %s304 = sadd.s32 1, %s300
              $region88: #{tcn_layer.4} parent=81 // loop_footer_branch
                %299 = sbr.rel target = $region84
              $region89: #{tcn_layer.4} parent=81 // loop_exit
                _
            $region82: #{tcn_layer.4} parent=73 // pred_fallthru
              _
          $region74: #{tcn_layer.4} parent=69 // pred_fallthru
            _
          %327 = vnop
        $region70: #{tcn_layer.4} parent=27 // pred_fallthru
          _
        // Predicated region
        $region105: #{tcn_layer.4} parent=27 // pred_check
          %p328 = pneg %p164
        $region106: #{tcn_layer.4} parent=27 // pred_check_branch
          %330 = sbr.rel (%p328) target = $region108
        $region107: #{tcn_layer.4} parent=27 // pred_region
          %p331 = scmp.lt.s32.totalorder %s20, 7
          %s332 = scalar_select %p331, %s20, 7
          %s333 = smul.addr %s332, 4
          %s334 = smul.addr %s333, 8
          %s335 = scalar_lea.vmem %s5, %s334
        $region108: #{tcn_layer.4} parent=27 // pred_fallthru
          _
      $region28: #{tcn_layer.4} parent=5 // pred_fallthru
        _
      %p336 = scmp.le.s32.totalorder 1, %s13
      %p337 = scmp.lt.s32.totalorder %s13, 33
      %p338 = pnand %p336, %p337
      %p339 = pneg %p338
      // Predicated region
      $region109: #{tcn_layer.4} parent=5 // pred_check
        _
      $region110: #{tcn_layer.4} parent=5 // pred_check_branch
        %341 = sbr.rel (%p338) target = $region112
      $region111: #{tcn_layer.4} parent=5 // pred_region
        %s342 = ssub.s32 %s13, 1
        // Predicated region
        $region113: #{tcn_layer.4} parent=111 // pred_check
          %p343 = pneg %p46
        $region114: #{tcn_layer.4} parent=111 // pred_check_branch
          %345 = sbr.rel (%p343) target = $region116
        $region115: #{tcn_layer.4} parent=111 // pred_region
          %346 = dma.done [#allocation3], 16
        $region116: #{tcn_layer.4} parent=111 // pred_fallthru
          _
        %s347 = sand.u32 %s61, 1
        %s348 = sand.u32 %s61, 1
        %s349 = smul.addr %s348, 16
        %s350 = scalar_lea.vmem [#allocation4], %s349
        // Predicated region
        $region117: #{tcn_layer.4} parent=111 // pred_check
          %p351 = pneg %p74
        $region118: #{tcn_layer.4} parent=111 // pred_check_branch
          %353 = sbr.rel (%p351) target = $region120
        $region119: #{tcn_layer.4} parent=111 // pred_region
          _
        $region120: #{tcn_layer.4} parent=111 // pred_fallthru
          _
        %s354 = sand.u32 %s89, 1
        %s355 = sand.u32 %s89, 1
        %s356 = smul.addr %s355, 16
        %s357 = scalar_lea.vmem [#allocation5], %s356
        // Predicated region
        $region121: #{tcn_layer.4} parent=111 // pred_check
          %p358 = pneg %p102
        $region122: #{tcn_layer.4} parent=111 // pred_check_branch
          %360 = sbr.rel (%p358) target = $region124
        $region123: #{tcn_layer.4} parent=111 // pred_region
          _
        $region124: #{tcn_layer.4} parent=111 // pred_fallthru
          _
        %361 = sfence
        %p362 = pneg %p46
        %p363 = pneg %p43
        %s364 = sand.u32 %s61, 1
        %s365 = sand.u32 %s61, 1
        %s366 = smul.addr %s365, 16
        %s367 = scalar_lea.vmem [#allocation4], %s366
        %p368 = pneg %p74
        %p369 = pneg %p71
        %s370 = sand.u32 %s89, 1
        %s371 = sand.u32 %s89, 1
        %s372 = smul.addr %s371, 16
        %s373 = scalar_lea.vmem [#allocation5], %s372
        %p374 = pneg %p102
        %p375 = pneg %p99
        %p376 = pneg %p123
        %p377 = pneg %p120
        %p378 = pneg %p144
        %p379 = pneg %p141
        %p380 = scmp.lt.s32.totalorder %s22, 7
        %s381 = scalar_select %p380, %s22, 7
        %s382 = smul.addr %s381, 4
        %s383 = smul.addr %s382, 8
        %s384 = scalar_lea.vmem %s5, %s383
        %p385 = pneg %p170
        %p386 = pneg %p167
        %p387 = pneg %p196
        %p388 = pneg %p193
        %p389 = scmp.lt.s32.totalorder %s22, 7
        %s390 = scalar_select %p389, %s22, 7
        %s391 = smul.addr %s390, 4
        %s392 = smul.addr %s391, 8
        %s393 = scalar_lea.vmem %s6, %s392
        %p394 = scmp.lt.s32.totalorder %s22, 7
        %s395 = scalar_select %p394, %s22, 7
        %s396 = smul.addr %s395, 4
        %s397 = smul.addr %s396, 8
        %s398 = scalar_lea.vmem %s5, %s397
        %p399 = scmp.lt.s32.totalorder %s22, 7
        %s400 = scalar_select %p399, %s22, 7
        %s401 = smul.addr %s400, 4
        %s402 = smul.addr %s401, 8
        %s403 = scalar_lea.vmem %s6, %s402
        %p404 = scmp.eq.s32.totalorder %s23, 0
        // Predicated region
        $region125: #{tcn_layer.4} parent=111 // pred_check
          %p405 = pneg %p404
        $region126: #{tcn_layer.4} parent=111 // pred_check_branch
          %407 = sbr.rel (%p405) target = $region128
        $region127: #{tcn_layer.4} parent=111 // pred_region
          %vm408 = vcmask 15360
          %409 = vst.msk [vmem:[%s403] sm:$0xff] %vm408, 0.0
          %410 = vst.msk [vmem:[%s403 + $0x8] sm:$0xff] %vm408, 0.0
          %411 = vst.msk [vmem:[%s403 + $0x10] sm:$0xff] %vm408, 0.0
          %412 = vst.msk [vmem:[%s403 + $0x18] sm:$0xff] %vm408, 0.0
        $region128: #{tcn_layer.4} parent=111 // pred_fallthru
          _
        %v413 = vld [vmem:[%s398] sm:$0xff]
        %v414 = vld [vmem:[%s398 + $0x8] sm:$0xff]
        %v415 = vld [vmem:[%s398 + $0x10] sm:$0xff]
        %v416 = vld [vmem:[%s398 + $0x18] sm:$0xff]
        %v417 = vld [vmem:[%s357] sm:$0xff]
        %v418 = vld [vmem:[%s357 + $0x8] sm:$0xff]
        %v419 = vld [vmem:[%s350] sm:$0xff]
        %v420 = vld [vmem:[%s350 + $0x8] sm:$0xff]
        %v421 = vld [vmem:[%s3] sm:$0xff]
        %v422 = vld [vmem:[%s3 + $0x8] sm:$0xff]
        %v423 = vld [vmem:[%s3 + $0x10] sm:$0xff]
        %v424 = vld [vmem:[%s3 + $0x18] sm:$0xff]
        %s425 = sld [smem:[#allocation2]]
        %v426 = vld [vmem:[%s4] sm:$0xff]
        %v427 = vld [vmem:[%s4 + $0x8] sm:$0xff]
        %v428 = vld [vmem:[%s4 + $0x10] sm:$0xff]
        %v429 = vld [vmem:[%s4 + $0x18] sm:$0xff]
        %432 = vrot.lane.b32.xlu0 %v419, 2
        %v433 = vpop.permute.xlu0 %432
        %434 = vrot.lane.b32.xlu0 %v420, 2
        %v435 = vpop.permute.xlu0 %434
        %vm438 = vcmask 15360
        %v439 = vsel %vm438, %v417, %v433
        %v440 = vsel %vm438, %v418, %v435
        %v441 = vsel %vm438, %v433, %v417
        %v442 = vsel %vm438, %v435, %v418
        %vm443 = vcmask 130048
        %v445 = vsel %vm443, %v421, 0
        %v448 = vsel %vm443, %v422, 0
        %v451 = vsel %vm443, %v423, 0
        %v454 = vsel %vm443, %v424, 0
        %456 = vmatprep.subr.mxu0 0.0
        %457 = vmatpush1.msra.mxu0 0.0
        %458 = vmatprep.subr.mxu0 0.0
        %459 = vmatpush1.msra.mxu0 0.0
        %460 = vmatprep.subr.mxu0 0.0
        %461 = vmatpush1.msra.mxu0 0.0
        %462 = vmatprep.subr.mxu0 0.0
        %463 = vmatpush1.msra.mxu0 0.0
        %464 = vmatprep.subr.mxu0 0.0
        %465 = vmatpush1.msra.mxu0 0.0
        %466 = vmatprep.subr.mxu0 0.0
        %467 = vmatpush1.msra.mxu0 0.0
        %468 = vmatprep.subr.mxu0 0.0
        %469 = vmatpush1.msra.mxu0 0.0
        %470 = vmatprep.subr.mxu0 0.0
        %471 = vmatpush1.msra.mxu0 0.0
        %472 = vmatprep.subr.mxu0 0.0
        %473 = vmatpush1.msra.mxu0 0.0
        %474 = vmatprep.subr.mxu0 0.0
        %475 = vmatpush1.msra.mxu0 0.0
        %476 = vmatprep.subr.mxu0 0.0
        %477 = vmatpush1.msra.mxu0 0.0
        %478 = vmatprep.subr.mxu0 0.0
        %479 = vmatpush1.msra.mxu0 0.0
        %480 = vmatprep.subr.mxu0 0.0
        %481 = vmatpush1.msra.mxu0 0.0
        %482 = vmatprep.subr.mxu0 0.0
        %483 = vmatpush1.msra.mxu0 0.0
        %484 = vmatprep.subr.mxu0 %v442
        %485 = vmatpush1.msra.mxu0 %v440
        %486 = vmatprep.subr.mxu0 %v441
        %487 = vmatpush1.msra.mxu0 %v439
        %488 = vmatprep.subr.mxu0 0.0
        %489 = vmatpush2.msra.mxu0 0.0
        %490 = vmatprep.subr.mxu0 0.0
        %491 = vmatpush2.msra.mxu0 0.0
        %492 = vmatprep.subr.mxu0 0.0
        %493 = vmatpush2.msra.mxu0 0.0
        %494 = vmatprep.subr.mxu0 0.0
        %495 = vmatpush2.msra.mxu0 0.0
        %496 = vmatprep.subr.mxu0 0.0
        %497 = vmatpush2.msra.mxu0 0.0
        %498 = vmatprep.subr.mxu0 0.0
        %499 = vmatpush2.msra.mxu0 0.0
        %500 = vmatprep.subr.mxu0 0.0
        %501 = vmatpush2.msra.mxu0 0.0
        %502 = vmatprep.subr.mxu0 0.0
        %503 = vmatpush2.msra.mxu0 0.0
        %504 = vmatprep.subr.mxu0 0.0
        %505 = vmatpush2.msra.mxu0 0.0
        %506 = vmatprep.subr.mxu0 0.0
        %507 = vmatpush2.msra.mxu0 0.0
        %508 = vmatprep.subr.mxu0 0.0
        %509 = vmatpush2.msra.mxu0 0.0
        %510 = vmatprep.subr.mxu0 0.0
        %511 = vmatpush2.msra.mxu0 0.0
        %512 = vmatprep.subr.mxu0 0.0
        %513 = vmatpush2.msra.mxu0 0.0
        %514 = vmatprep.subr.mxu0 0.0
        %515 = vmatpush2.msra.mxu0 0.0
        %516 = vmatprep.subr.mxu0 0.0
        %517 = vmatpush2.msra.mxu0 0.0
        %518 = vmatprep.subr.mxu0 0.0
        %519 = vmatpush2.msra.mxu0 0.0
        %520 = vmatprep.mubr.f32.mxu0 0.0
        %521 = vmatmul.mubr.f32.gmra.mxu0 %v445
        %v522 = vpop.f32.mrf.mxu0
        %v523 = vadd.f32 0.0, %v522
        %v524 = vpop.f32.mrf.mxu0
        %v525 = vadd.f32 0.0, %v524
        %526 = vmatprep.mubr.f32.mxu0 0.0
        %527 = vmatmul.mubr.f32.gmra.mxu0 %v448
        %v528 = vpop.f32.mrf.mxu0
        %v529 = vadd.f32 0.0, %v528
        %v530 = vpop.f32.mrf.mxu0
        %v531 = vadd.f32 0.0, %v530
        %532 = vmatprep.mubr.f32.mxu0 0.0
        %533 = vmatmul.mubr.f32.gmra.mxu0 %v451
        %v534 = vpop.f32.mrf.mxu0
        %v535 = vadd.f32 0.0, %v534
        %v536 = vpop.f32.mrf.mxu0
        %v537 = vadd.f32 0.0, %v536
        %538 = vmatprep.mubr.f32.mxu0 0.0
        %539 = vmatmul.mubr.f32.gmra.mxu0 %v454
        %v540 = vpop.f32.mrf.mxu0
        %v541 = vadd.f32 0.0, %v540
        %v542 = vpop.f32.mrf.mxu0
        %v543 = vadd.f32 0.0, %v542
        %544 = vdwg.mxu0
        %vm545 = vcmp.gt.f32.partialorder %v523, 0.0
        %vm546 = vcmp.gt.f32.partialorder %v525, 0.0
        %vm547 = vcmp.gt.f32.partialorder %v529, 0.0
        %vm548 = vcmp.gt.f32.partialorder %v531, 0.0
        %vm549 = vcmp.gt.f32.partialorder %v535, 0.0
        %vm550 = vcmp.gt.f32.partialorder %v537, 0.0
        %vm551 = vcmp.gt.f32.partialorder %v541, 0.0
        %vm552 = vcmp.gt.f32.partialorder %v543, 0.0
        %v553 = vstv %s425
        %v554 = vmul.f32 %v553, %v523
        %v555 = vmul.f32 %v553, %v525
        %v556 = vmul.f32 %v553, %v529
        %v557 = vmul.f32 %v553, %v531
        %v558 = vmul.f32 %v553, %v535
        %v559 = vmul.f32 %v553, %v537
        %v560 = vmul.f32 %v553, %v541
        %v561 = vmul.f32 %v553, %v543
        %v562 = vsel %vm545, %v523, %v554
        %v563 = vsel %vm546, %v525, %v555
        %v564 = vsel %vm547, %v529, %v556
        %v565 = vsel %vm548, %v531, %v557
        %v566 = vsel %vm549, %v535, %v558
        %v567 = vsel %vm550, %v537, %v559
        %v568 = vsel %vm551, %v541, %v560
        %v569 = vsel %vm552, %v543, %v561
        %571 = vset.pattern.permute.xlu0 0
        %572 = vperm.xlu0 %571, %v413
        %v573 = vpop.permute.xlu0 %572
        %576 = vset.pattern.permute.xlu0 0
        %577 = vperm.xlu0 %576, %v414
        %v578 = vpop.permute.xlu0 %577
        %581 = vset.pattern.permute.xlu0 0
        %582 = vperm.xlu0 %581, %v415
        %v583 = vpop.permute.xlu0 %582
        %586 = vset.pattern.permute.xlu0 0
        %587 = vperm.xlu0 %586, %v416
        %v588 = vpop.permute.xlu0 %587
        %v590 = vmul.f32 %v562, %v573
        %v591 = vmul.f32 %v563, %v573
        %v592 = vmul.f32 %v564, %v578
        %v593 = vmul.f32 %v565, %v578
        %v594 = vmul.f32 %v566, %v583
        %v595 = vmul.f32 %v567, %v583
        %v596 = vmul.f32 %v568, %v588
        %v597 = vmul.f32 %v569, %v588
        %598 = vset.pattern.permute.xlu0 1
        %599 = vperm.xlu0 %598, %v413
        %v600 = vpop.permute.xlu0 %599
        %602 = vset.pattern.permute.xlu0 1
        %603 = vperm.xlu0 %602, %v414
        %v604 = vpop.permute.xlu0 %603
        %606 = vset.pattern.permute.xlu0 1
        %607 = vperm.xlu0 %606, %v415
        %v608 = vpop.permute.xlu0 %607
        %610 = vset.pattern.permute.xlu0 1
        %611 = vperm.xlu0 %610, %v416
        %v612 = vpop.permute.xlu0 %611
        %v614 = vadd.f32 %v590, %v600
        %v615 = vadd.f32 %v591, %v600
        %v616 = vadd.f32 %v592, %v604
        %v617 = vadd.f32 %v593, %v604
        %v618 = vadd.f32 %v594, %v608
        %v619 = vadd.f32 %v595, %v608
        %v620 = vadd.f32 %v596, %v612
        %v621 = vadd.f32 %v597, %v612
        %v622 = vlaneseq
        %v623 = vand.u32 %v622, 127
        %v624 = vadd.s32 %v623, 128
        %s625 = smul.u32 %s23, 128
        %s626 = ssub.s32 %s625, 2
        %v627 = vstv %s626
        %v628 = vadd.s32 %v623, %v627
        %v629 = vadd.s32 %v624, %v627
        %vm630 = vcmp.ge.s32.totalorder %v628, 0
        %vm631 = vcmp.ge.s32.totalorder %v629, 0
        %vm632 = vcmp.lt.s32.totalorder %v628, 512
        %vm633 = vcmp.lt.s32.totalorder %v629, 512
        %vm634 = vmand %vm630, %vm632
        %vm635 = vmand %vm631, %vm633
        %v636 = vsel %vm634, 1, 0
        %v637 = vsel %vm635, 1, 0
        %v638 = vcvt.s32.f32 %v636
        %v639 = vcvt.s32.f32 %v637
        %v640 = vmul.f32 %v614, %v638
        %v641 = vmul.f32 %v615, %v639
        %v642 = vmul.f32 %v616, %v638
        %v643 = vmul.f32 %v617, %v639
        %v644 = vmul.f32 %v618, %v638
        %v645 = vmul.f32 %v619, %v639
        %v646 = vmul.f32 %v620, %v638
        %v647 = vmul.f32 %v621, %v639
        %649 = vset.pattern.permute.xlu0 0
        %650 = vperm.xlu0 %649, %v426
        %v651 = vpop.permute.xlu0 %650
        %654 = vset.pattern.permute.xlu0 0
        %655 = vperm.xlu0 %654, %v427
        %v656 = vpop.permute.xlu0 %655
        %659 = vset.pattern.permute.xlu0 0
        %660 = vperm.xlu0 %659, %v428
        %v661 = vpop.permute.xlu0 %660
        %664 = vset.pattern.permute.xlu0 0
        %665 = vperm.xlu0 %664, %v429
        %v666 = vpop.permute.xlu0 %665
        %v668 = vmul.f32 %v651, %v640
        %v669 = vmul.f32 %v656, %v642
        %v670 = vmul.f32 %v661, %v644
        %v671 = vmul.f32 %v666, %v646
        %672 = vset.pattern.permute.xlu0 1
        %673 = vperm.xlu0 %672, %v426
        %v674 = vpop.permute.xlu0 %673
        %676 = vset.pattern.permute.xlu0 1
        %677 = vperm.xlu0 %676, %v427
        %v678 = vpop.permute.xlu0 %677
        %680 = vset.pattern.permute.xlu0 1
        %681 = vperm.xlu0 %680, %v428
        %v682 = vpop.permute.xlu0 %681
        %684 = vset.pattern.permute.xlu0 1
        %685 = vperm.xlu0 %684, %v429
        %v686 = vpop.permute.xlu0 %685
        %v688 = vmul.f32 %v674, %v640
        %v689 = vmul.f32 %v674, %v641
        %v690 = vmul.f32 %v678, %v642
        %v691 = vmul.f32 %v678, %v643
        %v692 = vmul.f32 %v682, %v644
        %v693 = vmul.f32 %v682, %v645
        %v694 = vmul.f32 %v686, %v646
        %v695 = vmul.f32 %v686, %v647
        %704 = vrot.lane.b32.xlu0 %v688, 126
        %v705 = vpop.permute.xlu0 %704
        %706 = vrot.lane.b32.xlu0 %v689, 126
        %v707 = vpop.permute.xlu0 %706
        %708 = vrot.lane.b32.xlu0 %v690, 126
        %v709 = vpop.permute.xlu0 %708
        %710 = vrot.lane.b32.xlu0 %v691, 126
        %v711 = vpop.permute.xlu0 %710
        %712 = vrot.lane.b32.xlu0 %v692, 126
        %v713 = vpop.permute.xlu0 %712
        %714 = vrot.lane.b32.xlu0 %v693, 126
        %v715 = vpop.permute.xlu0 %714
        %716 = vrot.lane.b32.xlu0 %v694, 126
        %v717 = vpop.permute.xlu0 %716
        %718 = vrot.lane.b32.xlu0 %v695, 126
        %v719 = vpop.permute.xlu0 %718
        %vm720 = vcmask 1031168
        %v721 = vsel %vm720, %v705, %v707
        %v722 = vsel %vm720, %v709, %v711
        %v723 = vsel %vm720, %v713, %v715
        %v724 = vsel %vm720, %v717, %v719
        %v729 = vadd.f32 %v668, %v721
        %v730 = vadd.f32 %v669, %v722
        %v731 = vadd.f32 %v670, %v723
        %v732 = vadd.f32 %v671, %v724
        %733 = vset.pattern.permute.xlu0 2
        %734 = vperm.xlu0 %733, %v426
        %v735 = vpop.permute.xlu0 %734
        %737 = vset.pattern.permute.xlu0 2
        %738 = vperm.xlu0 %737, %v427
        %v739 = vpop.permute.xlu0 %738
        %741 = vset.pattern.permute.xlu0 2
        %742 = vperm.xlu0 %741, %v428
        %v743 = vpop.permute.xlu0 %742
        %745 = vset.pattern.permute.xlu0 2
        %746 = vperm.xlu0 %745, %v429
        %v747 = vpop.permute.xlu0 %746
        %v749 = vmul.f32 %v735, %v640
        %v750 = vmul.f32 %v735, %v641
        %v751 = vmul.f32 %v739, %v642
        %v752 = vmul.f32 %v739, %v643
        %v753 = vmul.f32 %v743, %v644
        %v754 = vmul.f32 %v743, %v645
        %v755 = vmul.f32 %v747, %v646
        %v756 = vmul.f32 %v747, %v647
        %765 = vrot.lane.b32.xlu0 %v749, 124
        %v766 = vpop.permute.xlu0 %765
        %767 = vrot.lane.b32.xlu0 %v750, 124
        %v768 = vpop.permute.xlu0 %767
        %769 = vrot.lane.b32.xlu0 %v751, 124
        %v770 = vpop.permute.xlu0 %769
        %771 = vrot.lane.b32.xlu0 %v752, 124
        %v772 = vpop.permute.xlu0 %771
        %773 = vrot.lane.b32.xlu0 %v753, 124
        %v774 = vpop.permute.xlu0 %773
        %775 = vrot.lane.b32.xlu0 %v754, 124
        %v776 = vpop.permute.xlu0 %775
        %777 = vrot.lane.b32.xlu0 %v755, 124
        %v778 = vpop.permute.xlu0 %777
        %779 = vrot.lane.b32.xlu0 %v756, 124
        %v780 = vpop.permute.xlu0 %779
        %vm781 = vcmask 1014784
        %v782 = vsel %vm781, %v766, %v768
        %v783 = vsel %vm781, %v770, %v772
        %v784 = vsel %vm781, %v774, %v776
        %v785 = vsel %vm781, %v778, %v780
        %v790 = vadd.f32 %v729, %v782
        %v791 = vadd.f32 %v730, %v783
        %v792 = vadd.f32 %v731, %v784
        %v793 = vadd.f32 %v732, %v785
        %vm794 = vcmp.gt.f32.partialorder %v790, 0.0
        %vm795 = vcmp.gt.f32.partialorder %v791, 0.0
        %vm796 = vcmp.gt.f32.partialorder %v792, 0.0
        %vm797 = vcmp.gt.f32.partialorder %v793, 0.0
        %s798 = sld [smem:[#allocation2 + $0x1]]
        %v799 = vstv %s798
        %v800 = vmul.f32 %v799, %v790
        %v801 = vmul.f32 %v799, %v791
        %v802 = vmul.f32 %v799, %v792
        %v803 = vmul.f32 %v799, %v793
        %v804 = vsel %vm794, %v790, %v800
        %v805 = vsel %vm795, %v791, %v801
        %v806 = vsel %vm796, %v792, %v802
        %v807 = vsel %vm797, %v793, %v803
        %808 = vadd.xlane.f32.xlu0 %v804
        %v809 = vpop.xlane.xlu0 %808
        %810 = vadd.xlane.f32.xlu0 %v805
        %v811 = vpop.xlane.xlu0 %810
        %812 = vadd.xlane.f32.xlu0 %v806
        %v813 = vpop.xlane.xlu0 %812
        %814 = vadd.xlane.f32.xlu0 %v807
        %v815 = vpop.xlane.xlu0 %814
        %v816 = vmul.f32 %v804, %v804
        %v817 = vmul.f32 %v805, %v805
        %v818 = vmul.f32 %v806, %v806
        %v819 = vmul.f32 %v807, %v807
        %820 = vadd.xlane.f32.xlu0 %v816
        %v821 = vpop.xlane.xlu0 %820
        %822 = vadd.xlane.f32.xlu0 %v817
        %v823 = vpop.xlane.xlu0 %822
        %824 = vadd.xlane.f32.xlu0 %v818
        %v825 = vpop.xlane.xlu0 %824
        %826 = vadd.xlane.f32.xlu0 %v819
        %v827 = vpop.xlane.xlu0 %826
        %v828 = vld [vmem:[%s403] sm:$0xff]
        %v829 = vld [vmem:[%s403 + $0x8] sm:$0xff]
        %v830 = vld [vmem:[%s403 + $0x10] sm:$0xff]
        %v831 = vld [vmem:[%s403 + $0x18] sm:$0xff]
        %vm832 = vcmask 7168
        %v833 = vsel %vm832, %v809, %v821
        %v834 = vsel %vm832, %v811, %v823
        %v835 = vsel %vm832, %v813, %v825
        %v836 = vsel %vm832, %v815, %v827
        %v837 = vadd.f32 %v828, %v833
        %v838 = vadd.f32 %v829, %v834
        %v839 = vadd.f32 %v830, %v835
        %v840 = vadd.f32 %v831, %v836
        %841 = vst.msk [vmem:[%s403] sm:$0xff] %vm438, %v837
        %842 = vst.msk [vmem:[%s403 + $0x8] sm:$0xff] %vm438, %v838
        %843 = vst.msk [vmem:[%s403 + $0x10] sm:$0xff] %vm438, %v839
        %844 = vst.msk [vmem:[%s403 + $0x18] sm:$0xff] %vm438, %v840
        %p845 = scmp.lt.s32.totalorder %s22, 7
        %s846 = scalar_select %p845, %s22, 7
        %s847 = smul.addr %s846, 4
        %s848 = smul.addr %s847, 8
        %s849 = scalar_lea.vmem %s6, %s848
        // Predicated region
        $region129: #{tcn_layer.4} parent=111 // pred_check
          %p850 = pneg %p193
        $region130: #{tcn_layer.4} parent=111 // pred_check_branch
          %852 = sbr.rel (%p850) target = $region132
        $region131: #{tcn_layer.4} parent=111 // pred_region
          _
        $region132: #{tcn_layer.4} parent=111 // pred_fallthru
          _
      $region112: #{tcn_layer.4} parent=5 // pred_fallthru
        _
      %p853 = scmp.le.s32.totalorder 2, %s13
      // Predicated region
      $region133: #{tcn_layer.4} parent=5 // pred_check
        %p854 = pneg %p853
      $region134: #{tcn_layer.4} parent=5 // pred_check_branch
        %856 = sbr.rel (%p854) target = $region136
      $region135: #{tcn_layer.4} parent=5 // pred_region
        %s857 = ssub.s32 %s13, 2
        // Predicated region
        $region137: #{tcn_layer.4} parent=135 // pred_check
          %p858 = pneg %p199
        $region138: #{tcn_layer.4} parent=135 // pred_check_branch
          %860 = sbr.rel (%p858) target = $region140
        $region139: #{tcn_layer.4} parent=135 // pred_region
          %p861 = scmp.lt.s32.totalorder %s24, 7
          %s862 = scalar_select %p861, %s24, 7
          %s863 = smul.addr %s862, 4
          %s864 = smul.addr %s863, 8
          %s865 = scalar_lea.vmem %s6, %s864
        $region140: #{tcn_layer.4} parent=135 // pred_fallthru
          _
      $region136: #{tcn_layer.4} parent=5 // pred_fallthru
        _
    $region6: #{tcn_layer.4} parent=1 // loop_footer
      %s17 = sadd.s32 1, %s13
    $region7: #{tcn_layer.4} parent=1 // loop_footer_branch
      %12 = sbr.rel target = $region3
    $region8: #{tcn_layer.4} parent=1 // loop_exit
      _
    %866 = vsyncpa [#allocation3], 1
    %s867 = scalar_lea.sflag [#allocation3], 1
    %868 = vsyncpa %s867, 1

// kernel: tcn_layer.5
$region0: #{tcn_layer.5}
  #allocation0 [shape = 'u32[]', space=smem, size = 0x4, offset = 0x4, fixed_abs, tag = 'smem constant byte address 0x4 - core index']
  #allocation1 [shape = 'u32[144,128]{1,0:T(1,128)}', space=vmem, size = 0x12000, scoped, tag = 'internal scratch']
  %s0 = inlined_call_operand.vmem [shape: f32[2], index: 0, kind: input, shape index: {}]
  %s1 = inlined_call_operand.vmem [shape: f32[8,16,512], index: 1, kind: input, shape index: {}]
  %s2 = inlined_call_operand.vmem [shape: f32[8,16,512], index: 2, kind: input, shape index: {}]
  %s3 = inlined_call_operand.vmem [shape: f32[32,16], index: 3, kind: input, shape index: {}]
  %s4 = inlined_call_operand.vmem [shape: f32[32,3], index: 4, kind: input, shape index: {}]
  %s5 = inlined_call_operand.vmem [shape: f32[8,32,2], index: 5, kind: input, shape index: {}]
  %s6 = inlined_call_operand.vmem [shape: f32[8,32,2], index: 6, kind: input, shape index: {}]
  %s7 = inlined_call_operand.vmem [shape: f32[32,32], index: 7, kind: input, shape index: {}]
  %s8 = inlined_call_operand.vmem [shape: f32[32,1], index: 8, kind: input, shape index: {}]
  %s9 = inlined_call_operand.hbm [shape: f32[8,16,512], index: 9, kind: output, shape index: {0}]
  %s10 = inlined_call_operand.hbm [shape: f32[8,16,512], index: 10, kind: output, shape index: {1}]
  %11 = xla_tuple %s9, %s10
  %s12 = sld [smem:[#allocation0]]
  $region157: #{tcn_layer.5} parent=0
    _
  %s14 = ssub.s32 1, %s12
  %s15 = scalar_select 0, %s14, %s12
  $region1: #{tcn_layer.5} parent=0
    #allocation2 [shape = 'u8[512]{0}', space=smem, size = 0x200, scoped, tag = 'input window, operand 0, single buffered']
    #allocation3 [shape = 's32[2]{0}', space=sflag, size = 0x8, scoped, tag = 'scoped memory for tcn_layer.5']
    #allocation4 [shape = 's32[2]{0}', space=sflag, size = 0x8, scoped, tag = 'scoped memory for tcn_layer.5']
    #allocation5 [shape = 'u8[16384]{0}', space=vmem, size = 0x4000, scoped, tag = 'input window, operand 1']
    #allocation6 [shape = 'u8[16384]{0}', space=vmem, size = 0x4000, scoped, tag = 'input window, operand 2']
    #allocation7 [shape = 'u8[16384]{0}', space=vmem, size = 0x4000, scoped, tag = 'output window, operand 0']
    #allocation8 [shape = 'u8[16384]{0}', space=vmem, size = 0x4000, scoped, tag = 'output window, operand 1']
    #allocation9 [shape = 's32[2]{0}', space=sflag, size = 0x8, scoped, tag = 'scoped memory for tcn_layer.5']
    %16 = vsyncpa [#allocation4], 0
    %17 = vsyncpa [#allocation3], 0
    %s18 = scalar_lea.sflag [#allocation3], 1
    %19 = vsyncpa %s18, 0
    %20 = vsyncpa [#allocation9], 0
    %s21 = scalar_lea.sflag [#allocation9], 1
    %22 = vsyncpa %s21, 0
    loop: start=0, step=1, limit=34
    $region2: #{tcn_layer.5} parent=1 // loop_pre_header
      _
    $region3: #{tcn_layer.5} parent=1 // loop_header
      %s24 = sphi 0, %s28
      %p25 = scmp.ge.s32.totalorder %s24, 34
      %s31 = sphi 0, %s43
      %s32 = sphi 0, %s39
      %s33 = sphi 0, %s31
      %s34 = sphi 0, %s32
      %s35 = sphi 0, %s33
      %s36 = sphi 0, %s34
      %s44 = sphi 0, %s44
      %s46 = sphi 0, %s44
      %s47 = sphi 0, %s46
      %s61 = sphi 0, %s47
      %s69 = sphi 0, %s71
      %s72 = sphi 0, %s69
      %s73 = sphi 0, %s72
      %s89 = sphi 0, %s73
      %s97 = sphi 0, %s99
      %s100 = sphi 0, %s97
      %s101 = sphi 0, %s100
      %s117 = sphi 0, %s101
      %s121 = sphi 0, %s121
      %s123 = sphi 0, %s121
      %s124 = sphi 0, %s123
      %s138 = sphi 0, %s124
      %s142 = sphi 0, %s142
      %s144 = sphi 0, %s142
      %s145 = sphi 0, %s144
      %s159 = sphi 0, %s145
      %s165 = sphi 0, %s167
      %s168 = sphi 0, %s165
      %s169 = sphi 0, %s168
      %s185 = sphi 0, %s169
      %s191 = sphi 0, %s193
      %s194 = sphi 0, %s191
      %s195 = sphi 0, %s194
      %s211 = sphi 0, %s195
      %s215 = sphi 0, %s215
      %s217 = sphi 0, %s215
      %s218 = sphi 0, %s217
      %s232 = sphi 0, %s218
      %s236 = sphi 0, %s236
      %s238 = sphi 0, %s236
      %s239 = sphi 0, %s238
      %s253 = sphi 0, %s239
      %s261 = sphi 0, %s263
      %s264 = sphi 0, %s261
      %s265 = sphi 0, %s264
      %s281 = sphi 0, %s265
      %s289 = sphi 0, %s291
      %s292 = sphi 0, %s289
      %s293 = sphi 0, %s292
      %s309 = sphi 0, %s293
    $region4: #{tcn_layer.5} parent=1 // loop_header_branch
      %27 = sbr.rel (%p25) target = $region8
    $region5: #{tcn_layer.5} parent=1 // loop_body
      %s29 = ssub.s32 %s24, 1
      %s30 = ssub.s32 %s24, 2
      %s37 = sadd.s32 1, %s32
      %p38 = scmp.ge.s32.totalorder %s37, 4
      %s39 = scalar_select %p38, 0, %s37
      %s40 = sadd.s32 1, %s31
      %s41 = scalar_select %p38, %s40, %s31
      %p42 = scmp.ge.s32.totalorder %s41, 8
      %s43 = scalar_select %p42, 0, %s41
      %s45 = sadd.s32 %s44, 1
      %p48 = scmp.eq.s32.totalorder %s24, 31
      %p49 = scmp.ne.s32.totalorder %s44, %s46
      %p50 = scmp.eq.s32.totalorder %s24, 0
      %p51 = por %p49, %p50
      %p52 = scmp.ne.s32.totalorder %s44, %s46
      %p53 = scmp.eq.s32.totalorder %s29, 31
      %p54 = por %p52, %p53
      %p55 = scmp.ne.s32.totalorder %s46, %s47
      %p56 = scmp.eq.s32.totalorder %s29, 0
      %p57 = por %p55, %p56
      %p58 = scmp.ne.s32.totalorder %s46, %s47
      %p59 = scmp.eq.s32.totalorder %s30, 31
      %p60 = por %p58, %p59
      %p62 = scmp.ne.s32.totalorder %s47, %s61
      %p63 = scmp.eq.s32.totalorder %s30, 0
      %p64 = por %p62, %p63
      %s65 = ssub.s32 %s31, %s43
      %s66 = ssub.s32 %s32, %s39
      %s67 = sor.u32 %s65, %s66
      %p68 = scmp.eq.s32.totalorder %s67, 0
      %s70 = sadd.s32 %s69, 1
      %s71 = scalar_select %p68, %s69, %s70
      %p74 = pneg %p68
      %p75 = scmp.eq.s32.totalorder %s24, 31
      %p76 = por %p74, %p75
      %p77 = scmp.ne.s32.totalorder %s69, %s72
      %p78 = scmp.eq.s32.totalorder %s24, 0
      %p79 = por %p77, %p78
      %p80 = scmp.ne.s32.totalorder %s69, %s72
      %p81 = scmp.eq.s32.totalorder %s29, 31
      %p82 = por %p80, %p81
      %p83 = scmp.ne.s32.totalorder %s72, %s73
      %p84 = scmp.eq.s32.totalorder %s29, 0
      %p85 = por %p83, %p84
      %p86 = scmp.ne.s32.totalorder %s72, %s73
      %p87 = scmp.eq.s32.totalorder %s30, 31
      %p88 = por %p86, %p87
      %p90 = scmp.ne.s32.totalorder %s73, %s89
      %p91 = scmp.eq.s32.totalorder %s30, 0
      %p92 = por %p90, %p91
      %s93 = ssub.s32 %s31, %s43
      %s94 = ssub.s32 %s32, %s39
      %s95 = sor.u32 %s93, %s94
      %p96 = scmp.eq.s32.totalorder %s95, 0
      %s98 = sadd.s32 %s97, 1
      %s99 = scalar_select %p96, %s97, %s98
      %p102 = pneg %p96
      %p103 = scmp.eq.s32.totalorder %s24, 31
      %p104 = por %p102, %p103
      %p105 = scmp.ne.s32.totalorder %s97, %s100
      %p106 = scmp.eq.s32.totalorder %s24, 0
      %p107 = por %p105, %p106
      %p108 = scmp.ne.s32.totalorder %s97, %s100
      %p109 = scmp.eq.s32.totalorder %s29, 31
      %p110 = por %p108, %p109
      %p111 = scmp.ne.s32.totalorder %s100, %s101
      %p112 = scmp.eq.s32.totalorder %s29, 0
      %p113 = por %p111, %p112
      %p114 = scmp.ne.s32.totalorder %s100, %s101
      %p115 = scmp.eq.s32.totalorder %s30, 31
      %p116 = por %p114, %p115
      %p118 = scmp.ne.s32.totalorder %s101, %s117
      %p119 = scmp.eq.s32.totalorder %s30, 0
      %p120 = por %p118, %p119
      %s122 = sadd.s32 %s121, 1
      %p125 = scmp.eq.s32.totalorder %s24, 31
      %p126 = scmp.ne.s32.totalorder %s121, %s123
      %p127 = scmp.eq.s32.totalorder %s24, 0
      %p128 = por %p126, %p127
      %p129 = scmp.ne.s32.totalorder %s121, %s123
      %p130 = scmp.eq.s32.totalorder %s29, 31
      %p131 = por %p129, %p130
      %p132 = scmp.ne.s32.totalorder %s123, %s124
      %p133 = scmp.eq.s32.totalorder %s29, 0
      %p134 = por %p132, %p133
      %p135 = scmp.ne.s32.totalorder %s123, %s124
      %p136 = scmp.eq.s32.totalorder %s30, 31
      %p137 = por %p135, %p136
      %p139 = scmp.ne.s32.totalorder %s124, %s138
      %p140 = scmp.eq.s32.totalorder %s30, 0
      %p141 = por %p139, %p140
      %s143 = sadd.s32 %s142, 1
      %p146 = scmp.eq.s32.totalorder %s24, 31
      %p147 = scmp.ne.s32.totalorder %s142, %s144
      %p148 = scmp.eq.s32.totalorder %s24, 0
      %p149 = por %p147, %p148
      %p150 = scmp.ne.s32.totalorder %s142, %s144
      %p151 = scmp.eq.s32.totalorder %s29, 31
      %p152 = por %p150, %p151
      %p153 = scmp.ne.s32.totalorder %s144, %s145
      %p154 = scmp.eq.s32.totalorder %s29, 0
      %p155 = por %p153, %p154
      %p156 = scmp.ne.s32.totalorder %s144, %s145
      %p157 = scmp.eq.s32.totalorder %s30, 31
      %p158 = por %p156, %p157
      %p160 = scmp.ne.s32.totalorder %s145, %s159
      %p161 = scmp.eq.s32.totalorder %s30, 0
      %p162 = por %p160, %p161
      %s163 = ssub.s32 %s31, %s43
      %p164 = scmp.eq.s32.totalorder %s163, 0
      %s166 = sadd.s32 %s165, 1
      %s167 = scalar_select %p164, %s165, %s166
      %p170 = pneg %p164
      %p171 = scmp.eq.s32.totalorder %s24, 31
      %p172 = por %p170, %p171
      %p173 = scmp.ne.s32.totalorder %s165, %s168
      %p174 = scmp.eq.s32.totalorder %s24, 0
      %p175 = por %p173, %p174
      %p176 = scmp.ne.s32.totalorder %s165, %s168
      %p177 = scmp.eq.s32.totalorder %s29, 31
      %p178 = por %p176, %p177
      %p179 = scmp.ne.s32.totalorder %s168, %s169
      %p180 = scmp.eq.s32.totalorder %s29, 0
      %p181 = por %p179, %p180
      %p182 = scmp.ne.s32.totalorder %s168, %s169
      %p183 = scmp.eq.s32.totalorder %s30, 31
      %p184 = por %p182, %p183
      %p186 = scmp.ne.s32.totalorder %s169, %s185
      %p187 = scmp.eq.s32.totalorder %s30, 0
      %p188 = por %p186, %p187
      %s189 = ssub.s32 %s31, %s43
      %p190 = scmp.eq.s32.totalorder %s189, 0
      %s192 = sadd.s32 %s191, 1
      %s193 = scalar_select %p190, %s191, %s192
      %p196 = pneg %p190
      %p197 = scmp.eq.s32.totalorder %s24, 31
      %p198 = por %p196, %p197
      %p199 = scmp.ne.s32.totalorder %s191, %s194
      %p200 = scmp.eq.s32.totalorder %s24, 0
      %p201 = por %p199, %p200
      %p202 = scmp.ne.s32.totalorder %s191, %s194
      %p203 = scmp.eq.s32.totalorder %s29, 31
      %p204 = por %p202, %p203
      %p205 = scmp.ne.s32.totalorder %s194, %s195
      %p206 = scmp.eq.s32.totalorder %s29, 0
      %p207 = por %p205, %p206
      %p208 = scmp.ne.s32.totalorder %s194, %s195
      %p209 = scmp.eq.s32.totalorder %s30, 31
      %p210 = por %p208, %p209
      %p212 = scmp.ne.s32.totalorder %s195, %s211
      %p213 = scmp.eq.s32.totalorder %s30, 0
      %p214 = por %p212, %p213
      %s216 = sadd.s32 %s215, 1
      %p219 = scmp.eq.s32.totalorder %s24, 31
      %p220 = scmp.ne.s32.totalorder %s215, %s217
      %p221 = scmp.eq.s32.totalorder %s24, 0
      %p222 = por %p220, %p221
      %p223 = scmp.ne.s32.totalorder %s215, %s217
      %p224 = scmp.eq.s32.totalorder %s29, 31
      %p225 = por %p223, %p224
      %p226 = scmp.ne.s32.totalorder %s217, %s218
      %p227 = scmp.eq.s32.totalorder %s29, 0
      %p228 = por %p226, %p227
      %p229 = scmp.ne.s32.totalorder %s217, %s218
      %p230 = scmp.eq.s32.totalorder %s30, 31
      %p231 = por %p229, %p230
      %p233 = scmp.ne.s32.totalorder %s218, %s232
      %p234 = scmp.eq.s32.totalorder %s30, 0
      %p235 = por %p233, %p234
      %s237 = sadd.s32 %s236, 1
      %p240 = scmp.eq.s32.totalorder %s24, 31
      %p241 = scmp.ne.s32.totalorder %s236, %s238
      %p242 = scmp.eq.s32.totalorder %s24, 0
      %p243 = por %p241, %p242
      %p244 = scmp.ne.s32.totalorder %s236, %s238
      %p245 = scmp.eq.s32.totalorder %s29, 31
      %p246 = por %p244, %p245
      %p247 = scmp.ne.s32.totalorder %s238, %s239
      %p248 = scmp.eq.s32.totalorder %s29, 0
      %p249 = por %p247, %p248
      %p250 = scmp.ne.s32.totalorder %s238, %s239
      %p251 = scmp.eq.s32.totalorder %s30, 31
      %p252 = por %p250, %p251
      %p254 = scmp.ne.s32.totalorder %s239, %s253
      %p255 = scmp.eq.s32.totalorder %s30, 0
      %p256 = por %p254, %p255
      %s257 = ssub.s32 %s31, %s43
      %s258 = ssub.s32 %s32, %s39
      %s259 = sor.u32 %s257, %s258
      %p260 = scmp.eq.s32.totalorder %s259, 0
      %s262 = sadd.s32 %s261, 1
      %s263 = scalar_select %p260, %s261, %s262
      %p266 = pneg %p260
      %p267 = scmp.eq.s32.totalorder %s24, 31
      %p268 = por %p266, %p267
      %p269 = scmp.ne.s32.totalorder %s261, %s264
      %p270 = scmp.eq.s32.totalorder %s24, 0
      %p271 = por %p269, %p270
      %p272 = scmp.ne.s32.totalorder %s261, %s264
      %p273 = scmp.eq.s32.totalorder %s29, 31
      %p274 = por %p272, %p273
      %p275 = scmp.ne.s32.totalorder %s264, %s265
      %p276 = scmp.eq.s32.totalorder %s29, 0
      %p277 = por %p275, %p276
      %p278 = scmp.ne.s32.totalorder %s264, %s265
      %p279 = scmp.eq.s32.totalorder %s30, 31
      %p280 = por %p278, %p279
      %p282 = scmp.ne.s32.totalorder %s265, %s281
      %p283 = scmp.eq.s32.totalorder %s30, 0
      %p284 = por %p282, %p283
      %s285 = ssub.s32 %s31, %s43
      %s286 = ssub.s32 %s32, %s39
      %s287 = sor.u32 %s285, %s286
      %p288 = scmp.eq.s32.totalorder %s287, 0
      %s290 = sadd.s32 %s289, 1
      %s291 = scalar_select %p288, %s289, %s290
      %p294 = pneg %p288
      %p295 = scmp.eq.s32.totalorder %s24, 31
      %p296 = por %p294, %p295
      %p297 = scmp.ne.s32.totalorder %s289, %s292
      %p298 = scmp.eq.s32.totalorder %s24, 0
      %p299 = por %p297, %p298
      %p300 = scmp.ne.s32.totalorder %s289, %s292
      %p301 = scmp.eq.s32.totalorder %s29, 31
      %p302 = por %p300, %p301
      %p303 = scmp.ne.s32.totalorder %s292, %s293
      %p304 = scmp.eq.s32.totalorder %s29, 0
      %p305 = por %p303, %p304
      %p306 = scmp.ne.s32.totalorder %s292, %s293
      %p307 = scmp.eq.s32.totalorder %s30, 31
      %p308 = por %p306, %p307
      %p310 = scmp.ne.s32.totalorder %s293, %s309
      %p311 = scmp.eq.s32.totalorder %s30, 0
      %p312 = por %p310, %p311
      %p313 = scmp.le.s32.totalorder 1, %s24
      %p314 = scmp.lt.s32.totalorder %s24, 33
      %p315 = pnand %p313, %p314
      %p316 = pneg %p315
      // Predicated region
      $region9: #{tcn_layer.5} parent=5 // pred_check
        _
      $region10: #{tcn_layer.5} parent=5 // pred_check_branch
        %318 = sbr.rel (%p315) target = $region12
      $region11: #{tcn_layer.5} parent=5 // pred_region
        %s319 = ssub.s32 %s24, 1
        // Predicated region
        $region13: #{tcn_layer.5} parent=11 // pred_check
          %p320 = pneg %p57
        $region14: #{tcn_layer.5} parent=11 // pred_check_branch
          %322 = sbr.rel (%p320) target = $region16
        $region15: #{tcn_layer.5} parent=11 // pred_region
          %s324 = ssub.s32 16, 16
          %325 = vsyncadd [#allocation4], %s324
          %s327 = sshll.u32 %s0, 4
          %s328 = int_to_ptr.vmem [resolvable:$true] %s327
          %330 = dma.vmem_to_smem %s328, 16, [#allocation2], [#allocation4]
        $region16: #{tcn_layer.5} parent=11 // pred_fallthru
          _
        // Predicated region
        $region17: #{tcn_layer.5} parent=11 // pred_check
          %p331 = pneg %p134
        $region18: #{tcn_layer.5} parent=11 // pred_check_branch
          %333 = sbr.rel (%p331) target = $region20
        $region19: #{tcn_layer.5} parent=11 // pred_region
          _
        $region20: #{tcn_layer.5} parent=11 // pred_fallthru
          _
        // Predicated region
        $region21: #{tcn_layer.5} parent=11 // pred_check
          %p334 = pneg %p155
        $region22: #{tcn_layer.5} parent=11 // pred_check_branch
          %336 = sbr.rel (%p334) target = $region24
        $region23: #{tcn_layer.5} parent=11 // pred_region
          _
        $region24: #{tcn_layer.5} parent=11 // pred_fallthru
          _
        // Predicated region
        $region25: #{tcn_layer.5} parent=11 // pred_check
          %p337 = pneg %p228
        $region26: #{tcn_layer.5} parent=11 // pred_check_branch
          %339 = sbr.rel (%p337) target = $region28
        $region27: #{tcn_layer.5} parent=11 // pred_region
          _
        $region28: #{tcn_layer.5} parent=11 // pred_fallthru
          _
        // Predicated region
        $region29: #{tcn_layer.5} parent=11 // pred_check
          %p340 = pneg %p249
        $region30: #{tcn_layer.5} parent=11 // pred_check_branch
          %342 = sbr.rel (%p340) target = $region32
        $region31: #{tcn_layer.5} parent=11 // pred_region
          _
        $region32: #{tcn_layer.5} parent=11 // pred_fallthru
          _
      $region12: #{tcn_layer.5} parent=5 // pred_fallthru
        _
      %p343 = scmp.lt.s32.totalorder %s24, 32
      // Predicated region
      $region33: #{tcn_layer.5} parent=5 // pred_check
        %p344 = pneg %p343
      $region34: #{tcn_layer.5} parent=5 // pred_check_branch
        %346 = sbr.rel (%p344) target = $region36
      $region35: #{tcn_layer.5} parent=5 // pred_region
        // Predicated region
        $region37: #{tcn_layer.5} parent=35 // pred_check
          %p347 = pneg %p79
        $region38: #{tcn_layer.5} parent=35 // pred_check_branch
          %349 = sbr.rel (%p347) target = $region40
        $region39: #{tcn_layer.5} parent=35 // pred_region
          %s350 = sand.u32 %s69, 1
          %s351 = sand.u32 %s69, 1
          %s352 = smul.addr %s351, 16
          %s353 = scalar_lea.vmem [#allocation5], %s352
          %s354 = smul.addr %s31, 8
          %s355 = sadd.s32 %s32, %s354
          %s356 = smul.addr %s355, 8
          %s357 = scalar_lea.vmem %s1, %s356
          // Predicated region
          $region41: #{tcn_layer.5} parent=39 // pred_check
            _
          $region42: #{tcn_layer.5} parent=39 // pred_check_branch
            %359 = sbr.rel (0) target = $region44
          $region43: #{tcn_layer.5} parent=39 // pred_region
            // Predicated region
            $region45: #{tcn_layer.5} parent=43 // pred_check
              _
            $region46: #{tcn_layer.5} parent=43 // pred_check_branch
              %361 = sbr.rel (0) target = $region48
            $region47: #{tcn_layer.5} parent=43 // pred_region
              // Predicated region
              $region60: #{tcn_layer.5} parent=47 // pred_check
                _
              $region61: #{tcn_layer.5} parent=47 // pred_check_branch
                %379 = sbr.rel (0) target = $region63
              $region62: #{tcn_layer.5} parent=47 // pred_region
                loop: start=0, step=1, limit=1
                $region64: #{tcn_layer.5} parent=62 // loop_pre_header
                  _
                $region65: #{tcn_layer.5} parent=62 // loop_header
                  %s381 = sphi 0, %s385
                  %p382 = scmp.ge.s32.totalorder %s381, 1
                  %s386 = sphi %s357, %s357
                  %s387 = sphi %s353, %s353
                $region66: #{tcn_layer.5} parent=62 // loop_header_branch
                  %384 = sbr.rel (%p382) target = $region70
                $region67: #{tcn_layer.5} parent=62 // loop_body
                  %v388 = vld [vmem:[%s386] sm:$0xff]
                  %389 = vst [vmem:[%s387] sm:$0xff] %v388
                  %v390 = vld [vmem:[%s386 + $0x20] sm:$0xff]
                  %391 = vst [vmem:[%s387 + $0x8] sm:$0xff] %v390
                $region68: #{tcn_layer.5} parent=62 // loop_footer
                  %s385 = sadd.s32 1, %s381
                $region69: #{tcn_layer.5} parent=62 // loop_footer_branch
                  %380 = sbr.rel target = $region65
                $region70: #{tcn_layer.5} parent=62 // loop_exit
                  _
              $region63: #{tcn_layer.5} parent=47 // pred_fallthru
                _
              // Predicated region
              $region71: #{tcn_layer.5} parent=47 // pred_check
                _
              $region72: #{tcn_layer.5} parent=47 // pred_check_branch
                %393 = sbr.rel target = $region74
              $region73: #{tcn_layer.5} parent=47 // pred_region
                _
              $region74: #{tcn_layer.5} parent=47 // pred_fallthru
                _
            $region48: #{tcn_layer.5} parent=43 // pred_fallthru
              _
            // Predicated region
            $region49: #{tcn_layer.5} parent=43 // pred_check
              _
            $region50: #{tcn_layer.5} parent=43 // pred_check_branch
              %363 = sbr.rel target = $region52
            $region51: #{tcn_layer.5} parent=43 // pred_region
              %s365 = ssub.s32 256, 1
              loop: start=0, step=1, limit=1
              $region53: #{tcn_layer.5} parent=51 // loop_pre_header
                _
              $region54: #{tcn_layer.5} parent=51 // loop_header
                %s367 = sphi 0, %s371
                %p368 = scmp.ge.s32.totalorder %s367, 1
                %s372 = sphi %s357, %s357
                %s373 = sphi %s353, %s353
              $region55: #{tcn_layer.5} parent=51 // loop_header_branch
                %370 = sbr.rel (%p368) target = $region59
              $region56: #{tcn_layer.5} parent=51 // loop_body
                %v374 = vld [vmem:[%s372] sm:%s365]
                %375 = vst [vmem:[%s373] sm:%s365] %v374
                %v376 = vld [vmem:[%s372 + $0x20] sm:%s365]
                %377 = vst [vmem:[%s373 + $0x8] sm:%s365] %v376
              $region57: #{tcn_layer.5} parent=51 // loop_footer
                %s371 = sadd.s32 1, %s367
              $region58: #{tcn_layer.5} parent=51 // loop_footer_branch
                %366 = sbr.rel target = $region54
              $region59: #{tcn_layer.5} parent=51 // loop_exit
                _
            $region52: #{tcn_layer.5} parent=43 // pred_fallthru
              _
          $region44: #{tcn_layer.5} parent=39 // pred_fallthru
            _
          %394 = vnop
        $region40: #{tcn_layer.5} parent=35 // pred_fallthru
          _
        // Predicated region
        $region75: #{tcn_layer.5} parent=35 // pred_check
          %p395 = pneg %p107
        $region76: #{tcn_layer.5} parent=35 // pred_check_branch
          %397 = sbr.rel (%p395) target = $region78
        $region77: #{tcn_layer.5} parent=35 // pred_region
          %s398 = sand.u32 %s97, 1
          %s399 = sand.u32 %s97, 1
          %s400 = smul.addr %s399, 16
          %s401 = scalar_lea.vmem [#allocation6], %s400
          %s402 = smul.addr %s31, 8
          %s403 = sadd.s32 %s32, %s402
          %s404 = smul.addr %s403, 8
          %s405 = scalar_lea.vmem %s2, %s404
          // Predicated region
          $region79: #{tcn_layer.5} parent=77 // pred_check
            _
          $region80: #{tcn_layer.5} parent=77 // pred_check_branch
            %407 = sbr.rel (0) target = $region82
          $region81: #{tcn_layer.5} parent=77 // pred_region
            // Predicated region
            $region83: #{tcn_layer.5} parent=81 // pred_check
              _
            $region84: #{tcn_layer.5} parent=81 // pred_check_branch
              %409 = sbr.rel (0) target = $region86
            $region85: #{tcn_layer.5} parent=81 // pred_region
              // Predicated region
              $region98: #{tcn_layer.5} parent=85 // pred_check
                _
              $region99: #{tcn_layer.5} parent=85 // pred_check_branch
                %427 = sbr.rel (0) target = $region101
              $region100: #{tcn_layer.5} parent=85 // pred_region
                loop: start=0, step=1, limit=1
                $region102: #{tcn_layer.5} parent=100 // loop_pre_header
                  _
                $region103: #{tcn_layer.5} parent=100 // loop_header
                  %s429 = sphi 0, %s433
                  %p430 = scmp.ge.s32.totalorder %s429, 1
                  %s434 = sphi %s405, %s405
                  %s435 = sphi %s401, %s401
                $region104: #{tcn_layer.5} parent=100 // loop_header_branch
                  %432 = sbr.rel (%p430) target = $region108
                $region105: #{tcn_layer.5} parent=100 // loop_body
                  %v436 = vld [vmem:[%s434] sm:$0xff]
                  %437 = vst [vmem:[%s435] sm:$0xff] %v436
                  %v438 = vld [vmem:[%s434 + $0x20] sm:$0xff]
                  %439 = vst [vmem:[%s435 + $0x8] sm:$0xff] %v438
                $region106: #{tcn_layer.5} parent=100 // loop_footer
                  %s433 = sadd.s32 1, %s429
                $region107: #{tcn_layer.5} parent=100 // loop_footer_branch
                  %428 = sbr.rel target = $region103
                $region108: #{tcn_layer.5} parent=100 // loop_exit
                  _
              $region101: #{tcn_layer.5} parent=85 // pred_fallthru
                _
              // Predicated region
              $region109: #{tcn_layer.5} parent=85 // pred_check
                _
              $region110: #{tcn_layer.5} parent=85 // pred_check_branch
                %441 = sbr.rel target = $region112
              $region111: #{tcn_layer.5} parent=85 // pred_region
                _
              $region112: #{tcn_layer.5} parent=85 // pred_fallthru
                _
            $region86: #{tcn_layer.5} parent=81 // pred_fallthru
              _
            // Predicated region
            $region87: #{tcn_layer.5} parent=81 // pred_check
              _
            $region88: #{tcn_layer.5} parent=81 // pred_check_branch
              %411 = sbr.rel target = $region90
            $region89: #{tcn_layer.5} parent=81 // pred_region
              %s413 = ssub.s32 256, 1
              loop: start=0, step=1, limit=1
              $region91: #{tcn_layer.5} parent=89 // loop_pre_header
                _
              $region92: #{tcn_layer.5} parent=89 // loop_header
                %s415 = sphi 0, %s419
                %p416 = scmp.ge.s32.totalorder %s415, 1
                %s420 = sphi %s405, %s405
                %s421 = sphi %s401, %s401
              $region93: #{tcn_layer.5} parent=89 // loop_header_branch
                %418 = sbr.rel (%p416) target = $region97
              $region94: #{tcn_layer.5} parent=89 // loop_body
                %v422 = vld [vmem:[%s420] sm:%s413]
                %423 = vst [vmem:[%s421] sm:%s413] %v422
                %v424 = vld [vmem:[%s420 + $0x20] sm:%s413]
                %425 = vst [vmem:[%s421 + $0x8] sm:%s413] %v424
              $region95: #{tcn_layer.5} parent=89 // loop_footer
                %s419 = sadd.s32 1, %s415
              $region96: #{tcn_layer.5} parent=89 // loop_footer_branch
                %414 = sbr.rel target = $region92
              $region97: #{tcn_layer.5} parent=89 // loop_exit
                _
            $region90: #{tcn_layer.5} parent=81 // pred_fallthru
              _
          $region82: #{tcn_layer.5} parent=77 // pred_fallthru
            _
          %442 = vnop
        $region78: #{tcn_layer.5} parent=35 // pred_fallthru
          _
        // Predicated region
        $region113: #{tcn_layer.5} parent=35 // pred_check
          %p443 = pneg %p175
        $region114: #{tcn_layer.5} parent=35 // pred_check_branch
          %445 = sbr.rel (%p443) target = $region116
        $region115: #{tcn_layer.5} parent=35 // pred_region
          %p446 = scmp.lt.s32.totalorder %s31, 7
          %s447 = scalar_select %p446, %s31, 7
          %s448 = smul.addr %s447, 4
          %s449 = smul.addr %s448, 8
          %s450 = scalar_lea.vmem %s5, %s449
        $region116: #{tcn_layer.5} parent=35 // pred_fallthru
          _
        // Predicated region
        $region117: #{tcn_layer.5} parent=35 // pred_check
          %p451 = pneg %p201
        $region118: #{tcn_layer.5} parent=35 // pred_check_branch
          %453 = sbr.rel (%p451) target = $region120
        $region119: #{tcn_layer.5} parent=35 // pred_region
          %p454 = scmp.lt.s32.totalorder %s31, 7
          %s455 = scalar_select %p454, %s31, 7
          %s456 = smul.addr %s455, 4
          %s457 = smul.addr %s456, 8
          %s458 = scalar_lea.vmem %s6, %s457
        $region120: #{tcn_layer.5} parent=35 // pred_fallthru
          _
      $region36: #{tcn_layer.5} parent=5 // pred_fallthru
        _
      %p459 = scmp.le.s32.totalorder 1, %s24
      %p460 = scmp.lt.s32.totalorder %s24, 33
      %p461 = pnand %p459, %p460
      %p462 = pneg %p461
      // Predicated region
      $region121: #{tcn_layer.5} parent=5 // pred_check
        _
      $region122: #{tcn_layer.5} parent=5 // pred_check_branch
        %464 = sbr.rel (%p461) target = $region124
      $region123: #{tcn_layer.5} parent=5 // pred_region
        %s465 = ssub.s32 %s24, 1
        // Predicated region
        $region125: #{tcn_layer.5} parent=123 // pred_check
          %p466 = pneg %p57
        $region126: #{tcn_layer.5} parent=123 // pred_check_branch
          %468 = sbr.rel (%p466) target = $region128
        $region127: #{tcn_layer.5} parent=123 // pred_region
          %469 = dma.done [#allocation4], 16
        $region128: #{tcn_layer.5} parent=123 // pred_fallthru
          _
        %s470 = sand.u32 %s72, 1
        %s471 = sand.u32 %s72, 1
        %s472 = smul.addr %s471, 16
        %s473 = scalar_lea.vmem [#allocation5], %s472
        // Predicated region
        $region129: #{tcn_layer.5} parent=123 // pred_check
          %p474 = pneg %p85
        $region130: #{tcn_layer.5} parent=123 // pred_check_branch
          %476 = sbr.rel (%p474) target = $region132
        $region131: #{tcn_layer.5} parent=123 // pred_region
          _
        $region132: #{tcn_layer.5} parent=123 // pred_fallthru
          _
        %s477 = sand.u32 %s100, 1
        %s478 = sand.u32 %s100, 1
        %s479 = smul.addr %s478, 16
        %s480 = scalar_lea.vmem [#allocation6], %s479
        // Predicated region
        $region133: #{tcn_layer.5} parent=123 // pred_check
          %p481 = pneg %p113
        $region134: #{tcn_layer.5} parent=123 // pred_check_branch
          %483 = sbr.rel (%p481) target = $region136
        $region135: #{tcn_layer.5} parent=123 // pred_region
          _
        $region136: #{tcn_layer.5} parent=123 // pred_fallthru
          _
        %484 = sfence
        %p485 = pneg %p57
        %p486 = pneg %p54
        %s487 = sand.u32 %s72, 1
        %s488 = sand.u32 %s72, 1
        %s489 = smul.addr %s488, 16
        %s490 = scalar_lea.vmem [#allocation5], %s489
        %p491 = pneg %p85
        %p492 = pneg %p82
        %s493 = sand.u32 %s100, 1
        %s494 = sand.u32 %s100, 1
        %s495 = smul.addr %s494, 16
        %s496 = scalar_lea.vmem [#allocation6], %s495
        %p497 = pneg %p113
        %p498 = pneg %p110
        %p499 = pneg %p134
        %p500 = pneg %p131
        %p501 = pneg %p155
        %p502 = pneg %p152
        %p503 = scmp.lt.s32.totalorder %s33, 7
        %s504 = scalar_select %p503, %s33, 7
        %s505 = smul.addr %s504, 4
        %s506 = smul.addr %s505, 8
        %s507 = scalar_lea.vmem %s5, %s506
        %p508 = pneg %p181
        %p509 = pneg %p178
        %p510 = scmp.lt.s32.totalorder %s33, 7
        %s511 = scalar_select %p510, %s33, 7
        %s512 = smul.addr %s511, 4
        %s513 = smul.addr %s512, 8
        %s514 = scalar_lea.vmem %s6, %s513
        %p515 = pneg %p207
        %p516 = pneg %p204
        %p517 = pneg %p228
        %p518 = pneg %p225
        %p519 = pneg %p249
        %p520 = pneg %p246
        %p521 = pneg %p277
        %p522 = pneg %p274
        %s523 = sand.u32 %s264, 1
        %s524 = scalar_lea.sflag [#allocation3], %s523
        %s525 = sand.u32 %s264, 1
        %s526 = smul.addr %s525, 16
        %s527 = scalar_lea.vmem [#allocation7], %s526
        %p528 = pneg %p305
        %p529 = pneg %p302
        %s530 = sand.u32 %s292, 1
        %s531 = scalar_lea.sflag [#allocation9], %s530
        %s532 = sand.u32 %s292, 1
        %s533 = smul.addr %s532, 16
        %s534 = scalar_lea.vmem [#allocation8], %s533
        %p535 = scmp.lt.s32.totalorder %s33, 7
        %s536 = scalar_select %p535, %s33, 7
        %s537 = smul.addr %s536, 4
        %s538 = smul.addr %s537, 8
        %s539 = scalar_lea.vmem %s5, %s538
        %p540 = scmp.lt.s32.totalorder %s33, 7
        %s541 = scalar_select %p540, %s33, 7
        %s542 = smul.addr %s541, 4
        %s543 = smul.addr %s542, 8
        %s544 = scalar_lea.vmem %s6, %s543
        %v545 = vld [vmem:[%s539] sm:$0xff]
        %v546 = vld [vmem:[%s539 + $0x8] sm:$0xff]
        %v547 = vld [vmem:[%s539 + $0x10] sm:$0xff]
        %v548 = vld [vmem:[%s539 + $0x18] sm:$0xff]
        %v549 = vld [vmem:[%s544] sm:$0xff]
        %v550 = vld [vmem:[%s544 + $0x8] sm:$0xff]
        %v551 = vld [vmem:[%s544 + $0x10] sm:$0xff]
        %v552 = vld [vmem:[%s544 + $0x18] sm:$0xff]
        %v553 = vld [vmem:[%s480] sm:$0xff]
        %v554 = vld [vmem:[%s480 + $0x8] sm:$0xff]
        %v555 = vld [vmem:[%s473] sm:$0xff]
        %v556 = vld [vmem:[%s473 + $0x8] sm:$0xff]
        %v557 = vld [vmem:[%s3] sm:$0xff]
        %v558 = vld [vmem:[%s3 + $0x8] sm:$0xff]
        %v559 = vld [vmem:[%s3 + $0x10] sm:$0xff]
        %v560 = vld [vmem:[%s3 + $0x18] sm:$0xff]
        %s561 = sld [smem:[#allocation2]]
        %v562 = vld [vmem:[%s4] sm:$0xff]
        %v563 = vld [vmem:[%s4 + $0x8] sm:$0xff]
        %v564 = vld [vmem:[%s4 + $0x10] sm:$0xff]
        %v565 = vld [vmem:[%s4 + $0x18] sm:$0xff]
        %568 = vrot.lane.b32.xlu0 %v555, 2
        %v569 = vpop.permute.xlu0 %568
        %570 = vrot.lane.b32.xlu0 %v556, 2
        %v571 = vpop.permute.xlu0 %570
        %vm574 = vcmask 15360
        %v575 = vsel %vm574, %v553, %v569
        %v576 = vsel %vm574, %v554, %v571
        %v577 = vsel %vm574, %v569, %v553
        %v578 = vsel %vm574, %v571, %v554
        %vm579 = vcmask 130048
        %v581 = vsel %vm579, %v557, 0
        %v584 = vsel %vm579, %v558, 0
        %v587 = vsel %vm579, %v559, 0
        %v590 = vsel %vm579, %v560, 0
        %592 = vmatprep.subr.mxu0 0.0
        %593 = vmatpush1.msra.mxu0 0.0
        %594 = vmatprep.subr.mxu0 0.0
        %595 = vmatpush1.msra.mxu0 0.0
        %596 = vmatprep.subr.mxu0 0.0
        %597 = vmatpush1.msra.mxu0 0.0
        %598 = vmatprep.subr.mxu0 0.0
        %599 = vmatpush1.msra.mxu0 0.0
        %600 = vmatprep.subr.mxu0 0.0
        %601 = vmatpush1.msra.mxu0 0.0
        %602 = vmatprep.subr.mxu0 0.0
        %603 = vmatpush1.msra.mxu0 0.0
        %604 = vmatprep.subr.mxu0 0.0
        %605 = vmatpush1.msra.mxu0 0.0
        %606 = vmatprep.subr.mxu0 0.0
        %607 = vmatpush1.msra.mxu0 0.0
        %608 = vmatprep.subr.mxu0 0.0
        %609 = vmatpush1.msra.mxu0 0.0
        %610 = vmatprep.subr.mxu0 0.0
        %611 = vmatpush1.msra.mxu0 0.0
        %612 = vmatprep.subr.mxu0 0.0
        %613 = vmatpush1.msra.mxu0 0.0
        %614 = vmatprep.subr.mxu0 0.0
        %615 = vmatpush1.msra.mxu0 0.0
        %616 = vmatprep.subr.mxu0 0.0
        %617 = vmatpush1.msra.mxu0 0.0
        %618 = vmatprep.subr.mxu0 0.0
        %619 = vmatpush1.msra.mxu0 0.0
        %620 = vmatprep.subr.mxu0 %v578
        %621 = vmatpush1.msra.mxu0 %v576
        %622 = vmatprep.subr.mxu0 %v577
        %623 = vmatpush1.msra.mxu0 %v575
        %624 = vmatprep.subr.mxu0 0.0
        %625 = vmatpush2.msra.mxu0 0.0
        %626 = vmatprep.subr.mxu0 0.0
        %627 = vmatpush2.msra.mxu0 0.0
        %628 = vmatprep.subr.mxu0 0.0
        %629 = vmatpush2.msra.mxu0 0.0
        %630 = vmatprep.subr.mxu0 0.0
        %631 = vmatpush2.msra.mxu0 0.0
        %632 = vmatprep.subr.mxu0 0.0
        %633 = vmatpush2.msra.mxu0 0.0
        %634 = vmatprep.subr.mxu0 0.0
        %635 = vmatpush2.msra.mxu0 0.0
        %636 = vmatprep.subr.mxu0 0.0
        %637 = vmatpush2.msra.mxu0 0.0
        %638 = vmatprep.subr.mxu0 0.0
        %639 = vmatpush2.msra.mxu0 0.0
        %640 = vmatprep.subr.mxu0 0.0
        %641 = vmatpush2.msra.mxu0 0.0
        %642 = vmatprep.subr.mxu0 0.0
        %643 = vmatpush2.msra.mxu0 0.0
        %644 = vmatprep.subr.mxu0 0.0
        %645 = vmatpush2.msra.mxu0 0.0
        %646 = vmatprep.subr.mxu0 0.0
        %647 = vmatpush2.msra.mxu0 0.0
        %648 = vmatprep.subr.mxu0 0.0
        %649 = vmatpush2.msra.mxu0 0.0
        %650 = vmatprep.subr.mxu0 0.0
        %651 = vmatpush2.msra.mxu0 0.0
        %652 = vmatprep.subr.mxu0 0.0
        %653 = vmatpush2.msra.mxu0 0.0
        %654 = vmatprep.subr.mxu0 0.0
        %655 = vmatpush2.msra.mxu0 0.0
        %656 = vmatprep.mubr.f32.mxu0 0.0
        %657 = vmatmul.mubr.f32.gmra.mxu0 %v581
        %v658 = vpop.f32.mrf.mxu0
        %v659 = vadd.f32 0.0, %v658
        %v660 = vpop.f32.mrf.mxu0
        %v661 = vadd.f32 0.0, %v660
        %662 = vmatprep.mubr.f32.mxu0 0.0
        %663 = vmatmul.mubr.f32.gmra.mxu0 %v584
        %v664 = vpop.f32.mrf.mxu0
        %v665 = vadd.f32 0.0, %v664
        %v666 = vpop.f32.mrf.mxu0
        %v667 = vadd.f32 0.0, %v666
        %668 = vmatprep.mubr.f32.mxu0 0.0
        %669 = vmatmul.mubr.f32.gmra.mxu0 %v587
        %v670 = vpop.f32.mrf.mxu0
        %v671 = vadd.f32 0.0, %v670
        %v672 = vpop.f32.mrf.mxu0
        %v673 = vadd.f32 0.0, %v672
        %674 = vmatprep.mubr.f32.mxu0 0.0
        %675 = vmatmul.mubr.f32.gmra.mxu0 %v590
        %v676 = vpop.f32.mrf.mxu0
        %v677 = vadd.f32 0.0, %v676
        %v678 = vpop.f32.mrf.mxu0
        %v679 = vadd.f32 0.0, %v678
        %680 = vdwg.mxu0
        %vm681 = vcmp.gt.f32.partialorder %v659, 0.0
        %vm682 = vcmp.gt.f32.partialorder %v661, 0.0
        %vm683 = vcmp.gt.f32.partialorder %v665, 0.0
        %vm684 = vcmp.gt.f32.partialorder %v667, 0.0
        %vm685 = vcmp.gt.f32.partialorder %v671, 0.0
        %vm686 = vcmp.gt.f32.partialorder %v673, 0.0
        %vm687 = vcmp.gt.f32.partialorder %v677, 0.0
        %vm688 = vcmp.gt.f32.partialorder %v679, 0.0
        %v689 = vstv %s561
        %v690 = vmul.f32 %v689, %v659
        %v691 = vmul.f32 %v689, %v661
        %v692 = vmul.f32 %v689, %v665
        %v693 = vmul.f32 %v689, %v667
        %v694 = vmul.f32 %v689, %v671
        %v695 = vmul.f32 %v689, %v673
        %v696 = vmul.f32 %v689, %v677
        %v697 = vmul.f32 %v689, %v679
        %v698 = vsel %vm681, %v659, %v690
        %v699 = vsel %vm682, %v661, %v691
        %v700 = vsel %vm683, %v665, %v692
        %v701 = vsel %vm684, %v667, %v693
        %v702 = vsel %vm685, %v671, %v694
        %v703 = vsel %vm686, %v673, %v695
        %v704 = vsel %vm687, %v677, %v696
        %v705 = vsel %vm688, %v679, %v697
        %707 = vset.pattern.permute.xlu0 0
        %708 = vperm.xlu0 %707, %v545
        %v709 = vpop.permute.xlu0 %708
        %712 = vset.pattern.permute.xlu0 0
        %713 = vperm.xlu0 %712, %v546
        %v714 = vpop.permute.xlu0 %713
        %717 = vset.pattern.permute.xlu0 0
        %718 = vperm.xlu0 %717, %v547
        %v719 = vpop.permute.xlu0 %718
        %722 = vset.pattern.permute.xlu0 0
        %723 = vperm.xlu0 %722, %v548
        %v724 = vpop.permute.xlu0 %723
        %v726 = vmul.f32 %v698, %v709
        %v727 = vmul.f32 %v699, %v709
        %v728 = vmul.f32 %v700, %v714
        %v729 = vmul.f32 %v701, %v714
        %v730 = vmul.f32 %v702, %v719
        %v731 = vmul.f32 %v703, %v719
        %v732 = vmul.f32 %v704, %v724
        %v733 = vmul.f32 %v705, %v724
        %734 = vset.pattern.permute.xlu0 1
        %735 = vperm.xlu0 %734, %v545
        %v736 = vpop.permute.xlu0 %735
        %738 = vset.pattern.permute.xlu0 1
        %739 = vperm.xlu0 %738, %v546
        %v740 = vpop.permute.xlu0 %739
        %742 = vset.pattern.permute.xlu0 1
        %743 = vperm.xlu0 %742, %v547
        %v744 = vpop.permute.xlu0 %743
        %746 = vset.pattern.permute.xlu0 1
        %747 = vperm.xlu0 %746, %v548
        %v748 = vpop.permute.xlu0 %747
        %v750 = vadd.f32 %v726, %v736
        %v751 = vadd.f32 %v727, %v736
        %v752 = vadd.f32 %v728, %v740
        %v753 = vadd.f32 %v729, %v740
        %v754 = vadd.f32 %v730, %v744
        %v755 = vadd.f32 %v731, %v744
        %v756 = vadd.f32 %v732, %v748
        %v757 = vadd.f32 %v733, %v748
        %v758 = vlaneseq
        %v759 = vand.u32 %v758, 127
        %v760 = vadd.s32 %v759, 128
        %s761 = smul.u32 %s34, 128
        %s762 = ssub.s32 %s761, 2
        %v763 = vstv %s762
        %v764 = vadd.s32 %v759, %v763
        %v765 = vadd.s32 %v760, %v763
        %vm766 = vcmp.ge.s32.totalorder %v764, 0
        %vm767 = vcmp.ge.s32.totalorder %v765, 0
        %vm768 = vcmp.lt.s32.totalorder %v764, 512
        %vm769 = vcmp.lt.s32.totalorder %v765, 512
        %vm770 = vmand %vm766, %vm768
        %vm771 = vmand %vm767, %vm769
        %v772 = vsel %vm770, 1, 0
        %v773 = vsel %vm771, 1, 0
        %v774 = vcvt.s32.f32 %v772
        %v775 = vcvt.s32.f32 %v773
        %v776 = vmul.f32 %v750, %v774
        %v777 = vmul.f32 %v751, %v775
        %v778 = vmul.f32 %v752, %v774
        %v779 = vmul.f32 %v753, %v775
        %v780 = vmul.f32 %v754, %v774
        %v781 = vmul.f32 %v755, %v775
        %v782 = vmul.f32 %v756, %v774
        %v783 = vmul.f32 %v757, %v775
        %785 = vset.pattern.permute.xlu0 0
        %786 = vperm.xlu0 %785, %v562
        %v787 = vpop.permute.xlu0 %786
        %790 = vset.pattern.permute.xlu0 0
        %791 = vperm.xlu0 %790, %v563
        %v792 = vpop.permute.xlu0 %791
        %795 = vset.pattern.permute.xlu0 0
        %796 = vperm.xlu0 %795, %v564
        %v797 = vpop.permute.xlu0 %796
        %800 = vset.pattern.permute.xlu0 0
        %801 = vperm.xlu0 %800, %v565
        %v802 = vpop.permute.xlu0 %801
        %v804 = vmul.f32 %v787, %v776
        %v805 = vmul.f32 %v792, %v778
        %v806 = vmul.f32 %v797, %v780
        %v807 = vmul.f32 %v802, %v782
        %808 = vset.pattern.permute.xlu0 1
        %809 = vperm.xlu0 %808, %v562
        %v810 = vpop.permute.xlu0 %809
        %812 = vset.pattern.permute.xlu0 1
        %813 = vperm.xlu0 %812, %v563
        %v814 = vpop.permute.xlu0 %813
        %816 = vset.pattern.permute.xlu0 1
        %817 = vperm.xlu0 %816, %v564
        %v818 = vpop.permute.xlu0 %817
        %820 = vset.pattern.permute.xlu0 1
        %821 = vperm.xlu0 %820, %v565
        %v822 = vpop.permute.xlu0 %821
        %v824 = vmul.f32 %v810, %v776
        %v825 = vmul.f32 %v810, %v777
        %v826 = vmul.f32 %v814, %v778
        %v827 = vmul.f32 %v814, %v779
        %v828 = vmul.f32 %v818, %v780
        %v829 = vmul.f32 %v818, %v781
        %v830 = vmul.f32 %v822, %v782
        %v831 = vmul.f32 %v822, %v783
        %840 = vrot.lane.b32.xlu0 %v824, 126
        %v841 = vpop.permute.xlu0 %840
        %842 = vrot.lane.b32.xlu0 %v825, 126
        %v843 = vpop.permute.xlu0 %842
        %844 = vrot.lane.b32.xlu0 %v826, 126
        %v845 = vpop.permute.xlu0 %844
        %846 = vrot.lane.b32.xlu0 %v827, 126
        %v847 = vpop.permute.xlu0 %846
        %848 = vrot.lane.b32.xlu0 %v828, 126
        %v849 = vpop.permute.xlu0 %848
        %850 = vrot.lane.b32.xlu0 %v829, 126
        %v851 = vpop.permute.xlu0 %850
        %852 = vrot.lane.b32.xlu0 %v830, 126
        %v853 = vpop.permute.xlu0 %852
        %854 = vrot.lane.b32.xlu0 %v831, 126
        %v855 = vpop.permute.xlu0 %854
        %vm856 = vcmask 1031168
        %v857 = vsel %vm856, %v841, %v843
        %v858 = vsel %vm856, %v845, %v847
        %v859 = vsel %vm856, %v849, %v851
        %v860 = vsel %vm856, %v853, %v855
        %v865 = vadd.f32 %v804, %v857
        %v866 = vadd.f32 %v805, %v858
        %v867 = vadd.f32 %v806, %v859
        %v868 = vadd.f32 %v807, %v860
        %869 = vset.pattern.permute.xlu0 2
        %870 = vperm.xlu0 %869, %v562
        %v871 = vpop.permute.xlu0 %870
        %873 = vset.pattern.permute.xlu0 2
        %874 = vperm.xlu0 %873, %v563
        %v875 = vpop.permute.xlu0 %874
        %877 = vset.pattern.permute.xlu0 2
        %878 = vperm.xlu0 %877, %v564
        %v879 = vpop.permute.xlu0 %878
        %881 = vset.pattern.permute.xlu0 2
        %882 = vperm.xlu0 %881, %v565
        %v883 = vpop.permute.xlu0 %882
        %v885 = vmul.f32 %v871, %v776
        %v886 = vmul.f32 %v871, %v777
        %v887 = vmul.f32 %v875, %v778
        %v888 = vmul.f32 %v875, %v779
        %v889 = vmul.f32 %v879, %v780
        %v890 = vmul.f32 %v879, %v781
        %v891 = vmul.f32 %v883, %v782
        %v892 = vmul.f32 %v883, %v783
        %901 = vrot.lane.b32.xlu0 %v885, 124
        %v902 = vpop.permute.xlu0 %901
        %903 = vrot.lane.b32.xlu0 %v886, 124
        %v904 = vpop.permute.xlu0 %903
        %905 = vrot.lane.b32.xlu0 %v887, 124
        %v906 = vpop.permute.xlu0 %905
        %907 = vrot.lane.b32.xlu0 %v888, 124
        %v908 = vpop.permute.xlu0 %907
        %909 = vrot.lane.b32.xlu0 %v889, 124
        %v910 = vpop.permute.xlu0 %909
        %911 = vrot.lane.b32.xlu0 %v890, 124
        %v912 = vpop.permute.xlu0 %911
        %913 = vrot.lane.b32.xlu0 %v891, 124
        %v914 = vpop.permute.xlu0 %913
        %915 = vrot.lane.b32.xlu0 %v892, 124
        %v916 = vpop.permute.xlu0 %915
        %vm917 = vcmask 1014784
        %v918 = vsel %vm917, %v902, %v904
        %v919 = vsel %vm917, %v906, %v908
        %v920 = vsel %vm917, %v910, %v912
        %v921 = vsel %vm917, %v914, %v916
        %v926 = vadd.f32 %v865, %v918
        %v927 = vadd.f32 %v866, %v919
        %v928 = vadd.f32 %v867, %v920
        %v929 = vadd.f32 %v868, %v921
        %vm930 = vcmp.gt.f32.partialorder %v926, 0.0
        %vm931 = vcmp.gt.f32.partialorder %v927, 0.0
        %vm932 = vcmp.gt.f32.partialorder %v928, 0.0
        %vm933 = vcmp.gt.f32.partialorder %v929, 0.0
        %s934 = sld [smem:[#allocation2 + $0x1]]
        %v935 = vstv %s934
        %v936 = vmul.f32 %v935, %v926
        %v937 = vmul.f32 %v935, %v927
        %v938 = vmul.f32 %v935, %v928
        %v939 = vmul.f32 %v935, %v929
        %v940 = vsel %vm930, %v926, %v936
        %v941 = vsel %vm931, %v927, %v937
        %v942 = vsel %vm932, %v928, %v938
        %v943 = vsel %vm933, %v929, %v939
        %945 = vset.pattern.permute.xlu0 0
        %946 = vperm.xlu0 %945, %v549
        %v947 = vpop.permute.xlu0 %946
        %950 = vset.pattern.permute.xlu0 0
        %951 = vperm.xlu0 %950, %v550
        %v952 = vpop.permute.xlu0 %951
        %955 = vset.pattern.permute.xlu0 0
        %956 = vperm.xlu0 %955, %v551
        %v957 = vpop.permute.xlu0 %956
        %960 = vset.pattern.permute.xlu0 0
        %961 = vperm.xlu0 %960, %v552
        %v962 = vpop.permute.xlu0 %961
        %v964 = vmul.f32 %v940, %v947
        %v965 = vmul.f32 %v941, %v952
        %v966 = vmul.f32 %v942, %v957
        %v967 = vmul.f32 %v943, %v962
        %968 = vset.pattern.permute.xlu0 1
        %969 = vperm.xlu0 %968, %v549
        %v970 = vpop.permute.xlu0 %969
        %972 = vset.pattern.permute.xlu0 1
        %973 = vperm.xlu0 %972, %v550
        %v974 = vpop.permute.xlu0 %973
        %976 = vset.pattern.permute.xlu0 1
        %977 = vperm.xlu0 %976, %v551
        %v978 = vpop.permute.xlu0 %977
        %980 = vset.pattern.permute.xlu0 1
        %981 = vperm.xlu0 %980, %v552
        %v982 = vpop.permute.xlu0 %981
        %v984 = vadd.f32 %v964, %v970
        %v985 = vadd.f32 %v965, %v974
        %v986 = vadd.f32 %v966, %v978
        %v987 = vadd.f32 %v967, %v982
        %v988 = vld [vmem:[%s7] sm:$0xff]
        %v989 = vld [vmem:[%s7 + $0x8] sm:$0xff]
        %v990 = vld [vmem:[%s7 + $0x10] sm:$0xff]
        %v991 = vld [vmem:[%s7 + $0x18] sm:$0xff]
        %v992 = vld [vmem:[%s8] sm:$0xff]
        %v993 = vld [vmem:[%s8 + $0x8] sm:$0xff]
        %v994 = vld [vmem:[%s8 + $0x10] sm:$0xff]
        %v995 = vld [vmem:[%s8 + $0x18] sm:$0xff]
        %997 = vset.pattern.permute.xlu0 0
        %998 = vperm.xlu0 %997, %v992
        %v999 = vpop.permute.xlu0 %998
        %1002 = vset.pattern.permute.xlu0 0
        %1003 = vperm.xlu0 %1002, %v993
        %v1004 = vpop.permute.xlu0 %1003
        %1007 = vset.pattern.permute.xlu0 0
        %1008 = vperm.xlu0 %1007, %v994
        %v1009 = vpop.permute.xlu0 %1008
        %1012 = vset.pattern.permute.xlu0 0
        %1013 = vperm.xlu0 %1012, %v995
        %v1014 = vpop.permute.xlu0 %1013
        %vm1016 = vcmask 261120
        %v1018 = vsel %vm1016, %v988, 0
        %v1021 = vsel %vm1016, %v989, 0
        %v1024 = vsel %vm1016, %v990, 0
        %v1027 = vsel %vm1016, %v991, 0
        %1029 = vmatprep.subr.mxu0 0.0
        %1030 = vmatpush1.msra.mxu0 0.0
        %1031 = vmatprep.subr.mxu0 0.0
        %1032 = vmatpush1.msra.mxu0 0.0
        %1033 = vmatprep.subr.mxu0 0.0
        %1034 = vmatpush1.msra.mxu0 0.0
        %1035 = vmatprep.subr.mxu0 0.0
        %1036 = vmatpush1.msra.mxu0 0.0
        %1037 = vmatprep.subr.mxu0 0.0
        %1038 = vmatpush1.msra.mxu0 0.0
        %1039 = vmatprep.subr.mxu0 0.0
        %1040 = vmatpush1.msra.mxu0 0.0
        %1041 = vmatprep.subr.mxu0 0.0
        %1042 = vmatpush1.msra.mxu0 0.0
        %1043 = vmatprep.subr.mxu0 0.0
        %1044 = vmatpush1.msra.mxu0 0.0
        %1045 = vmatprep.subr.mxu0 0.0
        %1046 = vmatpush1.msra.mxu0 0.0
        %1047 = vmatprep.subr.mxu0 0.0
        %1048 = vmatpush1.msra.mxu0 0.0
        %1049 = vmatprep.subr.mxu0 0.0
        %1050 = vmatpush1.msra.mxu0 0.0
        %1051 = vmatprep.subr.mxu0 0.0
        %1052 = vmatpush1.msra.mxu0 0.0
        %1053 = vmatprep.subr.mxu0 0.0
        %1054 = vmatpush1.msra.mxu0 %v987
        %1055 = vmatprep.subr.mxu0 0.0
        %1056 = vmatpush1.msra.mxu0 %v986
        %1057 = vmatprep.subr.mxu0 0.0
        %1058 = vmatpush1.msra.mxu0 %v985
        %1059 = vmatprep.subr.mxu0 0.0
        %1060 = vmatpush1.msra.mxu0 %v984
        %1061 = vmatprep.subr.mxu0 0.0
        %1062 = vmatpush2.msra.mxu0 0.0
        %1063 = vmatprep.subr.mxu0 0.0
        %1064 = vmatpush2.msra.mxu0 0.0
        %1065 = vmatprep.subr.mxu0 0.0
        %1066 = vmatpush2.msra.mxu0 0.0
        %1067 = vmatprep.subr.mxu0 0.0
        %1068 = vmatpush2.msra.mxu0 0.0
        %1069 = vmatprep.subr.mxu0 0.0
        %1070 = vmatpush2.msra.mxu0 0.0
        %1071 = vmatprep.subr.mxu0 0.0
        %1072 = vmatpush2.msra.mxu0 0.0
        %1073 = vmatprep.subr.mxu0 0.0
        %1074 = vmatpush2.msra.mxu0 0.0
        %1075 = vmatprep.subr.mxu0 0.0
        %1076 = vmatpush2.msra.mxu0 0.0
        %1077 = vmatprep.subr.mxu0 0.0
        %1078 = vmatpush2.msra.mxu0 0.0
        %1079 = vmatprep.subr.mxu0 0.0
        %1080 = vmatpush2.msra.mxu0 0.0
        %1081 = vmatprep.subr.mxu0 0.0
        %1082 = vmatpush2.msra.mxu0 0.0
        %1083 = vmatprep.subr.mxu0 0.0
        %1084 = vmatpush2.msra.mxu0 0.0
        %1085 = vmatprep.subr.mxu0 0.0
        %1086 = vmatpush2.msra.mxu0 0.0
        %1087 = vmatprep.subr.mxu0 0.0
        %1088 = vmatpush2.msra.mxu0 0.0
        %1089 = vmatprep.subr.mxu0 0.0
        %1090 = vmatpush2.msra.mxu0 0.0
        %1091 = vmatprep.subr.mxu0 0.0
        %1092 = vmatpush2.msra.mxu0 0.0
        %1093 = vmatprep.mubr.f32.mxu0 0.0
        %1094 = vmatmul.mubr.f32.gmra.mxu0 %v1018
        %v1095 = vpop.f32.mrf.mxu0
        %v1096 = vadd.f32 %v999, %v1095
        %v1097 = vpop.f32.mrf.mxu0
        %1098 = vmatprep.mubr.f32.mxu0 0.0
        %1099 = vmatmul.mubr.f32.gmra.mxu0 %v1021
        %v1100 = vpop.f32.mrf.mxu0
        %v1101 = vadd.f32 %v1004, %v1100
        %v1102 = vpop.f32.mrf.mxu0
        %1103 = vmatprep.mubr.f32.mxu0 0.0
        %1104 = vmatmul.mubr.f32.gmra.mxu0 %v1024
        %v1105 = vpop.f32.mrf.mxu0
        %v1106 = vadd.f32 %v1009, %v1105
        %v1107 = vpop.f32.mrf.mxu0
        %1108 = vmatprep.mubr.f32.mxu0 0.0
        %1109 = vmatmul.mubr.f32.gmra.mxu0 %v1027
        %v1110 = vpop.f32.mrf.mxu0
        %v1111 = vadd.f32 %v1014, %v1110
        %v1112 = vpop.f32.mrf.mxu0
        %1113 = vdwg.mxu0
        %1114 = vst [vmem:[%s527] sm:$0xff] %v1096
        %1115 = vst [vmem:[%s527 + $0x8] sm:$0xff] %v1101
        %1116 = vst [vmem:[%s534] sm:$0xff] %v1106
        %1117 = vst [vmem:[%s534 + $0x8] sm:$0xff] %v1111
        %s1118 = sand.u32 %s264, 1
        %s1119 = scalar_lea.sflag [#allocation3], %s1118
        %s1120 = sand.u32 %s264, 1
        %s1121 = smul.addr %s1120, 16
        %s1122 = scalar_lea.vmem [#allocation7], %s1121
        %s1123 = sand.u32 %s292, 1
        %s1124 = scalar_lea.sflag [#allocation9], %s1123
        %s1125 = sand.u32 %s292, 1
        %s1126 = smul.addr %s1125, 16
        %s1127 = scalar_lea.vmem [#allocation8], %s1126
        // Predicated region
        $region137: #{tcn_layer.5} parent=123 // pred_check
          %p1128 = pneg %p274
        $region138: #{tcn_layer.5} parent=123 // pred_check_branch
          %1130 = sbr.rel (%p1128) target = $region140
        $region139: #{tcn_layer.5} parent=123 // pred_region
          %s1132 = ssub.s32 256, 256
          %1133 = vsyncadd %s1119, %s1132
          %s1134 = smul.addr %s33, 8
          %s1135 = sadd.s32 %s34, %s1134
          %s1136 = smul.addr %s1135, 128
          %s1137 = scalar_lea.hbm %s9, %s1136
          %s1138 = sshll.u32 %s1122, 4
          %s1139 = int_to_ptr.vmem [resolvable:$true] %s1138
          %1144 = dma.vmem_to_hbm [thread:$0]  %s1139, 256, %s1137, %s1119, 128, 512, 8
        $region140: #{tcn_layer.5} parent=123 // pred_fallthru
          _
        // Predicated region
        $region141: #{tcn_layer.5} parent=123 // pred_check
          %p1145 = pneg %p302
        $region142: #{tcn_layer.5} parent=123 // pred_check_branch
          %1147 = sbr.rel (%p1145) target = $region144
        $region143: #{tcn_layer.5} parent=123 // pred_region
          %s1149 = ssub.s32 256, 256
          %1150 = vsyncadd %s1124, %s1149
          %s1151 = smul.addr %s33, 8
          %s1152 = sadd.s32 %s34, %s1151
          %s1153 = smul.addr %s1152, 128
          %s1154 = scalar_lea.hbm %s10, %s1153
          %s1155 = sshll.u32 %s1127, 4
          %s1156 = int_to_ptr.vmem [resolvable:$true] %s1155
          %1161 = dma.vmem_to_hbm [thread:$0]  %s1156, 256, %s1154, %s1124, 128, 512, 8
        $region144: #{tcn_layer.5} parent=123 // pred_fallthru
          _
      $region124: #{tcn_layer.5} parent=5 // pred_fallthru
        _
      %p1162 = scmp.le.s32.totalorder 2, %s24
      // Predicated region
      $region145: #{tcn_layer.5} parent=5 // pred_check
        %p1163 = pneg %p1162
      $region146: #{tcn_layer.5} parent=5 // pred_check_branch
        %1165 = sbr.rel (%p1163) target = $region148
      $region147: #{tcn_layer.5} parent=5 // pred_region
        %s1166 = ssub.s32 %s24, 2
        // Predicated region
        $region149: #{tcn_layer.5} parent=147 // pred_check
          %p1167 = pneg %p280
        $region150: #{tcn_layer.5} parent=147 // pred_check_branch
          %1169 = sbr.rel (%p1167) target = $region152
        $region151: #{tcn_layer.5} parent=147 // pred_region
          %s1170 = sand.u32 %s265, 1
          %s1171 = scalar_lea.sflag [#allocation3], %s1170
          %s1172 = sand.u32 %s265, 1
          %s1173 = smul.addr %s1172, 16
          %s1174 = scalar_lea.vmem [#allocation7], %s1173
          %1175 = dma.done %s1171, 256
        $region152: #{tcn_layer.5} parent=147 // pred_fallthru
          _
        // Predicated region
        $region153: #{tcn_layer.5} parent=147 // pred_check
          %p1176 = pneg %p308
        $region154: #{tcn_layer.5} parent=147 // pred_check_branch
          %1178 = sbr.rel (%p1176) target = $region156
        $region155: #{tcn_layer.5} parent=147 // pred_region
          %s1179 = sand.u32 %s293, 1
          %s1180 = scalar_lea.sflag [#allocation9], %s1179
          %s1181 = sand.u32 %s293, 1
          %s1182 = smul.addr %s1181, 16
          %s1183 = scalar_lea.vmem [#allocation8], %s1182
          %1184 = dma.done %s1180, 256
        $region156: #{tcn_layer.5} parent=147 // pred_fallthru
          _
      $region148: #{tcn_layer.5} parent=5 // pred_fallthru
        _
    $region6: #{tcn_layer.5} parent=1 // loop_footer
      %s28 = sadd.s32 1, %s24
    $region7: #{tcn_layer.5} parent=1 // loop_footer_branch
      %23 = sbr.rel target = $region3
    $region8: #{tcn_layer.5} parent=1 // loop_exit
      _
    %1185 = vsyncpa [#allocation3], 1
    %s1186 = scalar_lea.sflag [#allocation3], 1
    %1187 = vsyncpa %s1186, 1
    %1188 = vsyncpa [#allocation9], 1
    %s1189 = scalar_lea.sflag [#allocation9], 1
    %1190 = vsyncpa %s1189, 1
    %1191 = vsyncpa [#allocation4], 1
    %s1192 = scalar_lea.sflag [#allocation4], 1
    %1193 = vsyncpa %s1192, 1

</llo_original>
